<compile_context>
chip_gen: v7x
topology: tpu7x:2x2x1
jax: 0.10.0
libtpu: 0.0.40
codegen_flags: <defaults>
</compile_context>

<pallas_src>
import functools

import jax
import jax.numpy as jnp
from jax.experimental import pallas as pl
from jax.experimental.pallas import tpu as pltpu


# ---------------------------------------------------------------------------
# Fused seq2seq kernel (single invocation)
# ---------------------------------------------------------------------------
def _seq2seq_kernel(enc_x_ref, dec_x_ref, len_ref,
                    enc_w_ih_ref, enc_w_hh_ref, enc_b_ref, enc_b_hn_ref,
                    dec_w_ih_ref, dec_w_hh_ref, dec_b_ref, dec_b_hn_ref,
                    out_w_ref, out_b_ref,
                    logp_ref, dec_h_ref,
                    *, T_in, T_lab, B, H):
    # B here is the padded batch (multiple of 8): every t*B slice below is
    # sublane-aligned.

    def gru_step(gx, w_hh, b_hn, h):
        # gx: [B, 3H] pre-projected input gates (r|z|n); one MXU matmul for gh.
        gh = jnp.dot(h, w_hh, preferred_element_type=jnp.float32)     # [B, 3H]
        # fused r/z sigmoid over the contiguous first 2H lanes (one EUP push)
        rz = jax.nn.sigmoid(gx[:, :2 * H] + gh[:, :2 * H])
        r = rz[:, :H]
        z = rz[:, H:]
        n = jnp.tanh(gx[:, 2 * H:] + r * (gh[:, 2 * H:] + b_hn))
        return (1.0 - z) * n + z * h

    # ---- hoisted input-to-hidden projections: one matmul per GRU ------------
    enc_xp = jnp.dot(enc_x_ref[...], enc_w_ih_ref[...],
                     preferred_element_type=jnp.float32) + enc_b_ref[...]
    dec_xp = jnp.dot(dec_x_ref[...], dec_w_ih_ref[...],
                     preferred_element_type=jnp.float32) + dec_b_ref[...]

    # ---- per-batch length vector: single VMEM vector load --------------------
    len_vec = len_ref[...]                                             # [B, 1] int32

    # ---- encoder: only the final (length-masked) hidden is needed ------------
    # TODO(synk): W_hh could be held weight-stationary in the MXU across the
    # unrolled steps (matmul_push_rhs/acc_lhs/pop) for larger H.
    h = jnp.zeros((B, H), jnp.float32)
    enc_w_hh = enc_w_hh_ref[...]
    enc_b_hn = enc_b_hn_ref[...]
    for t in range(T_in):
        h_new = gru_step(enc_xp[t * B:(t + 1) * B, :], enc_w_hh, enc_b_hn, h)
        # pack_padded semantics: freeze h once t >= len[b]
        h = jnp.where(t < len_vec, h_new, h)

    # ---- decoder (teacher-forced, full T_lab); hiddens stay in vregs ---------
    dec_w_hh = dec_w_hh_ref[...]
    dec_b_hn = dec_b_hn_ref[...]
    hs = []
    for t in range(T_lab):
        h = gru_step(dec_xp[t * B:(t + 1) * B, :], dec_w_hh, dec_b_hn, h)
        hs.append(h)
    dec_h_ref[...] = h

    # ---- vocab projection + log_softmax: one matmul for all T_lab*B rows -----
    # out_w/out_b are lane-padded to a multiple of 128; padded bias lanes are
    # -1e30 so they contribute exp~0 and do not perturb max / logsumexp.
    h_all = jnp.concatenate(hs, axis=0)                                # [T_lab*B, H]
    logits = jnp.dot(h_all, out_w_ref[...],
                     preferred_element_type=jnp.float32) + out_b_ref[...]
    m = jnp.max(logits, axis=-1, keepdims=True)
    s = logits - m
    lse = jnp.log(jnp.sum(jnp.exp(s), axis=-1, keepdims=True))
    logp_ref[...] = s - lse                                            # lane-dense store


def seq2seq_pallas(params_p, enc_x2d, dec_x2d, len_col,
                   *, T_in, T_lab, B, H, V_pad, E):
    kernel = functools.partial(_seq2seq_kernel, T_in=T_in, T_lab=T_lab, B=B, H=H)
    return pl.pallas_call(
        kernel,
        out_shape=(jax.ShapeDtypeStruct((T_lab * B, V_pad), jnp.float32),
                   jax.ShapeDtypeStruct((B, H), jnp.float32)),
        grid_spec=pltpu.PrefetchScalarGridSpec(
            num_scalar_prefetch=0,
            grid=(1,),                   # single invocation; time loops unrolled in-body
            in_specs=[
                pl.BlockSpec((T_in * B, E), lambda i: (0, 0)),    # enc embeddings
                pl.BlockSpec((T_lab * B, E), lambda i: (0, 0)),   # dec embeddings
                pl.BlockSpec((B, 1), lambda i: (0, 0)),           # input_len column
                pl.BlockSpec((E, 3 * H), lambda i: (0, 0)),       # enc W_ih (r|z|n)
                pl.BlockSpec((H, 3 * H), lambda i: (0, 0)),       # enc W_hh (r|z|n)
                pl.BlockSpec((1, 3 * H), lambda i: (0, 0)),       # enc fused bias
                pl.BlockSpec((1, H), lambda i: (0, 0)),           # enc b_hn
                pl.BlockSpec((E, 3 * H), lambda i: (0, 0)),       # dec W_ih
                pl.BlockSpec((H, 3 * H), lambda i: (0, 0)),       # dec W_hh
                pl.BlockSpec((1, 3 * H), lambda i: (0, 0)),       # dec fused bias
                pl.BlockSpec((1, H), lambda i: (0, 0)),           # dec b_hn
                pl.BlockSpec((H, V_pad), lambda i: (0, 0)),       # out W (lane-padded)
                pl.BlockSpec((1, V_pad), lambda i: (0, 0)),       # out b (lane-padded)
            ],
            out_specs=[
                pl.BlockSpec((T_lab * B, V_pad), lambda i: (0, 0)),  # log-probs
                pl.BlockSpec((B, H), lambda i: (0, 0)),              # final dec hidden
            ],
        ),
        compiler_params=pltpu.CompilerParams(
            dimension_semantics=("arbitrary",)),
    )(enc_x2d, dec_x2d, len_col,
      params_p["enc_w_ih"], params_p["enc_w_hh"], params_p["enc_b"], params_p["enc_b_hn"],
      params_p["dec_w_ih"], params_p["dec_w_hh"], params_p["dec_b"], params_p["dec_b_hn"],
      params_p["out_w_p"], params_p["out_b_p"])


# ---------------------------------------------------------------------------
# Parameters (fused gate-concatenated layout, r/z biases pre-added at init)
# ---------------------------------------------------------------------------
def init_params(key, vocab=16, embed=32, hidden=32):
    bound = 1.0 / (hidden ** 0.5)
    ks = jax.random.split(key, 12)

    def u(k, shape):
        return jax.random.uniform(k, shape, jnp.float32, -bound, bound)

    def gru_params(kwi, kwh, kbi, kbh, in_dim):
        w_ih = u(kwi, (in_dim, 3 * hidden))        # gates (r, z, n) along lanes
        w_hh = u(kwh, (hidden, 3 * hidden))
        b_ih = u(kbi, (1, 3 * hidden))
        b_hh = u(kbh, (1, 3 * hidden))
        # pre-add the r/z hidden biases; b_hn stays separate (inside r * (...))
        b = b_ih + jnp.concatenate(
            [b_hh[:, :2 * hidden], jnp.zeros((1, hidden), jnp.float32)], axis=-1)
        b_hn = b_hh[:, 2 * hidden:]
        return w_ih, w_hh, b, b_hn

    enc_w_ih, enc_w_hh, enc_b, enc_b_hn = gru_params(ks[1], ks[2], ks[3], ks[4], embed)
    dec_w_ih, dec_w_hh, dec_b, dec_b_hn = gru_params(ks[6], ks[7], ks[8], ks[9], embed)

    return dict(
        enc_embed=u(ks[0], (vocab, embed)),
        enc_w_ih=enc_w_ih, enc_w_hh=enc_w_hh, enc_b=enc_b, enc_b_hn=enc_b_hn,
        dec_embed=u(ks[5], (vocab, embed)),
        dec_w_ih=dec_w_ih, dec_w_hh=dec_w_hh, dec_b=dec_b, dec_b_hn=dec_b_hn,
        out_w=u(ks[10], (hidden, vocab)),
        out_b=u(ks[11], (1, vocab)),
    )


# ---------------------------------------------------------------------------
# Forward pass (embedding gathers + padding / layout plumbing stay in XLA)
# ---------------------------------------------------------------------------
@jax.jit
def seq2seq_forward(params, input_ids, input_len, label_ids, label_len):
    """input_ids/label_ids: int32 [B, T]; input_len/label_len: int32 [B]."""
    del label_len   # accepted but unused (teacher-forced full-length decode)
    B, T_in = input_ids.shape
    _, T_lab = label_ids.shape
    E = params["enc_embed"].shape[1]
    H = params["enc_w_hh"].shape[0]
    V = params["out_w"].shape[1]

    B_pad = max(8, ((B + 7) // 8) * 8)        # fill the 8-sublane dimension
    V_pad = ((V + 127) // 128) * 128          # lane-dense output (multiple of 128)

    enc_emb = jnp.take(params["enc_embed"], input_ids, axis=0)   # [B, T_in, E]
    dec_emb = jnp.take(params["dec_embed"], label_ids, axis=0)   # [B, T_lab, E]
    # pad batch to B_pad (padded rows: zero embeddings, length 0)
    enc_emb = jnp.pad(enc_emb, ((0, B_pad - B), (0, 0), (0, 0)))
    dec_emb = jnp.pad(dec_emb, ((0, B_pad - B), (0, 0), (0, 0)))
    len_col = jnp.pad(input_len.astype(jnp.int32), (0, B_pad - B))[:, None]  # [B_pad,1]

    # time-major, flattened so the kernel does ONE input projection matmul per GRU
    enc_x2d = jnp.transpose(enc_emb, (1, 0, 2)).reshape(T_in * B_pad, E)
    dec_x2d = jnp.transpose(dec_emb, (1, 0, 2)).reshape(T_lab * B_pad, E)

    # lane-pad the output projection; padded bias lanes = -1e30 (exp ~ 0)
    out_w_p = jnp.pad(params["out_w"], ((0, 0), (0, V_pad - V)))
    out_b_p = jnp.pad(params["out_b"], ((0, 0), (0, V_pad - V)),
                      constant_values=-1e30)
    params_p = dict(params, out_w_p=out_w_p, out_b_p=out_b_p)

    logp_flat, dec_h = seq2seq_pallas(params_p, enc_x2d, dec_x2d, len_col,
                                      T_in=T_in, T_lab=T_lab, B=B_pad, H=H,
                                      V_pad=V_pad, E=E)
    logp = logp_flat.reshape(T_lab, B_pad, V_pad)[:, :B, :V]
    decoder_output = jnp.transpose(logp, (1, 0, 2))                   # [B, T_lab, V]
    decoder_hidden = dec_h[:B][None]                                  # [1, B, H]
    return decoder_output, decoder_hidden


# ---------------------------------------------------------------------------
# Pure-JAX reference (same math, XLA only) for correctness checking
# ---------------------------------------------------------------------------
def _gru_ref(x2d, w_ih, w_hh, b, b_hn, h0, T, B, H, lengths=None):
    hp = jax.lax.Precision.HIGHEST
    xp = jnp.dot(x2d, w_ih, precision=hp) + b
    h = h0
    hs = []
    for t in range(T):
        gx = xp[t * B:(t + 1) * B]
        gh = jnp.dot(h, w_hh, precision=hp)
        r = jax.nn.sigmoid(gx[:, :H] + gh[:, :H])
        z = jax.nn.sigmoid(gx[:, H:2 * H] + gh[:, H:2 * H])
        n = jnp.tanh(gx[:, 2 * H:] + r * (gh[:, 2 * H:] + b_hn))
        h_new = (1.0 - z) * n + z * h
        if lengths is not None:
            h_new = jnp.where((t < lengths)[:, None], h_new, h)
        h = h_new
        hs.append(h)
    return h, jnp.concatenate(hs, axis=0)


def seq2seq_reference(params, input_ids, input_len, label_ids, label_len):
    del label_len
    B, T_in = input_ids.shape
    _, T_lab = label_ids.shape
    E = params["enc_embed"].shape[1]
    H = params["enc_w_hh"].shape[0]
    V = params["out_w"].shape[1]

    enc_x2d = jnp.transpose(jnp.take(params["enc_embed"], input_ids, axis=0),
                            (1, 0, 2)).reshape(T_in * B, E)
    dec_x2d = jnp.transpose(jnp.take(params["dec_embed"], label_ids, axis=0),
                            (1, 0, 2)).reshape(T_lab * B, E)

    enc_h, _ = _gru_ref(enc_x2d, params["enc_w_ih"], params["enc_w_hh"],
                        params["enc_b"], params["enc_b_hn"],
                        jnp.zeros((B, H), jnp.float32), T_in, B, H,
                        lengths=input_len)
    dec_h, h_all = _gru_ref(dec_x2d, params["dec_w_ih"], params["dec_w_hh"],
                            params["dec_b"], params["dec_b_hn"],
                            enc_h, T_lab, B, H)
    logits = jnp.dot(h_all, params["out_w"],
                     precision=jax.lax.Precision.HIGHEST) + params["out_b"]
    logp = jax.nn.log_softmax(logits, axis=-1)
    decoder_output = jnp.transpose(logp.reshape(T_lab, B, V), (1, 0, 2))
    return decoder_output, dec_h[None]


if __name__ == "__main__":
    VOCAB, EMBED, HIDDEN = 16, 32, 32
    B, T_IN, T_LAB = 2, 8, 8

    key = jax.random.PRNGKey(0)
    kp, ki, kl = jax.random.split(key, 3)

    params = init_params(kp, vocab=VOCAB, embed=EMBED, hidden=HIDDEN)
    input_ids = jax.random.randint(ki, (B, T_IN), 0, VOCAB, dtype=jnp.int32)
    label_ids = jax.random.randint(kl, (B, T_LAB), 0, VOCAB, dtype=jnp.int32)
    input_len = jnp.array([T_IN, 5], dtype=jnp.int32)
    label_len = jnp.array([T_LAB, T_LAB], dtype=jnp.int32)

    dec_out, dec_hidden = seq2seq_forward(params, input_ids, input_len,
                                          label_ids, label_len)
    jax.block_until_ready((dec_out, dec_hidden))

    assert dec_out.shape == (B, T_LAB, VOCAB)
    assert dec_hidden.shape == (1, B, HIDDEN)
    # log_softmax rows should sum to ~1 in probability space
    assert jnp.allclose(jnp.sum(jnp.exp(dec_out), axis=-1), 1.0, atol=1e-4)

    # pure-JAX reference check (loose tol: MXU vs XLA f32 matmul precision differ)
    ref_out, ref_hidden = seq2seq_reference(params, input_ids, input_len,
                                            label_ids, label_len)
    assert jnp.allclose(dec_out, ref_out, atol=2e-2)
    assert jnp.allclose(dec_hidden, ref_hidden, atol=2e-2)

    print("KERNEL_OK")
</pallas_src>

<mosaic_0001>
module attributes {stable_mosaic.version = 11 : i64} {
  func.func @_seq2seq_kernel(%arg0: i32, %arg1: memref<64x32xf32, #tpu.memory_space<vmem>>, %arg2: memref<64x32xf32, #tpu.memory_space<vmem>>, %arg3: memref<8x1xi32, #tpu.memory_space<vmem>>, %arg4: memref<32x96xf32, #tpu.memory_space<vmem>>, %arg5: memref<32x96xf32, #tpu.memory_space<vmem>>, %arg6: memref<1x96xf32, #tpu.memory_space<vmem>>, %arg7: memref<1x32xf32, #tpu.memory_space<vmem>>, %arg8: memref<32x96xf32, #tpu.memory_space<vmem>>, %arg9: memref<32x96xf32, #tpu.memory_space<vmem>>, %arg10: memref<1x96xf32, #tpu.memory_space<vmem>>, %arg11: memref<1x32xf32, #tpu.memory_space<vmem>>, %arg12: memref<32x128xf32, #tpu.memory_space<vmem>>, %arg13: memref<1x128xf32, #tpu.memory_space<vmem>>, %arg14: memref<64x128xf32, #tpu.memory_space<vmem>>, %arg15: memref<8x32xf32, #tpu.memory_space<vmem>>) attributes {dimension_semantics = [#tpu.dimension_semantics<arbitrary>], iteration_bounds = array<i64: 1>, scalar_prefetch = 0 : i64, scratch_operands = 0 : i64, tpu.core_type = #tpu.core_type<tc>, window_params = [{pipeline_mode = #tpu.pipeline_mode<synchronous>, transform_indices = @transform_0, window_bounds = array<i64: 64, 32>}, {pipeline_mode = #tpu.pipeline_mode<synchronous>, transform_indices = @transform_1, window_bounds = array<i64: 64, 32>}, {pipeline_mode = #tpu.pipeline_mode<synchronous>, transform_indices = @transform_2, window_bounds = array<i64: 8, 1>}, {pipeline_mode = #tpu.pipeline_mode<synchronous>, transform_indices = @transform_3, window_bounds = array<i64: 32, 96>}, {pipeline_mode = #tpu.pipeline_mode<synchronous>, transform_indices = @transform_4, window_bounds = array<i64: 32, 96>}, {pipeline_mode = #tpu.pipeline_mode<synchronous>, transform_indices = @transform_5, window_bounds = array<i64: 1, 96>}, {pipeline_mode = #tpu.pipeline_mode<synchronous>, transform_indices = @transform_6, window_bounds = array<i64: 1, 32>}, {pipeline_mode = #tpu.pipeline_mode<synchronous>, transform_indices = @transform_7, window_bounds = array<i64: 32, 96>}, {pipeline_mode = #tpu.pipeline_mode<synchronous>, transform_indices = @transform_8, window_bounds = array<i64: 32, 96>}, {pipeline_mode = #tpu.pipeline_mode<synchronous>, transform_indices = @transform_9, window_bounds = array<i64: 1, 96>}, {pipeline_mode = #tpu.pipeline_mode<synchronous>, transform_indices = @transform_10, window_bounds = array<i64: 1, 32>}, {pipeline_mode = #tpu.pipeline_mode<synchronous>, transform_indices = @transform_11, window_bounds = array<i64: 32, 128>}, {pipeline_mode = #tpu.pipeline_mode<synchronous>, transform_indices = @transform_12, window_bounds = array<i64: 1, 128>}, {pipeline_mode = #tpu.pipeline_mode<synchronous>, transform_indices = @transform_13, window_bounds = array<i64: 64, 128>}, {pipeline_mode = #tpu.pipeline_mode<synchronous>, transform_indices = @transform_14, window_bounds = array<i64: 8, 32>}]} {
    %c0 = arith.constant 0 : index
    %c0_0 = arith.constant 0 : index
    %0 = vector.load %arg1[%c0, %c0_0] : memref<64x32xf32, #tpu.memory_space<vmem>>, vector<64x32xf32>
    %c0_1 = arith.constant 0 : index
    %c0_2 = arith.constant 0 : index
    %1 = vector.load %arg4[%c0_1, %c0_2] : memref<32x96xf32, #tpu.memory_space<vmem>>, vector<32x96xf32>
    %cst = arith.constant dense<0.000000e+00> : vector<64x96xf32>
    %2 = tpu.matmul %0, %1, %cst {dimension_numbers = #tpu.dot_dimension_numbers<[1], [0], [0], [1], [0, 0, 1, 1], [], []>} : vector<64x32xf32>, vector<32x96xf32>, vector<64x96xf32> -> vector<64x96xf32>
    %c0_3 = arith.constant 0 : index
    %c0_4 = arith.constant 0 : index
    %3 = vector.load %arg6[%c0_3, %c0_4] : memref<1x96xf32, #tpu.memory_space<vmem>>, vector<1x96xf32>
    %4 = vector.broadcast %3 : vector<1x96xf32> to vector<64x96xf32>
    %5 = arith.addf %2, %4 : vector<64x96xf32>
    %c0_5 = arith.constant 0 : index
    %c0_6 = arith.constant 0 : index
    %6 = vector.load %arg2[%c0_5, %c0_6] : memref<64x32xf32, #tpu.memory_space<vmem>>, vector<64x32xf32>
    %c0_7 = arith.constant 0 : index
    %c0_8 = arith.constant 0 : index
    %7 = vector.load %arg8[%c0_7, %c0_8] : memref<32x96xf32, #tpu.memory_space<vmem>>, vector<32x96xf32>
    %cst_9 = arith.constant dense<0.000000e+00> : vector<64x96xf32>
    %8 = tpu.matmul %6, %7, %cst_9 {dimension_numbers = #tpu.dot_dimension_numbers<[1], [0], [0], [1], [0, 0, 1, 1], [], []>} : vector<64x32xf32>, vector<32x96xf32>, vector<64x96xf32> -> vector<64x96xf32>
    %c0_10 = arith.constant 0 : index
    %c0_11 = arith.constant 0 : index
    %9 = vector.load %arg10[%c0_10, %c0_11] : memref<1x96xf32, #tpu.memory_space<vmem>>, vector<1x96xf32>
    %10 = vector.broadcast %9 : vector<1x96xf32> to vector<64x96xf32>
    %11 = arith.addf %8, %10 : vector<64x96xf32>
    %c0_12 = arith.constant 0 : index
    %c0_13 = arith.constant 0 : index
    %12 = vector.load %arg3[%c0_12, %c0_13] : memref<8x1xi32, #tpu.memory_space<vmem>>, vector<8x1xi32>
    %cst_14 = arith.constant 0.000000e+00 : f32
    %13 = vector.broadcast %cst_14 : f32 to vector<8x32xf32>
    %c0_15 = arith.constant 0 : index
    %c0_16 = arith.constant 0 : index
    %14 = vector.load %arg5[%c0_15, %c0_16] : memref<32x96xf32, #tpu.memory_space<vmem>>, vector<32x96xf32>
    %c0_17 = arith.constant 0 : index
    %c0_18 = arith.constant 0 : index
    %15 = vector.load %arg7[%c0_17, %c0_18] : memref<1x32xf32, #tpu.memory_space<vmem>>, vector<1x32xf32>
    %16 = vector.extract_strided_slice %5 {offsets = [0, 0], sizes = [8, 96], strides = [1, 1]} : vector<64x96xf32> to vector<8x96xf32>
    %cst_19 = arith.constant dense<0.000000e+00> : vector<8x96xf32>
    %17 = tpu.matmul %13, %14, %cst_19 {dimension_numbers = #tpu.dot_dimension_numbers<[1], [0], [0], [1], [0, 0, 1, 1], [], []>} : vector<8x32xf32>, vector<32x96xf32>, vector<8x96xf32> -> vector<8x96xf32>
    %18 = vector.extract_strided_slice %16 {offsets = [0, 0], sizes = [8, 64], strides = [1, 1]} : vector<8x96xf32> to vector<8x64xf32>
    %19 = vector.extract_strided_slice %17 {offsets = [0, 0], sizes = [8, 64], strides = [1, 1]} : vector<8x96xf32> to vector<8x64xf32>
    %20 = arith.addf %18, %19 : vector<8x64xf32>
    %21 = arith.negf %20 : vector<8x64xf32>
    %22 = math.exp %21 : vector<8x64xf32>
    %cst_20 = arith.constant 1.000000e+00 : f32
    %23 = vector.broadcast %cst_20 : f32 to vector<8x64xf32>
    %24 = arith.addf %23, %22 : vector<8x64xf32>
    %25 = arith.divf %23, %24 : vector<8x64xf32>
    %26 = vector.extract_strided_slice %25 {offsets = [0, 0], sizes = [8, 32], strides = [1, 1]} : vector<8x64xf32> to vector<8x32xf32>
    %27 = vector.extract_strided_slice %25 {offsets = [0, 32], sizes = [8, 32], strides = [1, 1]} : vector<8x64xf32> to vector<8x32xf32>
    %28 = vector.extract_strided_slice %16 {offsets = [0, 64], sizes = [8, 32], strides = [1, 1]} : vector<8x96xf32> to vector<8x32xf32>
    %29 = vector.extract_strided_slice %17 {offsets = [0, 64], sizes = [8, 32], strides = [1, 1]} : vector<8x96xf32> to vector<8x32xf32>
    %30 = vector.broadcast %15 : vector<1x32xf32> to vector<8x32xf32>
    %31 = arith.addf %29, %30 : vector<8x32xf32>
    %32 = arith.mulf %26, %31 : vector<8x32xf32>
    %33 = arith.addf %28, %32 : vector<8x32xf32>
    %34 = math.tanh %33 : vector<8x32xf32>
    %cst_21 = arith.constant 1.000000e+00 : f32
    %35 = vector.broadcast %cst_21 : f32 to vector<8x32xf32>
    %36 = arith.subf %35, %27 : vector<8x32xf32>
    %37 = arith.mulf %36, %34 : vector<8x32xf32>
    %38 = arith.mulf %27, %13 : vector<8x32xf32>
    %39 = arith.addf %37, %38 : vector<8x32xf32>
    %c0_i32 = arith.constant 0 : i32
    %40 = vector.broadcast %c0_i32 : i32 to vector<8x1xi32>
    %41 = arith.cmpi sgt, %12, %40 : vector<8x1xi32>
    %42 = vector.shape_cast %41 : vector<8x1xi1> to vector<8x1xi1>
    %43 = vector.broadcast %42 : vector<8x1xi1> to vector<8x32xi1>
    %44 = arith.select %43, %39, %13 : vector<8x32xi1>, vector<8x32xf32>
    %45 = vector.extract_strided_slice %5 {offsets = [8, 0], sizes = [8, 96], strides = [1, 1]} : vector<64x96xf32> to vector<8x96xf32>
    %cst_22 = arith.constant dense<0.000000e+00> : vector<8x96xf32>
    %46 = tpu.matmul %44, %14, %cst_22 {dimension_numbers = #tpu.dot_dimension_numbers<[1], [0], [0], [1], [0, 0, 1, 1], [], []>} : vector<8x32xf32>, vector<32x96xf32>, vector<8x96xf32> -> vector<8x96xf32>
    %47 = vector.extract_strided_slice %45 {offsets = [0, 0], sizes = [8, 64], strides = [1, 1]} : vector<8x96xf32> to vector<8x64xf32>
    %48 = vector.extract_strided_slice %46 {offsets = [0, 0], sizes = [8, 64], strides = [1, 1]} : vector<8x96xf32> to vector<8x64xf32>
    %49 = arith.addf %47, %48 : vector<8x64xf32>
    %50 = arith.negf %49 : vector<8x64xf32>
    %51 = math.exp %50 : vector<8x64xf32>
    %cst_23 = arith.constant 1.000000e+00 : f32
    %52 = vector.broadcast %cst_23 : f32 to vector<8x64xf32>
    %53 = arith.addf %52, %51 : vector<8x64xf32>
    %54 = arith.divf %52, %53 : vector<8x64xf32>
    %55 = vector.extract_strided_slice %54 {offsets = [0, 0], sizes = [8, 32], strides = [1, 1]} : vector<8x64xf32> to vector<8x32xf32>
    %56 = vector.extract_strided_slice %54 {offsets = [0, 32], sizes = [8, 32], strides = [1, 1]} : vector<8x64xf32> to vector<8x32xf32>
    %57 = vector.extract_strided_slice %45 {offsets = [0, 64], sizes = [8, 32], strides = [1, 1]} : vector<8x96xf32> to vector<8x32xf32>
    %58 = vector.extract_strided_slice %46 {offsets = [0, 64], sizes = [8, 32], strides = [1, 1]} : vector<8x96xf32> to vector<8x32xf32>
    %59 = vector.broadcast %15 : vector<1x32xf32> to vector<8x32xf32>
    %60 = arith.addf %58, %59 : vector<8x32xf32>
    %61 = arith.mulf %55, %60 : vector<8x32xf32>
    %62 = arith.addf %57, %61 : vector<8x32xf32>
    %63 = math.tanh %62 : vector<8x32xf32>
    %cst_24 = arith.constant 1.000000e+00 : f32
    %64 = vector.broadcast %cst_24 : f32 to vector<8x32xf32>
    %65 = arith.subf %64, %56 : vector<8x32xf32>
    %66 = arith.mulf %65, %63 : vector<8x32xf32>
    %67 = arith.mulf %56, %44 : vector<8x32xf32>
    %68 = arith.addf %66, %67 : vector<8x32xf32>
    %c1_i32 = arith.constant 1 : i32
    %69 = vector.broadcast %c1_i32 : i32 to vector<8x1xi32>
    %70 = arith.cmpi sgt, %12, %69 : vector<8x1xi32>
    %71 = vector.shape_cast %70 : vector<8x1xi1> to vector<8x1xi1>
    %72 = vector.broadcast %71 : vector<8x1xi1> to vector<8x32xi1>
    %73 = arith.select %72, %68, %44 : vector<8x32xi1>, vector<8x32xf32>
    %74 = vector.extract_strided_slice %5 {offsets = [16, 0], sizes = [8, 96], strides = [1, 1]} : vector<64x96xf32> to vector<8x96xf32>
    %cst_25 = arith.constant dense<0.000000e+00> : vector<8x96xf32>
    %75 = tpu.matmul %73, %14, %cst_25 {dimension_numbers = #tpu.dot_dimension_numbers<[1], [0], [0], [1], [0, 0, 1, 1], [], []>} : vector<8x32xf32>, vector<32x96xf32>, vector<8x96xf32> -> vector<8x96xf32>
    %76 = vector.extract_strided_slice %74 {offsets = [0, 0], sizes = [8, 64], strides = [1, 1]} : vector<8x96xf32> to vector<8x64xf32>
    %77 = vector.extract_strided_slice %75 {offsets = [0, 0], sizes = [8, 64], strides = [1, 1]} : vector<8x96xf32> to vector<8x64xf32>
    %78 = arith.addf %76, %77 : vector<8x64xf32>
    %79 = arith.negf %78 : vector<8x64xf32>
    %80 = math.exp %79 : vector<8x64xf32>
    %cst_26 = arith.constant 1.000000e+00 : f32
    %81 = vector.broadcast %cst_26 : f32 to vector<8x64xf32>
    %82 = arith.addf %81, %80 : vector<8x64xf32>
    %83 = arith.divf %81, %82 : vector<8x64xf32>
    %84 = vector.extract_strided_slice %83 {offsets = [0, 0], sizes = [8, 32], strides = [1, 1]} : vector<8x64xf32> to vector<8x32xf32>
    %85 = vector.extract_strided_slice %83 {offsets = [0, 32], sizes = [8, 32], strides = [1, 1]} : vector<8x64xf32> to vector<8x32xf32>
    %86 = vector.extract_strided_slice %74 {offsets = [0, 64], sizes = [8, 32], strides = [1, 1]} : vector<8x96xf32> to vector<8x32xf32>
    %87 = vector.extract_strided_slice %75 {offsets = [0, 64], sizes = [8, 32], strides = [1, 1]} : vector<8x96xf32> to vector<8x32xf32>
    %88 = vector.broadcast %15 : vector<1x32xf32> to vector<8x32xf32>
    %89 = arith.addf %87, %88 : vector<8x32xf32>
    %90 = arith.mulf %84, %89 : vector<8x32xf32>
    %91 = arith.addf %86, %90 : vector<8x32xf32>
    %92 = math.tanh %91 : vector<8x32xf32>
    %cst_27 = arith.constant 1.000000e+00 : f32
    %93 = vector.broadcast %cst_27 : f32 to vector<8x32xf32>
    %94 = arith.subf %93, %85 : vector<8x32xf32>
    %95 = arith.mulf %94, %92 : vector<8x32xf32>
    %96 = arith.mulf %85, %73 : vector<8x32xf32>
    %97 = arith.addf %95, %96 : vector<8x32xf32>
    %c2_i32 = arith.constant 2 : i32
    %98 = vector.broadcast %c2_i32 : i32 to vector<8x1xi32>
    %99 = arith.cmpi sgt, %12, %98 : vector<8x1xi32>
    %100 = vector.shape_cast %99 : vector<8x1xi1> to vector<8x1xi1>
    %101 = vector.broadcast %100 : vector<8x1xi1> to vector<8x32xi1>
    %102 = arith.select %101, %97, %73 : vector<8x32xi1>, vector<8x32xf32>
    %103 = vector.extract_strided_slice %5 {offsets = [24, 0], sizes = [8, 96], strides = [1, 1]} : vector<64x96xf32> to vector<8x96xf32>
    %cst_28 = arith.constant dense<0.000000e+00> : vector<8x96xf32>
    %104 = tpu.matmul %102, %14, %cst_28 {dimension_numbers = #tpu.dot_dimension_numbers<[1], [0], [0], [1], [0, 0, 1, 1], [], []>} : vector<8x32xf32>, vector<32x96xf32>, vector<8x96xf32> -> vector<8x96xf32>
    %105 = vector.extract_strided_slice %103 {offsets = [0, 0], sizes = [8, 64], strides = [1, 1]} : vector<8x96xf32> to vector<8x64xf32>
    %106 = vector.extract_strided_slice %104 {offsets = [0, 0], sizes = [8, 64], strides = [1, 1]} : vector<8x96xf32> to vector<8x64xf32>
    %107 = arith.addf %105, %106 : vector<8x64xf32>
    %108 = arith.negf %107 : vector<8x64xf32>
    %109 = math.exp %108 : vector<8x64xf32>
    %cst_29 = arith.constant 1.000000e+00 : f32
    %110 = vector.broadcast %cst_29 : f32 to vector<8x64xf32>
    %111 = arith.addf %110, %109 : vector<8x64xf32>
    %112 = arith.divf %110, %111 : vector<8x64xf32>
    %113 = vector.extract_strided_slice %112 {offsets = [0, 0], sizes = [8, 32], strides = [1, 1]} : vector<8x64xf32> to vector<8x32xf32>
    %114 = vector.extract_strided_slice %112 {offsets = [0, 32], sizes = [8, 32], strides = [1, 1]} : vector<8x64xf32> to vector<8x32xf32>
    %115 = vector.extract_strided_slice %103 {offsets = [0, 64], sizes = [8, 32], strides = [1, 1]} : vector<8x96xf32> to vector<8x32xf32>
    %116 = vector.extract_strided_slice %104 {offsets = [0, 64], sizes = [8, 32], strides = [1, 1]} : vector<8x96xf32> to vector<8x32xf32>
    %117 = vector.broadcast %15 : vector<1x32xf32> to vector<8x32xf32>
    %118 = arith.addf %116, %117 : vector<8x32xf32>
    %119 = arith.mulf %113, %118 : vector<8x32xf32>
    %120 = arith.addf %115, %119 : vector<8x32xf32>
    %121 = math.tanh %120 : vector<8x32xf32>
    %cst_30 = arith.constant 1.000000e+00 : f32
    %122 = vector.broadcast %cst_30 : f32 to vector<8x32xf32>
    %123 = arith.subf %122, %114 : vector<8x32xf32>
    %124 = arith.mulf %123, %121 : vector<8x32xf32>
    %125 = arith.mulf %114, %102 : vector<8x32xf32>
    %126 = arith.addf %124, %125 : vector<8x32xf32>
    %c3_i32 = arith.constant 3 : i32
    %127 = vector.broadcast %c3_i32 : i32 to vector<8x1xi32>
    %128 = arith.cmpi sgt, %12, %127 : vector<8x1xi32>
    %129 = vector.shape_cast %128 : vector<8x1xi1> to vector<8x1xi1>
    %130 = vector.broadcast %129 : vector<8x1xi1> to vector<8x32xi1>
    %131 = arith.select %130, %126, %102 : vector<8x32xi1>, vector<8x32xf32>
    %132 = vector.extract_strided_slice %5 {offsets = [32, 0], sizes = [8, 96], strides = [1, 1]} : vector<64x96xf32> to vector<8x96xf32>
    %cst_31 = arith.constant dense<0.000000e+00> : vector<8x96xf32>
    %133 = tpu.matmul %131, %14, %cst_31 {dimension_numbers = #tpu.dot_dimension_numbers<[1], [0], [0], [1], [0, 0, 1, 1], [], []>} : vector<8x32xf32>, vector<32x96xf32>, vector<8x96xf32> -> vector<8x96xf32>
    %134 = vector.extract_strided_slice %132 {offsets = [0, 0], sizes = [8, 64], strides = [1, 1]} : vector<8x96xf32> to vector<8x64xf32>
    %135 = vector.extract_strided_slice %133 {offsets = [0, 0], sizes = [8, 64], strides = [1, 1]} : vector<8x96xf32> to vector<8x64xf32>
    %136 = arith.addf %134, %135 : vector<8x64xf32>
    %137 = arith.negf %136 : vector<8x64xf32>
    %138 = math.exp %137 : vector<8x64xf32>
    %cst_32 = arith.constant 1.000000e+00 : f32
    %139 = vector.broadcast %cst_32 : f32 to vector<8x64xf32>
    %140 = arith.addf %139, %138 : vector<8x64xf32>
    %141 = arith.divf %139, %140 : vector<8x64xf32>
    %142 = vector.extract_strided_slice %141 {offsets = [0, 0], sizes = [8, 32], strides = [1, 1]} : vector<8x64xf32> to vector<8x32xf32>
    %143 = vector.extract_strided_slice %141 {offsets = [0, 32], sizes = [8, 32], strides = [1, 1]} : vector<8x64xf32> to vector<8x32xf32>
    %144 = vector.extract_strided_slice %132 {offsets = [0, 64], sizes = [8, 32], strides = [1, 1]} : vector<8x96xf32> to vector<8x32xf32>
    %145 = vector.extract_strided_slice %133 {offsets = [0, 64], sizes = [8, 32], strides = [1, 1]} : vector<8x96xf32> to vector<8x32xf32>
    %146 = vector.broadcast %15 : vector<1x32xf32> to vector<8x32xf32>
    %147 = arith.addf %145, %146 : vector<8x32xf32>
    %148 = arith.mulf %142, %147 : vector<8x32xf32>
    %149 = arith.addf %144, %148 : vector<8x32xf32>
    %150 = math.tanh %149 : vector<8x32xf32>
    %cst_33 = arith.constant 1.000000e+00 : f32
    %151 = vector.broadcast %cst_33 : f32 to vector<8x32xf32>
    %152 = arith.subf %151, %143 : vector<8x32xf32>
    %153 = arith.mulf %152, %150 : vector<8x32xf32>
    %154 = arith.mulf %143, %131 : vector<8x32xf32>
    %155 = arith.addf %153, %154 : vector<8x32xf32>
    %c4_i32 = arith.constant 4 : i32
    %156 = vector.broadcast %c4_i32 : i32 to vector<8x1xi32>
    %157 = arith.cmpi sgt, %12, %156 : vector<8x1xi32>
    %158 = vector.shape_cast %157 : vector<8x1xi1> to vector<8x1xi1>
    %159 = vector.broadcast %158 : vector<8x1xi1> to vector<8x32xi1>
    %160 = arith.select %159, %155, %131 : vector<8x32xi1>, vector<8x32xf32>
    %161 = vector.extract_strided_slice %5 {offsets = [40, 0], sizes = [8, 96], strides = [1, 1]} : vector<64x96xf32> to vector<8x96xf32>
    %cst_34 = arith.constant dense<0.000000e+00> : vector<8x96xf32>
    %162 = tpu.matmul %160, %14, %cst_34 {dimension_numbers = #tpu.dot_dimension_numbers<[1], [0], [0], [1], [0, 0, 1, 1], [], []>} : vector<8x32xf32>, vector<32x96xf32>, vector<8x96xf32> -> vector<8x96xf32>
    %163 = vector.extract_strided_slice %161 {offsets = [0, 0], sizes = [8, 64], strides = [1, 1]} : vector<8x96xf32> to vector<8x64xf32>
    %164 = vector.extract_strided_slice %162 {offsets = [0, 0], sizes = [8, 64], strides = [1, 1]} : vector<8x96xf32> to vector<8x64xf32>
    %165 = arith.addf %163, %164 : vector<8x64xf32>
    %166 = arith.negf %165 : vector<8x64xf32>
    %167 = math.exp %166 : vector<8x64xf32>
    %cst_35 = arith.constant 1.000000e+00 : f32
    %168 = vector.broadcast %cst_35 : f32 to vector<8x64xf32>
    %169 = arith.addf %168, %167 : vector<8x64xf32>
    %170 = arith.divf %168, %169 : vector<8x64xf32>
    %171 = vector.extract_strided_slice %170 {offsets = [0, 0], sizes = [8, 32], strides = [1, 1]} : vector<8x64xf32> to vector<8x32xf32>
    %172 = vector.extract_strided_slice %170 {offsets = [0, 32], sizes = [8, 32], strides = [1, 1]} : vector<8x64xf32> to vector<8x32xf32>
    %173 = vector.extract_strided_slice %161 {offsets = [0, 64], sizes = [8, 32], strides = [1, 1]} : vector<8x96xf32> to vector<8x32xf32>
    %174 = vector.extract_strided_slice %162 {offsets = [0, 64], sizes = [8, 32], strides = [1, 1]} : vector<8x96xf32> to vector<8x32xf32>
    %175 = vector.broadcast %15 : vector<1x32xf32> to vector<8x32xf32>
    %176 = arith.addf %174, %175 : vector<8x32xf32>
    %177 = arith.mulf %171, %176 : vector<8x32xf32>
    %178 = arith.addf %173, %177 : vector<8x32xf32>
    %179 = math.tanh %178 : vector<8x32xf32>
    %cst_36 = arith.constant 1.000000e+00 : f32
    %180 = vector.broadcast %cst_36 : f32 to vector<8x32xf32>
    %181 = arith.subf %180, %172 : vector<8x32xf32>
    %182 = arith.mulf %181, %179 : vector<8x32xf32>
    %183 = arith.mulf %172, %160 : vector<8x32xf32>
    %184 = arith.addf %182, %183 : vector<8x32xf32>
    %c5_i32 = arith.constant 5 : i32
    %185 = vector.broadcast %c5_i32 : i32 to vector<8x1xi32>
    %186 = arith.cmpi sgt, %12, %185 : vector<8x1xi32>
    %187 = vector.shape_cast %186 : vector<8x1xi1> to vector<8x1xi1>
    %188 = vector.broadcast %187 : vector<8x1xi1> to vector<8x32xi1>
    %189 = arith.select %188, %184, %160 : vector<8x32xi1>, vector<8x32xf32>
    %190 = vector.extract_strided_slice %5 {offsets = [48, 0], sizes = [8, 96], strides = [1, 1]} : vector<64x96xf32> to vector<8x96xf32>
    %cst_37 = arith.constant dense<0.000000e+00> : vector<8x96xf32>
    %191 = tpu.matmul %189, %14, %cst_37 {dimension_numbers = #tpu.dot_dimension_numbers<[1], [0], [0], [1], [0, 0, 1, 1], [], []>} : vector<8x32xf32>, vector<32x96xf32>, vector<8x96xf32> -> vector<8x96xf32>
    %192 = vector.extract_strided_slice %190 {offsets = [0, 0], sizes = [8, 64], strides = [1, 1]} : vector<8x96xf32> to vector<8x64xf32>
    %193 = vector.extract_strided_slice %191 {offsets = [0, 0], sizes = [8, 64], strides = [1, 1]} : vector<8x96xf32> to vector<8x64xf32>
    %194 = arith.addf %192, %193 : vector<8x64xf32>
    %195 = arith.negf %194 : vector<8x64xf32>
    %196 = math.exp %195 : vector<8x64xf32>
    %cst_38 = arith.constant 1.000000e+00 : f32
    %197 = vector.broadcast %cst_38 : f32 to vector<8x64xf32>
    %198 = arith.addf %197, %196 : vector<8x64xf32>
    %199 = arith.divf %197, %198 : vector<8x64xf32>
    %200 = vector.extract_strided_slice %199 {offsets = [0, 0], sizes = [8, 32], strides = [1, 1]} : vector<8x64xf32> to vector<8x32xf32>
    %201 = vector.extract_strided_slice %199 {offsets = [0, 32], sizes = [8, 32], strides = [1, 1]} : vector<8x64xf32> to vector<8x32xf32>
    %202 = vector.extract_strided_slice %190 {offsets = [0, 64], sizes = [8, 32], strides = [1, 1]} : vector<8x96xf32> to vector<8x32xf32>
    %203 = vector.extract_strided_slice %191 {offsets = [0, 64], sizes = [8, 32], strides = [1, 1]} : vector<8x96xf32> to vector<8x32xf32>
    %204 = vector.broadcast %15 : vector<1x32xf32> to vector<8x32xf32>
    %205 = arith.addf %203, %204 : vector<8x32xf32>
    %206 = arith.mulf %200, %205 : vector<8x32xf32>
    %207 = arith.addf %202, %206 : vector<8x32xf32>
    %208 = math.tanh %207 : vector<8x32xf32>
    %cst_39 = arith.constant 1.000000e+00 : f32
    %209 = vector.broadcast %cst_39 : f32 to vector<8x32xf32>
    %210 = arith.subf %209, %201 : vector<8x32xf32>
    %211 = arith.mulf %210, %208 : vector<8x32xf32>
    %212 = arith.mulf %201, %189 : vector<8x32xf32>
    %213 = arith.addf %211, %212 : vector<8x32xf32>
    %c6_i32 = arith.constant 6 : i32
    %214 = vector.broadcast %c6_i32 : i32 to vector<8x1xi32>
    %215 = arith.cmpi sgt, %12, %214 : vector<8x1xi32>
    %216 = vector.shape_cast %215 : vector<8x1xi1> to vector<8x1xi1>
    %217 = vector.broadcast %216 : vector<8x1xi1> to vector<8x32xi1>
    %218 = arith.select %217, %213, %189 : vector<8x32xi1>, vector<8x32xf32>
    %219 = vector.extract_strided_slice %5 {offsets = [56, 0], sizes = [8, 96], strides = [1, 1]} : vector<64x96xf32> to vector<8x96xf32>
    %cst_40 = arith.constant dense<0.000000e+00> : vector<8x96xf32>
    %220 = tpu.matmul %218, %14, %cst_40 {dimension_numbers = #tpu.dot_dimension_numbers<[1], [0], [0], [1], [0, 0, 1, 1], [], []>} : vector<8x32xf32>, vector<32x96xf32>, vector<8x96xf32> -> vector<8x96xf32>
    %221 = vector.extract_strided_slice %219 {offsets = [0, 0], sizes = [8, 64], strides = [1, 1]} : vector<8x96xf32> to vector<8x64xf32>
    %222 = vector.extract_strided_slice %220 {offsets = [0, 0], sizes = [8, 64], strides = [1, 1]} : vector<8x96xf32> to vector<8x64xf32>
    %223 = arith.addf %221, %222 : vector<8x64xf32>
    %224 = arith.negf %223 : vector<8x64xf32>
    %225 = math.exp %224 : vector<8x64xf32>
    %cst_41 = arith.constant 1.000000e+00 : f32
    %226 = vector.broadcast %cst_41 : f32 to vector<8x64xf32>
    %227 = arith.addf %226, %225 : vector<8x64xf32>
    %228 = arith.divf %226, %227 : vector<8x64xf32>
    %229 = vector.extract_strided_slice %228 {offsets = [0, 0], sizes = [8, 32], strides = [1, 1]} : vector<8x64xf32> to vector<8x32xf32>
    %230 = vector.extract_strided_slice %228 {offsets = [0, 32], sizes = [8, 32], strides = [1, 1]} : vector<8x64xf32> to vector<8x32xf32>
    %231 = vector.extract_strided_slice %219 {offsets = [0, 64], sizes = [8, 32], strides = [1, 1]} : vector<8x96xf32> to vector<8x32xf32>
    %232 = vector.extract_strided_slice %220 {offsets = [0, 64], sizes = [8, 32], strides = [1, 1]} : vector<8x96xf32> to vector<8x32xf32>
    %233 = vector.broadcast %15 : vector<1x32xf32> to vector<8x32xf32>
    %234 = arith.addf %232, %233 : vector<8x32xf32>
    %235 = arith.mulf %229, %234 : vector<8x32xf32>
    %236 = arith.addf %231, %235 : vector<8x32xf32>
    %237 = math.tanh %236 : vector<8x32xf32>
    %cst_42 = arith.constant 1.000000e+00 : f32
    %238 = vector.broadcast %cst_42 : f32 to vector<8x32xf32>
    %239 = arith.subf %238, %230 : vector<8x32xf32>
    %240 = arith.mulf %239, %237 : vector<8x32xf32>
    %241 = arith.mulf %230, %218 : vector<8x32xf32>
    %242 = arith.addf %240, %241 : vector<8x32xf32>
    %c7_i32 = arith.constant 7 : i32
    %243 = vector.broadcast %c7_i32 : i32 to vector<8x1xi32>
    %244 = arith.cmpi sgt, %12, %243 : vector<8x1xi32>
    %245 = vector.shape_cast %244 : vector<8x1xi1> to vector<8x1xi1>
    %246 = vector.broadcast %245 : vector<8x1xi1> to vector<8x32xi1>
    %247 = arith.select %246, %242, %218 : vector<8x32xi1>, vector<8x32xf32>
    %c0_43 = arith.constant 0 : index
    %c0_44 = arith.constant 0 : index
    %248 = vector.load %arg9[%c0_43, %c0_44] : memref<32x96xf32, #tpu.memory_space<vmem>>, vector<32x96xf32>
    %c0_45 = arith.constant 0 : index
    %c0_46 = arith.constant 0 : index
    %249 = vector.load %arg11[%c0_45, %c0_46] : memref<1x32xf32, #tpu.memory_space<vmem>>, vector<1x32xf32>
    %250 = vector.extract_strided_slice %11 {offsets = [0, 0], sizes = [8, 96], strides = [1, 1]} : vector<64x96xf32> to vector<8x96xf32>
    %cst_47 = arith.constant dense<0.000000e+00> : vector<8x96xf32>
    %251 = tpu.matmul %247, %248, %cst_47 {dimension_numbers = #tpu.dot_dimension_numbers<[1], [0], [0], [1], [0, 0, 1, 1], [], []>} : vector<8x32xf32>, vector<32x96xf32>, vector<8x96xf32> -> vector<8x96xf32>
    %252 = vector.extract_strided_slice %250 {offsets = [0, 0], sizes = [8, 64], strides = [1, 1]} : vector<8x96xf32> to vector<8x64xf32>
    %253 = vector.extract_strided_slice %251 {offsets = [0, 0], sizes = [8, 64], strides = [1, 1]} : vector<8x96xf32> to vector<8x64xf32>
    %254 = arith.addf %252, %253 : vector<8x64xf32>
    %255 = arith.negf %254 : vector<8x64xf32>
    %256 = math.exp %255 : vector<8x64xf32>
    %cst_48 = arith.constant 1.000000e+00 : f32
    %257 = vector.broadcast %cst_48 : f32 to vector<8x64xf32>
    %258 = arith.addf %257, %256 : vector<8x64xf32>
    %259 = arith.divf %257, %258 : vector<8x64xf32>
    %260 = vector.extract_strided_slice %259 {offsets = [0, 0], sizes = [8, 32], strides = [1, 1]} : vector<8x64xf32> to vector<8x32xf32>
    %261 = vector.extract_strided_slice %259 {offsets = [0, 32], sizes = [8, 32], strides = [1, 1]} : vector<8x64xf32> to vector<8x32xf32>
    %262 = vector.extract_strided_slice %250 {offsets = [0, 64], sizes = [8, 32], strides = [1, 1]} : vector<8x96xf32> to vector<8x32xf32>
    %263 = vector.extract_strided_slice %251 {offsets = [0, 64], sizes = [8, 32], strides = [1, 1]} : vector<8x96xf32> to vector<8x32xf32>
    %264 = vector.broadcast %249 : vector<1x32xf32> to vector<8x32xf32>
    %265 = arith.addf %263, %264 : vector<8x32xf32>
    %266 = arith.mulf %260, %265 : vector<8x32xf32>
    %267 = arith.addf %262, %266 : vector<8x32xf32>
    %268 = math.tanh %267 : vector<8x32xf32>
    %cst_49 = arith.constant 1.000000e+00 : f32
    %269 = vector.broadcast %cst_49 : f32 to vector<8x32xf32>
    %270 = arith.subf %269, %261 : vector<8x32xf32>
    %271 = arith.mulf %270, %268 : vector<8x32xf32>
    %272 = arith.mulf %261, %247 : vector<8x32xf32>
    %273 = arith.addf %271, %272 : vector<8x32xf32>
    %274 = vector.extract_strided_slice %11 {offsets = [8, 0], sizes = [8, 96], strides = [1, 1]} : vector<64x96xf32> to vector<8x96xf32>
    %cst_50 = arith.constant dense<0.000000e+00> : vector<8x96xf32>
    %275 = tpu.matmul %273, %248, %cst_50 {dimension_numbers = #tpu.dot_dimension_numbers<[1], [0], [0], [1], [0, 0, 1, 1], [], []>} : vector<8x32xf32>, vector<32x96xf32>, vector<8x96xf32> -> vector<8x96xf32>
    %276 = vector.extract_strided_slice %274 {offsets = [0, 0], sizes = [8, 64], strides = [1, 1]} : vector<8x96xf32> to vector<8x64xf32>
    %277 = vector.extract_strided_slice %275 {offsets = [0, 0], sizes = [8, 64], strides = [1, 1]} : vector<8x96xf32> to vector<8x64xf32>
    %278 = arith.addf %276, %277 : vector<8x64xf32>
    %279 = arith.negf %278 : vector<8x64xf32>
    %280 = math.exp %279 : vector<8x64xf32>
    %cst_51 = arith.constant 1.000000e+00 : f32
    %281 = vector.broadcast %cst_51 : f32 to vector<8x64xf32>
    %282 = arith.addf %281, %280 : vector<8x64xf32>
    %283 = arith.divf %281, %282 : vector<8x64xf32>
    %284 = vector.extract_strided_slice %283 {offsets = [0, 0], sizes = [8, 32], strides = [1, 1]} : vector<8x64xf32> to vector<8x32xf32>
    %285 = vector.extract_strided_slice %283 {offsets = [0, 32], sizes = [8, 32], strides = [1, 1]} : vector<8x64xf32> to vector<8x32xf32>
    %286 = vector.extract_strided_slice %274 {offsets = [0, 64], sizes = [8, 32], strides = [1, 1]} : vector<8x96xf32> to vector<8x32xf32>
    %287 = vector.extract_strided_slice %275 {offsets = [0, 64], sizes = [8, 32], strides = [1, 1]} : vector<8x96xf32> to vector<8x32xf32>
    %288 = vector.broadcast %249 : vector<1x32xf32> to vector<8x32xf32>
    %289 = arith.addf %287, %288 : vector<8x32xf32>
    %290 = arith.mulf %284, %289 : vector<8x32xf32>
    %291 = arith.addf %286, %290 : vector<8x32xf32>
    %292 = math.tanh %291 : vector<8x32xf32>
    %cst_52 = arith.constant 1.000000e+00 : f32
    %293 = vector.broadcast %cst_52 : f32 to vector<8x32xf32>
    %294 = arith.subf %293, %285 : vector<8x32xf32>
    %295 = arith.mulf %294, %292 : vector<8x32xf32>
    %296 = arith.mulf %285, %273 : vector<8x32xf32>
    %297 = arith.addf %295, %296 : vector<8x32xf32>
    %298 = vector.extract_strided_slice %11 {offsets = [16, 0], sizes = [8, 96], strides = [1, 1]} : vector<64x96xf32> to vector<8x96xf32>
    %cst_53 = arith.constant dense<0.000000e+00> : vector<8x96xf32>
    %299 = tpu.matmul %297, %248, %cst_53 {dimension_numbers = #tpu.dot_dimension_numbers<[1], [0], [0], [1], [0, 0, 1, 1], [], []>} : vector<8x32xf32>, vector<32x96xf32>, vector<8x96xf32> -> vector<8x96xf32>
    %300 = vector.extract_strided_slice %298 {offsets = [0, 0], sizes = [8, 64], strides = [1, 1]} : vector<8x96xf32> to vector<8x64xf32>
    %301 = vector.extract_strided_slice %299 {offsets = [0, 0], sizes = [8, 64], strides = [1, 1]} : vector<8x96xf32> to vector<8x64xf32>
    %302 = arith.addf %300, %301 : vector<8x64xf32>
    %303 = arith.negf %302 : vector<8x64xf32>
    %304 = math.exp %303 : vector<8x64xf32>
    %cst_54 = arith.constant 1.000000e+00 : f32
    %305 = vector.broadcast %cst_54 : f32 to vector<8x64xf32>
    %306 = arith.addf %305, %304 : vector<8x64xf32>
    %307 = arith.divf %305, %306 : vector<8x64xf32>
    %308 = vector.extract_strided_slice %307 {offsets = [0, 0], sizes = [8, 32], strides = [1, 1]} : vector<8x64xf32> to vector<8x32xf32>
    %309 = vector.extract_strided_slice %307 {offsets = [0, 32], sizes = [8, 32], strides = [1, 1]} : vector<8x64xf32> to vector<8x32xf32>
    %310 = vector.extract_strided_slice %298 {offsets = [0, 64], sizes = [8, 32], strides = [1, 1]} : vector<8x96xf32> to vector<8x32xf32>
    %311 = vector.extract_strided_slice %299 {offsets = [0, 64], sizes = [8, 32], strides = [1, 1]} : vector<8x96xf32> to vector<8x32xf32>
    %312 = vector.broadcast %249 : vector<1x32xf32> to vector<8x32xf32>
    %313 = arith.addf %311, %312 : vector<8x32xf32>
    %314 = arith.mulf %308, %313 : vector<8x32xf32>
    %315 = arith.addf %310, %314 : vector<8x32xf32>
    %316 = math.tanh %315 : vector<8x32xf32>
    %cst_55 = arith.constant 1.000000e+00 : f32
    %317 = vector.broadcast %cst_55 : f32 to vector<8x32xf32>
    %318 = arith.subf %317, %309 : vector<8x32xf32>
    %319 = arith.mulf %318, %316 : vector<8x32xf32>
    %320 = arith.mulf %309, %297 : vector<8x32xf32>
    %321 = arith.addf %319, %320 : vector<8x32xf32>
    %322 = vector.extract_strided_slice %11 {offsets = [24, 0], sizes = [8, 96], strides = [1, 1]} : vector<64x96xf32> to vector<8x96xf32>
    %cst_56 = arith.constant dense<0.000000e+00> : vector<8x96xf32>
    %323 = tpu.matmul %321, %248, %cst_56 {dimension_numbers = #tpu.dot_dimension_numbers<[1], [0], [0], [1], [0, 0, 1, 1], [], []>} : vector<8x32xf32>, vector<32x96xf32>, vector<8x96xf32> -> vector<8x96xf32>
    %324 = vector.extract_strided_slice %322 {offsets = [0, 0], sizes = [8, 64], strides = [1, 1]} : vector<8x96xf32> to vector<8x64xf32>
    %325 = vector.extract_strided_slice %323 {offsets = [0, 0], sizes = [8, 64], strides = [1, 1]} : vector<8x96xf32> to vector<8x64xf32>
    %326 = arith.addf %324, %325 : vector<8x64xf32>
    %327 = arith.negf %326 : vector<8x64xf32>
    %328 = math.exp %327 : vector<8x64xf32>
    %cst_57 = arith.constant 1.000000e+00 : f32
    %329 = vector.broadcast %cst_57 : f32 to vector<8x64xf32>
    %330 = arith.addf %329, %328 : vector<8x64xf32>
    %331 = arith.divf %329, %330 : vector<8x64xf32>
    %332 = vector.extract_strided_slice %331 {offsets = [0, 0], sizes = [8, 32], strides = [1, 1]} : vector<8x64xf32> to vector<8x32xf32>
    %333 = vector.extract_strided_slice %331 {offsets = [0, 32], sizes = [8, 32], strides = [1, 1]} : vector<8x64xf32> to vector<8x32xf32>
    %334 = vector.extract_strided_slice %322 {offsets = [0, 64], sizes = [8, 32], strides = [1, 1]} : vector<8x96xf32> to vector<8x32xf32>
    %335 = vector.extract_strided_slice %323 {offsets = [0, 64], sizes = [8, 32], strides = [1, 1]} : vector<8x96xf32> to vector<8x32xf32>
    %336 = vector.broadcast %249 : vector<1x32xf32> to vector<8x32xf32>
    %337 = arith.addf %335, %336 : vector<8x32xf32>
    %338 = arith.mulf %332, %337 : vector<8x32xf32>
    %339 = arith.addf %334, %338 : vector<8x32xf32>
    %340 = math.tanh %339 : vector<8x32xf32>
    %cst_58 = arith.constant 1.000000e+00 : f32
    %341 = vector.broadcast %cst_58 : f32 to vector<8x32xf32>
    %342 = arith.subf %341, %333 : vector<8x32xf32>
    %343 = arith.mulf %342, %340 : vector<8x32xf32>
    %344 = arith.mulf %333, %321 : vector<8x32xf32>
    %345 = arith.addf %343, %344 : vector<8x32xf32>
    %346 = vector.extract_strided_slice %11 {offsets = [32, 0], sizes = [8, 96], strides = [1, 1]} : vector<64x96xf32> to vector<8x96xf32>
    %cst_59 = arith.constant dense<0.000000e+00> : vector<8x96xf32>
    %347 = tpu.matmul %345, %248, %cst_59 {dimension_numbers = #tpu.dot_dimension_numbers<[1], [0], [0], [1], [0, 0, 1, 1], [], []>} : vector<8x32xf32>, vector<32x96xf32>, vector<8x96xf32> -> vector<8x96xf32>
    %348 = vector.extract_strided_slice %346 {offsets = [0, 0], sizes = [8, 64], strides = [1, 1]} : vector<8x96xf32> to vector<8x64xf32>
    %349 = vector.extract_strided_slice %347 {offsets = [0, 0], sizes = [8, 64], strides = [1, 1]} : vector<8x96xf32> to vector<8x64xf32>
    %350 = arith.addf %348, %349 : vector<8x64xf32>
    %351 = arith.negf %350 : vector<8x64xf32>
    %352 = math.exp %351 : vector<8x64xf32>
    %cst_60 = arith.constant 1.000000e+00 : f32
    %353 = vector.broadcast %cst_60 : f32 to vector<8x64xf32>
    %354 = arith.addf %353, %352 : vector<8x64xf32>
    %355 = arith.divf %353, %354 : vector<8x64xf32>
    %356 = vector.extract_strided_slice %355 {offsets = [0, 0], sizes = [8, 32], strides = [1, 1]} : vector<8x64xf32> to vector<8x32xf32>
    %357 = vector.extract_strided_slice %355 {offsets = [0, 32], sizes = [8, 32], strides = [1, 1]} : vector<8x64xf32> to vector<8x32xf32>
    %358 = vector.extract_strided_slice %346 {offsets = [0, 64], sizes = [8, 32], strides = [1, 1]} : vector<8x96xf32> to vector<8x32xf32>
    %359 = vector.extract_strided_slice %347 {offsets = [0, 64], sizes = [8, 32], strides = [1, 1]} : vector<8x96xf32> to vector<8x32xf32>
    %360 = vector.broadcast %249 : vector<1x32xf32> to vector<8x32xf32>
    %361 = arith.addf %359, %360 : vector<8x32xf32>
    %362 = arith.mulf %356, %361 : vector<8x32xf32>
    %363 = arith.addf %358, %362 : vector<8x32xf32>
    %364 = math.tanh %363 : vector<8x32xf32>
    %cst_61 = arith.constant 1.000000e+00 : f32
    %365 = vector.broadcast %cst_61 : f32 to vector<8x32xf32>
    %366 = arith.subf %365, %357 : vector<8x32xf32>
    %367 = arith.mulf %366, %364 : vector<8x32xf32>
    %368 = arith.mulf %357, %345 : vector<8x32xf32>
    %369 = arith.addf %367, %368 : vector<8x32xf32>
    %370 = vector.extract_strided_slice %11 {offsets = [40, 0], sizes = [8, 96], strides = [1, 1]} : vector<64x96xf32> to vector<8x96xf32>
    %cst_62 = arith.constant dense<0.000000e+00> : vector<8x96xf32>
    %371 = tpu.matmul %369, %248, %cst_62 {dimension_numbers = #tpu.dot_dimension_numbers<[1], [0], [0], [1], [0, 0, 1, 1], [], []>} : vector<8x32xf32>, vector<32x96xf32>, vector<8x96xf32> -> vector<8x96xf32>
    %372 = vector.extract_strided_slice %370 {offsets = [0, 0], sizes = [8, 64], strides = [1, 1]} : vector<8x96xf32> to vector<8x64xf32>
    %373 = vector.extract_strided_slice %371 {offsets = [0, 0], sizes = [8, 64], strides = [1, 1]} : vector<8x96xf32> to vector<8x64xf32>
    %374 = arith.addf %372, %373 : vector<8x64xf32>
    %375 = arith.negf %374 : vector<8x64xf32>
    %376 = math.exp %375 : vector<8x64xf32>
    %cst_63 = arith.constant 1.000000e+00 : f32
    %377 = vector.broadcast %cst_63 : f32 to vector<8x64xf32>
    %378 = arith.addf %377, %376 : vector<8x64xf32>
    %379 = arith.divf %377, %378 : vector<8x64xf32>
    %380 = vector.extract_strided_slice %379 {offsets = [0, 0], sizes = [8, 32], strides = [1, 1]} : vector<8x64xf32> to vector<8x32xf32>
    %381 = vector.extract_strided_slice %379 {offsets = [0, 32], sizes = [8, 32], strides = [1, 1]} : vector<8x64xf32> to vector<8x32xf32>
    %382 = vector.extract_strided_slice %370 {offsets = [0, 64], sizes = [8, 32], strides = [1, 1]} : vector<8x96xf32> to vector<8x32xf32>
    %383 = vector.extract_strided_slice %371 {offsets = [0, 64], sizes = [8, 32], strides = [1, 1]} : vector<8x96xf32> to vector<8x32xf32>
    %384 = vector.broadcast %249 : vector<1x32xf32> to vector<8x32xf32>
    %385 = arith.addf %383, %384 : vector<8x32xf32>
    %386 = arith.mulf %380, %385 : vector<8x32xf32>
    %387 = arith.addf %382, %386 : vector<8x32xf32>
    %388 = math.tanh %387 : vector<8x32xf32>
    %cst_64 = arith.constant 1.000000e+00 : f32
    %389 = vector.broadcast %cst_64 : f32 to vector<8x32xf32>
    %390 = arith.subf %389, %381 : vector<8x32xf32>
    %391 = arith.mulf %390, %388 : vector<8x32xf32>
    %392 = arith.mulf %381, %369 : vector<8x32xf32>
    %393 = arith.addf %391, %392 : vector<8x32xf32>
    %394 = vector.extract_strided_slice %11 {offsets = [48, 0], sizes = [8, 96], strides = [1, 1]} : vector<64x96xf32> to vector<8x96xf32>
    %cst_65 = arith.constant dense<0.000000e+00> : vector<8x96xf32>
    %395 = tpu.matmul %393, %248, %cst_65 {dimension_numbers = #tpu.dot_dimension_numbers<[1], [0], [0], [1], [0, 0, 1, 1], [], []>} : vector<8x32xf32>, vector<32x96xf32>, vector<8x96xf32> -> vector<8x96xf32>
    %396 = vector.extract_strided_slice %394 {offsets = [0, 0], sizes = [8, 64], strides = [1, 1]} : vector<8x96xf32> to vector<8x64xf32>
    %397 = vector.extract_strided_slice %395 {offsets = [0, 0], sizes = [8, 64], strides = [1, 1]} : vector<8x96xf32> to vector<8x64xf32>
    %398 = arith.addf %396, %397 : vector<8x64xf32>
    %399 = arith.negf %398 : vector<8x64xf32>
    %400 = math.exp %399 : vector<8x64xf32>
    %cst_66 = arith.constant 1.000000e+00 : f32
    %401 = vector.broadcast %cst_66 : f32 to vector<8x64xf32>
    %402 = arith.addf %401, %400 : vector<8x64xf32>
    %403 = arith.divf %401, %402 : vector<8x64xf32>
    %404 = vector.extract_strided_slice %403 {offsets = [0, 0], sizes = [8, 32], strides = [1, 1]} : vector<8x64xf32> to vector<8x32xf32>
    %405 = vector.extract_strided_slice %403 {offsets = [0, 32], sizes = [8, 32], strides = [1, 1]} : vector<8x64xf32> to vector<8x32xf32>
    %406 = vector.extract_strided_slice %394 {offsets = [0, 64], sizes = [8, 32], strides = [1, 1]} : vector<8x96xf32> to vector<8x32xf32>
    %407 = vector.extract_strided_slice %395 {offsets = [0, 64], sizes = [8, 32], strides = [1, 1]} : vector<8x96xf32> to vector<8x32xf32>
    %408 = vector.broadcast %249 : vector<1x32xf32> to vector<8x32xf32>
    %409 = arith.addf %407, %408 : vector<8x32xf32>
    %410 = arith.mulf %404, %409 : vector<8x32xf32>
    %411 = arith.addf %406, %410 : vector<8x32xf32>
    %412 = math.tanh %411 : vector<8x32xf32>
    %cst_67 = arith.constant 1.000000e+00 : f32
    %413 = vector.broadcast %cst_67 : f32 to vector<8x32xf32>
    %414 = arith.subf %413, %405 : vector<8x32xf32>
    %415 = arith.mulf %414, %412 : vector<8x32xf32>
    %416 = arith.mulf %405, %393 : vector<8x32xf32>
    %417 = arith.addf %415, %416 : vector<8x32xf32>
    %418 = vector.extract_strided_slice %11 {offsets = [56, 0], sizes = [8, 96], strides = [1, 1]} : vector<64x96xf32> to vector<8x96xf32>
    %cst_68 = arith.constant dense<0.000000e+00> : vector<8x96xf32>
    %419 = tpu.matmul %417, %248, %cst_68 {dimension_numbers = #tpu.dot_dimension_numbers<[1], [0], [0], [1], [0, 0, 1, 1], [], []>} : vector<8x32xf32>, vector<32x96xf32>, vector<8x96xf32> -> vector<8x96xf32>
    %420 = vector.extract_strided_slice %418 {offsets = [0, 0], sizes = [8, 64], strides = [1, 1]} : vector<8x96xf32> to vector<8x64xf32>
    %421 = vector.extract_strided_slice %419 {offsets = [0, 0], sizes = [8, 64], strides = [1, 1]} : vector<8x96xf32> to vector<8x64xf32>
    %422 = arith.addf %420, %421 : vector<8x64xf32>
    %423 = arith.negf %422 : vector<8x64xf32>
    %424 = math.exp %423 : vector<8x64xf32>
    %cst_69 = arith.constant 1.000000e+00 : f32
    %425 = vector.broadcast %cst_69 : f32 to vector<8x64xf32>
    %426 = arith.addf %425, %424 : vector<8x64xf32>
    %427 = arith.divf %425, %426 : vector<8x64xf32>
    %428 = vector.extract_strided_slice %427 {offsets = [0, 0], sizes = [8, 32], strides = [1, 1]} : vector<8x64xf32> to vector<8x32xf32>
    %429 = vector.extract_strided_slice %427 {offsets = [0, 32], sizes = [8, 32], strides = [1, 1]} : vector<8x64xf32> to vector<8x32xf32>
    %430 = vector.extract_strided_slice %418 {offsets = [0, 64], sizes = [8, 32], strides = [1, 1]} : vector<8x96xf32> to vector<8x32xf32>
    %431 = vector.extract_strided_slice %419 {offsets = [0, 64], sizes = [8, 32], strides = [1, 1]} : vector<8x96xf32> to vector<8x32xf32>
    %432 = vector.broadcast %249 : vector<1x32xf32> to vector<8x32xf32>
    %433 = arith.addf %431, %432 : vector<8x32xf32>
    %434 = arith.mulf %428, %433 : vector<8x32xf32>
    %435 = arith.addf %430, %434 : vector<8x32xf32>
    %436 = math.tanh %435 : vector<8x32xf32>
    %cst_70 = arith.constant 1.000000e+00 : f32
    %437 = vector.broadcast %cst_70 : f32 to vector<8x32xf32>
    %438 = arith.subf %437, %429 : vector<8x32xf32>
    %439 = arith.mulf %438, %436 : vector<8x32xf32>
    %440 = arith.mulf %429, %417 : vector<8x32xf32>
    %441 = arith.addf %439, %440 : vector<8x32xf32>
    %c0_71 = arith.constant 0 : index
    %c0_72 = arith.constant 0 : index
    %442 = vector.load %arg15[%c0_71, %c0_72] : memref<8x32xf32, #tpu.memory_space<vmem>>, vector<8x32xf32>
    tpu.vector_store %arg15[%c0_71, %c0_72], %441 {strides = array<i32>} : memref<8x32xf32, #tpu.memory_space<vmem>>, vector<8x32xf32>,
    %443 = tpu.concatenate %273, %297, %321, %345, %369, %393, %417, %441 in 0 : vector<8x32xf32>, vector<8x32xf32>, vector<8x32xf32>, vector<8x32xf32>, vector<8x32xf32>, vector<8x32xf32>, vector<8x32xf32>, vector<8x32xf32> -> vector<64x32xf32>
    %c0_73 = arith.constant 0 : index
    %c0_74 = arith.constant 0 : index
    %444 = vector.load %arg12[%c0_73, %c0_74] : memref<32x128xf32, #tpu.memory_space<vmem>>, vector<32x128xf32>
    %cst_75 = arith.constant dense<0.000000e+00> : vector<64x128xf32>
    %445 = tpu.matmul %443, %444, %cst_75 {dimension_numbers = #tpu.dot_dimension_numbers<[1], [0], [0], [1], [0, 0, 1, 1], [], []>} : vector<64x32xf32>, vector<32x128xf32>, vector<64x128xf32> -> vector<64x128xf32>
    %c0_76 = arith.constant 0 : index
    %c0_77 = arith.constant 0 : index
    %446 = vector.load %arg13[%c0_76, %c0_77] : memref<1x128xf32, #tpu.memory_space<vmem>>, vector<1x128xf32>
    %447 = vector.broadcast %446 : vector<1x128xf32> to vector<64x128xf32>
    %448 = arith.addf %445, %447 : vector<64x128xf32>
    %cst_78 = arith.constant dense<0xFF800000> : vector<64xf32>
    %449 = vector.multi_reduction <maximumf>, %448, %cst_78 [1] : vector<64x128xf32> to vector<64xf32>
    %450 = vector.shape_cast %449 : vector<64xf32> to vector<64x1xf32>
    %451 = vector.broadcast %450 : vector<64x1xf32> to vector<64x128xf32>
    %452 = arith.subf %448, %451 : vector<64x128xf32>
    %453 = math.exp %452 : vector<64x128xf32>
    %cst_79 = arith.constant dense<0.000000e+00> : vector<64xf32>
    %454 = vector.multi_reduction <add>, %453, %cst_79 [1] : vector<64x128xf32> to vector<64xf32>
    %455 = vector.shape_cast %454 : vector<64xf32> to vector<64x1xf32>
    %456 = math.log %455 : vector<64x1xf32>
    %457 = vector.broadcast %456 : vector<64x1xf32> to vector<64x128xf32>
    %458 = arith.subf %452, %457 : vector<64x128xf32>
    %c0_80 = arith.constant 0 : index
    %c0_81 = arith.constant 0 : index
    %459 = vector.load %arg14[%c0_80, %c0_81] : memref<64x128xf32, #tpu.memory_space<vmem>>, vector<64x128xf32>
    tpu.vector_store %arg14[%c0_80, %c0_81], %458 {strides = array<i32>} : memref<64x128xf32, #tpu.memory_space<vmem>>, vector<64x128xf32>,
    return
  }
  func.func @transform_0(%arg0: i32) -> (i32, i32) {
    %c0_i32 = arith.constant 0 : i32
    %c0_i32_0 = arith.constant 0 : i32
    %c0_i32_1 = arith.constant 0 : i32
    return %c0_i32, %c0_i32_0 : i32, i32
  }
  func.func @transform_1(%arg0: i32) -> (i32, i32) {
    %c0_i32 = arith.constant 0 : i32
    %c0_i32_0 = arith.constant 0 : i32
    %c0_i32_1 = arith.constant 0 : i32
    return %c0_i32, %c0_i32_0 : i32, i32
  }
  func.func @transform_2(%arg0: i32) -> (i32, i32) {
    %c0_i32 = arith.constant 0 : i32
    %c0_i32_0 = arith.constant 0 : i32
    %c0_i32_1 = arith.constant 0 : i32
    return %c0_i32, %c0_i32_0 : i32, i32
  }
  func.func @transform_3(%arg0: i32) -> (i32, i32) {
    %c0_i32 = arith.constant 0 : i32
    %c0_i32_0 = arith.constant 0 : i32
    %c0_i32_1 = arith.constant 0 : i32
    return %c0_i32, %c0_i32_0 : i32, i32
  }
  func.func @transform_4(%arg0: i32) -> (i32, i32) {
    %c0_i32 = arith.constant 0 : i32
    %c0_i32_0 = arith.constant 0 : i32
    %c0_i32_1 = arith.constant 0 : i32
    return %c0_i32, %c0_i32_0 : i32, i32
  }
  func.func @transform_5(%arg0: i32) -> (i32, i32) {
    %c0_i32 = arith.constant 0 : i32
    %c0_i32_0 = arith.constant 0 : i32
    %c0_i32_1 = arith.constant 0 : i32
    return %c0_i32, %c0_i32_0 : i32, i32
  }
  func.func @transform_6(%arg0: i32) -> (i32, i32) {
    %c0_i32 = arith.constant 0 : i32
    %c0_i32_0 = arith.constant 0 : i32
    %c0_i32_1 = arith.constant 0 : i32
    return %c0_i32, %c0_i32_0 : i32, i32
  }
  func.func @transform_7(%arg0: i32) -> (i32, i32) {
    %c0_i32 = arith.constant 0 : i32
    %c0_i32_0 = arith.constant 0 : i32
    %c0_i32_1 = arith.constant 0 : i32
    return %c0_i32, %c0_i32_0 : i32, i32
  }
  func.func @transform_8(%arg0: i32) -> (i32, i32) {
    %c0_i32 = arith.constant 0 : i32
    %c0_i32_0 = arith.constant 0 : i32
    %c0_i32_1 = arith.constant 0 : i32
    return %c0_i32, %c0_i32_0 : i32, i32
  }
  func.func @transform_9(%arg0: i32) -> (i32, i32) {
    %c0_i32 = arith.constant 0 : i32
    %c0_i32_0 = arith.constant 0 : i32
    %c0_i32_1 = arith.constant 0 : i32
    return %c0_i32, %c0_i32_0 : i32, i32
  }
  func.func @transform_10(%arg0: i32) -> (i32, i32) {
    %c0_i32 = arith.constant 0 : i32
    %c0_i32_0 = arith.constant 0 : i32
    %c0_i32_1 = arith.constant 0 : i32
    return %c0_i32, %c0_i32_0 : i32, i32
  }
  func.func @transform_11(%arg0: i32) -> (i32, i32) {
    %c0_i32 = arith.constant 0 : i32
    %c0_i32_0 = arith.constant 0 : i32
    %c0_i32_1 = arith.constant 0 : i32
    return %c0_i32, %c0_i32_0 : i32, i32
  }
  func.func @transform_12(%arg0: i32) -> (i32, i32) {
    %c0_i32 = arith.constant 0 : i32
    %c0_i32_0 = arith.constant 0 : i32
    %c0_i32_1 = arith.constant 0 : i32
    return %c0_i32, %c0_i32_0 : i32, i32
  }
  func.func @transform_13(%arg0: i32) -> (i32, i32) {
    %c0_i32 = arith.constant 0 : i32
    %c0_i32_0 = arith.constant 0 : i32
    %c0_i32_1 = arith.constant 0 : i32
    return %c0_i32, %c0_i32_0 : i32, i32
  }
  func.func @transform_14(%arg0: i32) -> (i32, i32) {
    %c0_i32 = arith.constant 0 : i32
    %c0_i32_0 = arith.constant 0 : i32
    %c0_i32_1 = arith.constant 0 : i32
    return %c0_i32, %c0_i32_0 : i32, i32
  }
}

</mosaic_0001>

<llo_original>
// kernel: seq2seq_forward.1
$region0: #{seq2seq_forward.1}
  #allocation0 [shape = 'u32[]', space=smem, size = 0x4, offset = 0x4, fixed_abs, tag = 'smem constant byte address 0x4 - core index']
  #allocation1 [shape = 'u32[144,128]{1,0:T(1,128)}', space=vmem, size = 0x12000, scoped, tag = 'internal scratch']
  %s0 = inlined_call_operand.vmem [shape: f32[64,32], index: 0, kind: input, shape index: {}]
  %s1 = inlined_call_operand.vmem [shape: f32[64,32], index: 1, kind: input, shape index: {}]
  %s2 = inlined_call_operand.vmem [shape: s32[8,1], index: 2, kind: input, shape index: {}]
  %s3 = inlined_call_operand.vmem [shape: f32[32,96], index: 3, kind: input, shape index: {}]
  %s4 = inlined_call_operand.vmem [shape: f32[32,96], index: 4, kind: input, shape index: {}]
  %s5 = inlined_call_operand.vmem [shape: f32[1,96], index: 5, kind: input, shape index: {}]
  %s6 = inlined_call_operand.vmem [shape: f32[1,32], index: 6, kind: input, shape index: {}]
  %s7 = inlined_call_operand.vmem [shape: f32[32,96], index: 7, kind: input, shape index: {}]
  %s8 = inlined_call_operand.vmem [shape: f32[32,96], index: 8, kind: input, shape index: {}]
  %s9 = inlined_call_operand.vmem [shape: f32[1,96], index: 9, kind: input, shape index: {}]
  %s10 = inlined_call_operand.vmem [shape: f32[1,32], index: 10, kind: input, shape index: {}]
  %s11 = inlined_call_operand.vmem [shape: f32[32,128], index: 11, kind: input, shape index: {}]
  %s12 = inlined_call_operand.vmem [shape: f32[1,128], index: 12, kind: input, shape index: {}]
  %s13 = inlined_call_operand.vmem [shape: f32[64,128], index: 13, kind: output, shape index: {0}]
  %s14 = inlined_call_operand.vmem [shape: f32[8,32], index: 14, kind: output, shape index: {1}]
  %15 = xla_tuple %s13, %s14
  %s16 = sld [smem:[#allocation0]]
  $region70: #{seq2seq_forward.1} parent=0
    _
  %s18 = ssub.s32 1, %s16
  %s19 = scalar_select 0, %s18, %s16
  // Predicated region
  $region2: #{seq2seq_forward.1} parent=0 // pred_check
    _
  $region3: #{seq2seq_forward.1} parent=0 // pred_check_branch
    %21 = sbr.rel (0) target = $region5
  $region4: #{seq2seq_forward.1} parent=0 // pred_region
    _
  $region5: #{seq2seq_forward.1} parent=0 // pred_fallthru
    _
  // Predicated region
  $region6: #{seq2seq_forward.1} parent=0 // pred_check
    _
  $region7: #{seq2seq_forward.1} parent=0 // pred_check_branch
    %23 = sbr.rel (0) target = $region9
  $region8: #{seq2seq_forward.1} parent=0 // pred_region
    _
  $region9: #{seq2seq_forward.1} parent=0 // pred_fallthru
    _
  // Predicated region
  $region10: #{seq2seq_forward.1} parent=0 // pred_check
    _
  $region11: #{seq2seq_forward.1} parent=0 // pred_check_branch
    %25 = sbr.rel (0) target = $region13
  $region12: #{seq2seq_forward.1} parent=0 // pred_region
    _
  $region13: #{seq2seq_forward.1} parent=0 // pred_fallthru
    _
  // Predicated region
  $region14: #{seq2seq_forward.1} parent=0 // pred_check
    _
  $region15: #{seq2seq_forward.1} parent=0 // pred_check_branch
    %27 = sbr.rel (0) target = $region17
  $region16: #{seq2seq_forward.1} parent=0 // pred_region
    _
  $region17: #{seq2seq_forward.1} parent=0 // pred_fallthru
    _
  // Predicated region
  $region18: #{seq2seq_forward.1} parent=0 // pred_check
    _
  $region19: #{seq2seq_forward.1} parent=0 // pred_check_branch
    %29 = sbr.rel (0) target = $region21
  $region20: #{seq2seq_forward.1} parent=0 // pred_region
    _
  $region21: #{seq2seq_forward.1} parent=0 // pred_fallthru
    _
  // Predicated region
  $region22: #{seq2seq_forward.1} parent=0 // pred_check
    _
  $region23: #{seq2seq_forward.1} parent=0 // pred_check_branch
    %31 = sbr.rel (0) target = $region25
  $region24: #{seq2seq_forward.1} parent=0 // pred_region
    _
  $region25: #{seq2seq_forward.1} parent=0 // pred_fallthru
    _
  // Predicated region
  $region26: #{seq2seq_forward.1} parent=0 // pred_check
    _
  $region27: #{seq2seq_forward.1} parent=0 // pred_check_branch
    %33 = sbr.rel (0) target = $region29
  $region28: #{seq2seq_forward.1} parent=0 // pred_region
    _
  $region29: #{seq2seq_forward.1} parent=0 // pred_fallthru
    _
  // Predicated region
  $region30: #{seq2seq_forward.1} parent=0 // pred_check
    _
  $region31: #{seq2seq_forward.1} parent=0 // pred_check_branch
    %35 = sbr.rel (0) target = $region33
  $region32: #{seq2seq_forward.1} parent=0 // pred_region
    _
  $region33: #{seq2seq_forward.1} parent=0 // pred_fallthru
    _
  // Predicated region
  $region34: #{seq2seq_forward.1} parent=0 // pred_check
    _
  $region35: #{seq2seq_forward.1} parent=0 // pred_check_branch
    %37 = sbr.rel (0) target = $region37
  $region36: #{seq2seq_forward.1} parent=0 // pred_region
    _
  $region37: #{seq2seq_forward.1} parent=0 // pred_fallthru
    _
  // Predicated region
  $region38: #{seq2seq_forward.1} parent=0 // pred_check
    _
  $region39: #{seq2seq_forward.1} parent=0 // pred_check_branch
    %39 = sbr.rel (0) target = $region41
  $region40: #{seq2seq_forward.1} parent=0 // pred_region
    _
  $region41: #{seq2seq_forward.1} parent=0 // pred_fallthru
    _
  // Predicated region
  $region42: #{seq2seq_forward.1} parent=0 // pred_check
    _
  $region43: #{seq2seq_forward.1} parent=0 // pred_check_branch
    %41 = sbr.rel (0) target = $region45
  $region44: #{seq2seq_forward.1} parent=0 // pred_region
    _
  $region45: #{seq2seq_forward.1} parent=0 // pred_fallthru
    _
  // Predicated region
  $region46: #{seq2seq_forward.1} parent=0 // pred_check
    _
  $region47: #{seq2seq_forward.1} parent=0 // pred_check_branch
    %43 = sbr.rel (0) target = $region49
  $region48: #{seq2seq_forward.1} parent=0 // pred_region
    _
  $region49: #{seq2seq_forward.1} parent=0 // pred_fallthru
    _
  // Predicated region
  $region50: #{seq2seq_forward.1} parent=0 // pred_check
    _
  $region51: #{seq2seq_forward.1} parent=0 // pred_check_branch
    %45 = sbr.rel (0) target = $region53
  $region52: #{seq2seq_forward.1} parent=0 // pred_region
    _
  $region53: #{seq2seq_forward.1} parent=0 // pred_fallthru
    _
  %v46 = vld [vmem:[%s0] sm:$0xff]
  %v47 = vld [vmem:[%s0 + $0x8] sm:$0xff]
  %v48 = vld [vmem:[%s0 + $0x10] sm:$0xff]
  %v49 = vld [vmem:[%s0 + $0x18] sm:$0xff]
  %v50 = vld [vmem:[%s0 + $0x20] sm:$0xff]
  %v51 = vld [vmem:[%s0 + $0x28] sm:$0xff]
  %v52 = vld [vmem:[%s0 + $0x30] sm:$0xff]
  %v53 = vld [vmem:[%s0 + $0x38] sm:$0xff]
  %v54 = vld [vmem:[%s3] sm:$0xff]
  %v55 = vld [vmem:[%s3 + $0x8] sm:$0xff]
  %v56 = vld [vmem:[%s3 + $0x10] sm:$0xff]
  %v57 = vld [vmem:[%s3 + $0x18] sm:$0xff]
  %v58 = vld [vmem:[%s5] sm:$0x1]
  %v60 = vlaneseq
  %v61 = vshrl.u32 %v60, 7
  %v62 = vsub.s32 0, %v61
  %v63 = vrot.slane %v58, %v62
  %vm65 = vcmask 261120
  %v67 = vsel %vm65, %v46, 0
  %v70 = vsel %vm65, %v47, 0
  %v73 = vsel %vm65, %v48, 0
  %v76 = vsel %vm65, %v49, 0
  %v79 = vsel %vm65, %v50, 0
  %v82 = vsel %vm65, %v51, 0
  %v85 = vsel %vm65, %v52, 0
  %v88 = vsel %vm65, %v53, 0
  %90 = vmatprep.subr.mxu0 0.0
  %91 = vmatpush1.msra.mxu0 %v54
  %92 = vmatprep.subr.mxu0 0.0
  %93 = vmatpush1.msra.mxu0 %v55
  %94 = vmatprep.subr.mxu0 0.0
  %95 = vmatpush1.msra.mxu0 %v56
  %96 = vmatprep.subr.mxu0 0.0
  %97 = vmatpush1.msra.mxu0 %v57
  %98 = vmatprep.subr.mxu0 0.0
  %99 = vmatpush1.msra.mxu0 0.0
  %100 = vmatprep.subr.mxu0 0.0
  %101 = vmatpush1.msra.mxu0 0.0
  %102 = vmatprep.subr.mxu0 0.0
  %103 = vmatpush1.msra.mxu0 0.0
  %104 = vmatprep.subr.mxu0 0.0
  %105 = vmatpush1.msra.mxu0 0.0
  %106 = vmatprep.subr.mxu0 0.0
  %107 = vmatpush1.msra.mxu0 0.0
  %108 = vmatprep.subr.mxu0 0.0
  %109 = vmatpush1.msra.mxu0 0.0
  %110 = vmatprep.subr.mxu0 0.0
  %111 = vmatpush1.msra.mxu0 0.0
  %112 = vmatprep.subr.mxu0 0.0
  %113 = vmatpush1.msra.mxu0 0.0
  %114 = vmatprep.subr.mxu0 0.0
  %115 = vmatpush1.msra.mxu0 0.0
  %116 = vmatprep.subr.mxu0 0.0
  %117 = vmatpush1.msra.mxu0 0.0
  %118 = vmatprep.subr.mxu0 0.0
  %119 = vmatpush1.msra.mxu0 0.0
  %120 = vmatprep.subr.mxu0 0.0
  %121 = vmatpush1.msra.mxu0 0.0
  %122 = vmatprep.subr.mxu0 0.0
  %123 = vmatpush1.msra.mxu0 0.0
  %124 = vmatprep.subr.mxu0 0.0
  %125 = vmatpush1.msra.mxu0 0.0
  %126 = vmatprep.subr.mxu0 0.0
  %127 = vmatpush1.msra.mxu0 0.0
  %128 = vmatprep.subr.mxu0 0.0
  %129 = vmatpush1.msra.mxu0 0.0
  %130 = vmatprep.subr.mxu0 0.0
  %131 = vmatpush1.msra.mxu0 0.0
  %132 = vmatprep.subr.mxu0 0.0
  %133 = vmatpush1.msra.mxu0 0.0
  %134 = vmatprep.subr.mxu0 0.0
  %135 = vmatpush1.msra.mxu0 0.0
  %136 = vmatprep.subr.mxu0 0.0
  %137 = vmatpush1.msra.mxu0 0.0
  %138 = vmatprep.subr.mxu0 0.0
  %139 = vmatpush1.msra.mxu0 0.0
  %140 = vmatprep.subr.mxu0 0.0
  %141 = vmatpush1.msra.mxu0 0.0
  %142 = vmatprep.subr.mxu0 0.0
  %143 = vmatpush1.msra.mxu0 0.0
  %144 = vmatprep.subr.mxu0 0.0
  %145 = vmatpush1.msra.mxu0 0.0
  %146 = vmatprep.subr.mxu0 0.0
  %147 = vmatpush1.msra.mxu0 0.0
  %148 = vmatprep.subr.mxu0 0.0
  %149 = vmatpush1.msra.mxu0 0.0
  %150 = vmatprep.subr.mxu0 0.0
  %151 = vmatpush1.msra.mxu0 0.0
  %152 = vmatprep.subr.mxu0 0.0
  %153 = vmatpush1.msra.mxu0 0.0
  %154 = vmatprep.mubr.f32.mxu0 0.0
  %155 = vmatmul.mubr.f32.gmra.mrb[0].mxu0 %v67
  %v156 = vpop.f32.mrb[0].mxu0
  %v157 = vadd.f32 %v63, %v156
  %v158 = vpop.f32.mrb[0].mxu0
  %159 = vmatprep.mubr.f32.mxu0 0.0
  %160 = vmatmul.mubr.f32.gmra.mrb[0].mxu0 %v70
  %v161 = vpop.f32.mrb[0].mxu0
  %v162 = vadd.f32 %v63, %v161
  %v163 = vpop.f32.mrb[0].mxu0
  %164 = vmatprep.mubr.f32.mxu0 0.0
  %165 = vmatmul.mubr.f32.gmra.mrb[0].mxu0 %v73
  %v166 = vpop.f32.mrb[0].mxu0
  %v167 = vadd.f32 %v63, %v166
  %v168 = vpop.f32.mrb[0].mxu0
  %169 = vmatprep.mubr.f32.mxu0 0.0
  %170 = vmatmul.mubr.f32.gmra.mrb[0].mxu0 %v76
  %v171 = vpop.f32.mrb[0].mxu0
  %v172 = vadd.f32 %v63, %v171
  %v173 = vpop.f32.mrb[0].mxu0
  %174 = vmatprep.mubr.f32.mxu0 0.0
  %175 = vmatmul.mubr.f32.gmra.mrb[0].mxu0 %v79
  %v176 = vpop.f32.mrb[0].mxu0
  %v177 = vadd.f32 %v63, %v176
  %v178 = vpop.f32.mrb[0].mxu0
  %179 = vmatprep.mubr.f32.mxu0 0.0
  %180 = vmatmul.mubr.f32.gmra.mrb[0].mxu0 %v82
  %v181 = vpop.f32.mrb[0].mxu0
  %v182 = vadd.f32 %v63, %v181
  %v183 = vpop.f32.mrb[0].mxu0
  %184 = vmatprep.mubr.f32.mxu0 0.0
  %185 = vmatmul.mubr.f32.gmra.mrb[0].mxu0 %v85
  %v186 = vpop.f32.mrb[0].mxu0
  %v187 = vadd.f32 %v63, %v186
  %v188 = vpop.f32.mrb[0].mxu0
  %189 = vmatprep.mubr.f32.mxu0 0.0
  %190 = vmatmul.mubr.f32.gmra.mrb[0].mxu0 %v88
  %v191 = vpop.f32.mrb[0].mxu0
  %v192 = vadd.f32 %v63, %v191
  %v193 = vpop.f32.mrb[0].mxu0
  %194 = vdwg.mxu0
  %v195 = vld [vmem:[%s1] sm:$0xff]
  %v196 = vld [vmem:[%s1 + $0x8] sm:$0xff]
  %v197 = vld [vmem:[%s1 + $0x10] sm:$0xff]
  %v198 = vld [vmem:[%s1 + $0x18] sm:$0xff]
  %v199 = vld [vmem:[%s1 + $0x20] sm:$0xff]
  %v200 = vld [vmem:[%s1 + $0x28] sm:$0xff]
  %v201 = vld [vmem:[%s1 + $0x30] sm:$0xff]
  %v202 = vld [vmem:[%s1 + $0x38] sm:$0xff]
  %v203 = vld [vmem:[%s7] sm:$0xff]
  %v204 = vld [vmem:[%s7 + $0x8] sm:$0xff]
  %v205 = vld [vmem:[%s7 + $0x10] sm:$0xff]
  %v206 = vld [vmem:[%s7 + $0x18] sm:$0xff]
  %v207 = vld [vmem:[%s9] sm:$0x1]
  %v209 = vlaneseq
  %v210 = vshrl.u32 %v209, 7
  %v211 = vsub.s32 0, %v210
  %v212 = vrot.slane %v207, %v211
  %v215 = vsel %vm65, %v195, 0
  %v218 = vsel %vm65, %v196, 0
  %v221 = vsel %vm65, %v197, 0
  %v224 = vsel %vm65, %v198, 0
  %v227 = vsel %vm65, %v199, 0
  %v230 = vsel %vm65, %v200, 0
  %v233 = vsel %vm65, %v201, 0
  %v236 = vsel %vm65, %v202, 0
  %238 = vmatprep.subr.mxu0 0.0
  %239 = vmatpush1.msra.mxu0 %v203
  %240 = vmatprep.subr.mxu0 0.0
  %241 = vmatpush1.msra.mxu0 %v204
  %242 = vmatprep.subr.mxu0 0.0
  %243 = vmatpush1.msra.mxu0 %v205
  %244 = vmatprep.subr.mxu0 0.0
  %245 = vmatpush1.msra.mxu0 %v206
  %246 = vmatprep.subr.mxu0 0.0
  %247 = vmatpush1.msra.mxu0 0.0
  %248 = vmatprep.subr.mxu0 0.0
  %249 = vmatpush1.msra.mxu0 0.0
  %250 = vmatprep.subr.mxu0 0.0
  %251 = vmatpush1.msra.mxu0 0.0
  %252 = vmatprep.subr.mxu0 0.0
  %253 = vmatpush1.msra.mxu0 0.0
  %254 = vmatprep.subr.mxu0 0.0
  %255 = vmatpush1.msra.mxu0 0.0
  %256 = vmatprep.subr.mxu0 0.0
  %257 = vmatpush1.msra.mxu0 0.0
  %258 = vmatprep.subr.mxu0 0.0
  %259 = vmatpush1.msra.mxu0 0.0
  %260 = vmatprep.subr.mxu0 0.0
  %261 = vmatpush1.msra.mxu0 0.0
  %262 = vmatprep.subr.mxu0 0.0
  %263 = vmatpush1.msra.mxu0 0.0
  %264 = vmatprep.subr.mxu0 0.0
  %265 = vmatpush1.msra.mxu0 0.0
  %266 = vmatprep.subr.mxu0 0.0
  %267 = vmatpush1.msra.mxu0 0.0
  %268 = vmatprep.subr.mxu0 0.0
  %269 = vmatpush1.msra.mxu0 0.0
  %270 = vmatprep.subr.mxu0 0.0
  %271 = vmatpush1.msra.mxu0 0.0
  %272 = vmatprep.subr.mxu0 0.0
  %273 = vmatpush1.msra.mxu0 0.0
  %274 = vmatprep.subr.mxu0 0.0
  %275 = vmatpush1.msra.mxu0 0.0
  %276 = vmatprep.subr.mxu0 0.0
  %277 = vmatpush1.msra.mxu0 0.0
  %278 = vmatprep.subr.mxu0 0.0
  %279 = vmatpush1.msra.mxu0 0.0
  %280 = vmatprep.subr.mxu0 0.0
  %281 = vmatpush1.msra.mxu0 0.0
  %282 = vmatprep.subr.mxu0 0.0
  %283 = vmatpush1.msra.mxu0 0.0
  %284 = vmatprep.subr.mxu0 0.0
  %285 = vmatpush1.msra.mxu0 0.0
  %286 = vmatprep.subr.mxu0 0.0
  %287 = vmatpush1.msra.mxu0 0.0
  %288 = vmatprep.subr.mxu0 0.0
  %289 = vmatpush1.msra.mxu0 0.0
  %290 = vmatprep.subr.mxu0 0.0
  %291 = vmatpush1.msra.mxu0 0.0
  %292 = vmatprep.subr.mxu0 0.0
  %293 = vmatpush1.msra.mxu0 0.0
  %294 = vmatprep.subr.mxu0 0.0
  %295 = vmatpush1.msra.mxu0 0.0
  %296 = vmatprep.subr.mxu0 0.0
  %297 = vmatpush1.msra.mxu0 0.0
  %298 = vmatprep.subr.mxu0 0.0
  %299 = vmatpush1.msra.mxu0 0.0
  %300 = vmatprep.subr.mxu0 0.0
  %301 = vmatpush1.msra.mxu0 0.0
  %302 = vmatprep.mubr.f32.mxu0 0.0
  %303 = vmatmul.mubr.f32.gmra.mrb[0].mxu0 %v215
  %v304 = vpop.f32.mrb[0].mxu0
  %v305 = vadd.f32 %v212, %v304
  %v306 = vpop.f32.mrb[0].mxu0
  %307 = vmatprep.mubr.f32.mxu0 0.0
  %308 = vmatmul.mubr.f32.gmra.mrb[0].mxu0 %v218
  %v309 = vpop.f32.mrb[0].mxu0
  %v310 = vadd.f32 %v212, %v309
  %v311 = vpop.f32.mrb[0].mxu0
  %312 = vmatprep.mubr.f32.mxu0 0.0
  %313 = vmatmul.mubr.f32.gmra.mrb[0].mxu0 %v221
  %v314 = vpop.f32.mrb[0].mxu0
  %v315 = vadd.f32 %v212, %v314
  %v316 = vpop.f32.mrb[0].mxu0
  %317 = vmatprep.mubr.f32.mxu0 0.0
  %318 = vmatmul.mubr.f32.gmra.mrb[0].mxu0 %v224
  %v319 = vpop.f32.mrb[0].mxu0
  %v320 = vadd.f32 %v212, %v319
  %v321 = vpop.f32.mrb[0].mxu0
  %322 = vmatprep.mubr.f32.mxu0 0.0
  %323 = vmatmul.mubr.f32.gmra.mrb[0].mxu0 %v227
  %v324 = vpop.f32.mrb[0].mxu0
  %v325 = vadd.f32 %v212, %v324
  %v326 = vpop.f32.mrb[0].mxu0
  %327 = vmatprep.mubr.f32.mxu0 0.0
  %328 = vmatmul.mubr.f32.gmra.mrb[0].mxu0 %v230
  %v329 = vpop.f32.mrb[0].mxu0
  %v330 = vadd.f32 %v212, %v329
  %v331 = vpop.f32.mrb[0].mxu0
  %332 = vmatprep.mubr.f32.mxu0 0.0
  %333 = vmatmul.mubr.f32.gmra.mrb[0].mxu0 %v233
  %v334 = vpop.f32.mrb[0].mxu0
  %v335 = vadd.f32 %v212, %v334
  %v336 = vpop.f32.mrb[0].mxu0
  %337 = vmatprep.mubr.f32.mxu0 0.0
  %338 = vmatmul.mubr.f32.gmra.mrb[0].mxu0 %v236
  %v339 = vpop.f32.mrb[0].mxu0
  %v340 = vadd.f32 %v212, %v339
  %v341 = vpop.f32.mrb[0].mxu0
  %342 = vdwg.mxu0
  %v343 = vld [vmem:[%s2] sm:$0xff]
  %v344 = vld [vmem:[%s4] sm:$0xff]
  %v345 = vld [vmem:[%s4 + $0x8] sm:$0xff]
  %v346 = vld [vmem:[%s4 + $0x10] sm:$0xff]
  %v347 = vld [vmem:[%s4 + $0x18] sm:$0xff]
  %v348 = vld [vmem:[%s6] sm:$0x1]
  %v350 = vsel %vm65, 0.0, 0
  %352 = vmatprep.subr.mxu0 0.0
  %353 = vmatpush1.msra.mxu0 %v344
  %354 = vmatprep.subr.mxu0 0.0
  %355 = vmatpush1.msra.mxu0 %v345
  %356 = vmatprep.subr.mxu0 0.0
  %357 = vmatpush1.msra.mxu0 %v346
  %358 = vmatprep.subr.mxu0 0.0
  %359 = vmatpush1.msra.mxu0 %v347
  %360 = vmatprep.subr.mxu0 0.0
  %361 = vmatpush1.msra.mxu0 0.0
  %362 = vmatprep.subr.mxu0 0.0
  %363 = vmatpush1.msra.mxu0 0.0
  %364 = vmatprep.subr.mxu0 0.0
  %365 = vmatpush1.msra.mxu0 0.0
  %366 = vmatprep.subr.mxu0 0.0
  %367 = vmatpush1.msra.mxu0 0.0
  %368 = vmatprep.subr.mxu0 0.0
  %369 = vmatpush1.msra.mxu0 0.0
  %370 = vmatprep.subr.mxu0 0.0
  %371 = vmatpush1.msra.mxu0 0.0
  %372 = vmatprep.subr.mxu0 0.0
  %373 = vmatpush1.msra.mxu0 0.0
  %374 = vmatprep.subr.mxu0 0.0
  %375 = vmatpush1.msra.mxu0 0.0
  %376 = vmatprep.subr.mxu0 0.0
  %377 = vmatpush1.msra.mxu0 0.0
  %378 = vmatprep.subr.mxu0 0.0
  %379 = vmatpush1.msra.mxu0 0.0
  %380 = vmatprep.subr.mxu0 0.0
  %381 = vmatpush1.msra.mxu0 0.0
  %382 = vmatprep.subr.mxu0 0.0
  %383 = vmatpush1.msra.mxu0 0.0
  %384 = vmatprep.subr.mxu0 0.0
  %385 = vmatpush1.msra.mxu0 0.0
  %386 = vmatprep.subr.mxu0 0.0
  %387 = vmatpush1.msra.mxu0 0.0
  %388 = vmatprep.subr.mxu0 0.0
  %389 = vmatpush1.msra.mxu0 0.0
  %390 = vmatprep.subr.mxu0 0.0
  %391 = vmatpush1.msra.mxu0 0.0
  %392 = vmatprep.subr.mxu0 0.0
  %393 = vmatpush1.msra.mxu0 0.0
  %394 = vmatprep.subr.mxu0 0.0
  %395 = vmatpush1.msra.mxu0 0.0
  %396 = vmatprep.subr.mxu0 0.0
  %397 = vmatpush1.msra.mxu0 0.0
  %398 = vmatprep.subr.mxu0 0.0
  %399 = vmatpush1.msra.mxu0 0.0
  %400 = vmatprep.subr.mxu0 0.0
  %401 = vmatpush1.msra.mxu0 0.0
  %402 = vmatprep.subr.mxu0 0.0
  %403 = vmatpush1.msra.mxu0 0.0
  %404 = vmatprep.subr.mxu0 0.0
  %405 = vmatpush1.msra.mxu0 0.0
  %406 = vmatprep.subr.mxu0 0.0
  %407 = vmatpush1.msra.mxu0 0.0
  %408 = vmatprep.subr.mxu0 0.0
  %409 = vmatpush1.msra.mxu0 0.0
  %410 = vmatprep.subr.mxu0 0.0
  %411 = vmatpush1.msra.mxu0 0.0
  %412 = vmatprep.subr.mxu0 0.0
  %413 = vmatpush1.msra.mxu0 0.0
  %414 = vmatprep.subr.mxu0 0.0
  %415 = vmatpush1.msra.mxu0 0.0
  %416 = vmatprep.mubr.f32.mxu0 0.0
  %417 = vmatmul.mubr.f32.gmra.mrb[0].mxu0 %v350
  %v418 = vpop.f32.mrb[0].mxu0
  %v419 = vadd.f32 0.0, %v418
  %v420 = vpop.f32.mrb[0].mxu0
  %421 = vdwg.mxu0
  %v422 = vadd.f32 %v157, %v419
  %v423 = vxor.u32 %v422, 2147483648
  %v424 = vmul.f32 %v423, 1.442695
  %v425 = vpow.pop %v424
  %v426 = vadd.f32 %v425, 1.0
  %v427 = vrcp.pop %v426
  %v428 = vmul.f32 1.0, %v427
  %v430 = vlaneseq
  %v431 = vshrl.u32 %v430, 7
  %v432 = vsub.s32 0, %v431
  %v433 = vrot.slane %v348, %v432
  %434 = vrot.lane.b32.xlu0 %v433, 64
  %v435 = vpop.permute.xlu0 %434
  %v437 = vadd.f32 %v419, %v435
  %439 = vrot.lane.b32.xlu0 %v437, 64
  %v440 = vpop.permute.xlu0 %439
  %v442 = vmul.f32 %v428, %v440
  %444 = vrot.lane.b32.xlu0 %v442, 64
  %v445 = vpop.permute.xlu0 %444
  %v447 = vadd.f32 %v157, %v445
  %v448 = vtanh.pop %v447
  %v449 = vsub.f32 1.0, %v428
  %451 = vrot.lane.b32.xlu0 %v448, 96
  %v452 = vpop.permute.xlu0 %451
  %v454 = vmul.f32 %v449, %v452
  %v455 = vmul.f32 %v428, 0.0
  %v456 = vadd.f32 %v454, %v455
  %vm457 = vcmp.gt.s32.totalorder %v343, 0
  %v458 = vsel %vm457, 1, 0
  %459 = vset.pattern.permute.xlu0 0
  %460 = vperm.xlu0 %459, %v458
  %v461 = vpop.permute.xlu0 %460
  %vm462 = vcmp.eq.s32.totalorder %v461, 1
  %v463 = vsel %vm462, %v456, 0.0
  %465 = vrot.lane.b32.xlu0 %v463, 96
  %v466 = vpop.permute.xlu0 %465
  %v467 = vsel %vm65, %v466, 0
  %469 = vmatprep.subr.mxu0 0.0
  %470 = vmatpush1.msra.mxu0 %v344
  %471 = vmatprep.subr.mxu0 0.0
  %472 = vmatpush1.msra.mxu0 %v345
  %473 = vmatprep.subr.mxu0 0.0
  %474 = vmatpush1.msra.mxu0 %v346
  %475 = vmatprep.subr.mxu0 0.0
  %476 = vmatpush1.msra.mxu0 %v347
  %477 = vmatprep.subr.mxu0 0.0
  %478 = vmatpush1.msra.mxu0 0.0
  %479 = vmatprep.subr.mxu0 0.0
  %480 = vmatpush1.msra.mxu0 0.0
  %481 = vmatprep.subr.mxu0 0.0
  %482 = vmatpush1.msra.mxu0 0.0
  %483 = vmatprep.subr.mxu0 0.0
  %484 = vmatpush1.msra.mxu0 0.0
  %485 = vmatprep.subr.mxu0 0.0
  %486 = vmatpush1.msra.mxu0 0.0
  %487 = vmatprep.subr.mxu0 0.0
  %488 = vmatpush1.msra.mxu0 0.0
  %489 = vmatprep.subr.mxu0 0.0
  %490 = vmatpush1.msra.mxu0 0.0
  %491 = vmatprep.subr.mxu0 0.0
  %492 = vmatpush1.msra.mxu0 0.0
  %493 = vmatprep.subr.mxu0 0.0
  %494 = vmatpush1.msra.mxu0 0.0
  %495 = vmatprep.subr.mxu0 0.0
  %496 = vmatpush1.msra.mxu0 0.0
  %497 = vmatprep.subr.mxu0 0.0
  %498 = vmatpush1.msra.mxu0 0.0
  %499 = vmatprep.subr.mxu0 0.0
  %500 = vmatpush1.msra.mxu0 0.0
  %501 = vmatprep.subr.mxu0 0.0
  %502 = vmatpush1.msra.mxu0 0.0
  %503 = vmatprep.subr.mxu0 0.0
  %504 = vmatpush1.msra.mxu0 0.0
  %505 = vmatprep.subr.mxu0 0.0
  %506 = vmatpush1.msra.mxu0 0.0
  %507 = vmatprep.subr.mxu0 0.0
  %508 = vmatpush1.msra.mxu0 0.0
  %509 = vmatprep.subr.mxu0 0.0
  %510 = vmatpush1.msra.mxu0 0.0
  %511 = vmatprep.subr.mxu0 0.0
  %512 = vmatpush1.msra.mxu0 0.0
  %513 = vmatprep.subr.mxu0 0.0
  %514 = vmatpush1.msra.mxu0 0.0
  %515 = vmatprep.subr.mxu0 0.0
  %516 = vmatpush1.msra.mxu0 0.0
  %517 = vmatprep.subr.mxu0 0.0
  %518 = vmatpush1.msra.mxu0 0.0
  %519 = vmatprep.subr.mxu0 0.0
  %520 = vmatpush1.msra.mxu0 0.0
  %521 = vmatprep.subr.mxu0 0.0
  %522 = vmatpush1.msra.mxu0 0.0
  %523 = vmatprep.subr.mxu0 0.0
  %524 = vmatpush1.msra.mxu0 0.0
  %525 = vmatprep.subr.mxu0 0.0
  %526 = vmatpush1.msra.mxu0 0.0
  %527 = vmatprep.subr.mxu0 0.0
  %528 = vmatpush1.msra.mxu0 0.0
  %529 = vmatprep.subr.mxu0 0.0
  %530 = vmatpush1.msra.mxu0 0.0
  %531 = vmatprep.subr.mxu0 0.0
  %532 = vmatpush1.msra.mxu0 0.0
  %533 = vmatprep.mubr.f32.mxu0 0.0
  %534 = vmatmul.mubr.f32.gmra.mrb[0].mxu0 %v467
  %v535 = vpop.f32.mrb[0].mxu0
  %v536 = vadd.f32 0.0, %v535
  %v537 = vpop.f32.mrb[0].mxu0
  %538 = vdwg.mxu0
  %v539 = vadd.f32 %v162, %v536
  %v540 = vxor.u32 %v539, 2147483648
  %v541 = vmul.f32 %v540, 1.442695
  %v542 = vpow.pop %v541
  %v543 = vadd.f32 %v542, 1.0
  %v544 = vrcp.pop %v543
  %v545 = vmul.f32 1.0, %v544
  %v546 = vadd.f32 %v536, %v435
  %548 = vrot.lane.b32.xlu0 %v546, 64
  %v549 = vpop.permute.xlu0 %548
  %v551 = vmul.f32 %v545, %v549
  %553 = vrot.lane.b32.xlu0 %v551, 64
  %v554 = vpop.permute.xlu0 %553
  %v556 = vadd.f32 %v162, %v554
  %v557 = vtanh.pop %v556
  %v558 = vsub.f32 1.0, %v545
  %560 = vrot.lane.b32.xlu0 %v557, 96
  %v561 = vpop.permute.xlu0 %560
  %v563 = vmul.f32 %v558, %v561
  %v564 = vmul.f32 %v545, %v463
  %v565 = vadd.f32 %v563, %v564
  %vm566 = vcmp.gt.s32.totalorder %v343, 1
  %v567 = vsel %vm566, 1, 0
  %568 = vset.pattern.permute.xlu0 0
  %569 = vperm.xlu0 %568, %v567
  %v570 = vpop.permute.xlu0 %569
  %vm571 = vcmp.eq.s32.totalorder %v570, 1
  %v572 = vsel %vm571, %v565, %v463
  %574 = vrot.lane.b32.xlu0 %v572, 96
  %v575 = vpop.permute.xlu0 %574
  %v576 = vsel %vm65, %v575, 0
  %578 = vmatprep.subr.mxu0 0.0
  %579 = vmatpush1.msra.mxu0 %v344
  %580 = vmatprep.subr.mxu0 0.0
  %581 = vmatpush1.msra.mxu0 %v345
  %582 = vmatprep.subr.mxu0 0.0
  %583 = vmatpush1.msra.mxu0 %v346
  %584 = vmatprep.subr.mxu0 0.0
  %585 = vmatpush1.msra.mxu0 %v347
  %586 = vmatprep.subr.mxu0 0.0
  %587 = vmatpush1.msra.mxu0 0.0
  %588 = vmatprep.subr.mxu0 0.0
  %589 = vmatpush1.msra.mxu0 0.0
  %590 = vmatprep.subr.mxu0 0.0
  %591 = vmatpush1.msra.mxu0 0.0
  %592 = vmatprep.subr.mxu0 0.0
  %593 = vmatpush1.msra.mxu0 0.0
  %594 = vmatprep.subr.mxu0 0.0
  %595 = vmatpush1.msra.mxu0 0.0
  %596 = vmatprep.subr.mxu0 0.0
  %597 = vmatpush1.msra.mxu0 0.0
  %598 = vmatprep.subr.mxu0 0.0
  %599 = vmatpush1.msra.mxu0 0.0
  %600 = vmatprep.subr.mxu0 0.0
  %601 = vmatpush1.msra.mxu0 0.0
  %602 = vmatprep.subr.mxu0 0.0
  %603 = vmatpush1.msra.mxu0 0.0
  %604 = vmatprep.subr.mxu0 0.0
  %605 = vmatpush1.msra.mxu0 0.0
  %606 = vmatprep.subr.mxu0 0.0
  %607 = vmatpush1.msra.mxu0 0.0
  %608 = vmatprep.subr.mxu0 0.0
  %609 = vmatpush1.msra.mxu0 0.0
  %610 = vmatprep.subr.mxu0 0.0
  %611 = vmatpush1.msra.mxu0 0.0
  %612 = vmatprep.subr.mxu0 0.0
  %613 = vmatpush1.msra.mxu0 0.0
  %614 = vmatprep.subr.mxu0 0.0
  %615 = vmatpush1.msra.mxu0 0.0
  %616 = vmatprep.subr.mxu0 0.0
  %617 = vmatpush1.msra.mxu0 0.0
  %618 = vmatprep.subr.mxu0 0.0
  %619 = vmatpush1.msra.mxu0 0.0
  %620 = vmatprep.subr.mxu0 0.0
  %621 = vmatpush1.msra.mxu0 0.0
  %622 = vmatprep.subr.mxu0 0.0
  %623 = vmatpush1.msra.mxu0 0.0
  %624 = vmatprep.subr.mxu0 0.0
  %625 = vmatpush1.msra.mxu0 0.0
  %626 = vmatprep.subr.mxu0 0.0
  %627 = vmatpush1.msra.mxu0 0.0
  %628 = vmatprep.subr.mxu0 0.0
  %629 = vmatpush1.msra.mxu0 0.0
  %630 = vmatprep.subr.mxu0 0.0
  %631 = vmatpush1.msra.mxu0 0.0
  %632 = vmatprep.subr.mxu0 0.0
  %633 = vmatpush1.msra.mxu0 0.0
  %634 = vmatprep.subr.mxu0 0.0
  %635 = vmatpush1.msra.mxu0 0.0
  %636 = vmatprep.subr.mxu0 0.0
  %637 = vmatpush1.msra.mxu0 0.0
  %638 = vmatprep.subr.mxu0 0.0
  %639 = vmatpush1.msra.mxu0 0.0
  %640 = vmatprep.subr.mxu0 0.0
  %641 = vmatpush1.msra.mxu0 0.0
  %642 = vmatprep.mubr.f32.mxu0 0.0
  %643 = vmatmul.mubr.f32.gmra.mrb[0].mxu0 %v576
  %v644 = vpop.f32.mrb[0].mxu0
  %v645 = vadd.f32 0.0, %v644
  %v646 = vpop.f32.mrb[0].mxu0
  %647 = vdwg.mxu0
  %v648 = vadd.f32 %v167, %v645
  %v649 = vxor.u32 %v648, 2147483648
  %v650 = vmul.f32 %v649, 1.442695
  %v651 = vpow.pop %v650
  %v652 = vadd.f32 %v651, 1.0
  %v653 = vrcp.pop %v652
  %v654 = vmul.f32 1.0, %v653
  %v655 = vadd.f32 %v645, %v435
  %657 = vrot.lane.b32.xlu0 %v655, 64
  %v658 = vpop.permute.xlu0 %657
  %v660 = vmul.f32 %v654, %v658
  %662 = vrot.lane.b32.xlu0 %v660, 64
  %v663 = vpop.permute.xlu0 %662
  %v665 = vadd.f32 %v167, %v663
  %v666 = vtanh.pop %v665
  %v667 = vsub.f32 1.0, %v654
  %669 = vrot.lane.b32.xlu0 %v666, 96
  %v670 = vpop.permute.xlu0 %669
  %v672 = vmul.f32 %v667, %v670
  %v673 = vmul.f32 %v654, %v572
  %v674 = vadd.f32 %v672, %v673
  %vm675 = vcmp.gt.s32.totalorder %v343, 2
  %v676 = vsel %vm675, 1, 0
  %677 = vset.pattern.permute.xlu0 0
  %678 = vperm.xlu0 %677, %v676
  %v679 = vpop.permute.xlu0 %678
  %vm680 = vcmp.eq.s32.totalorder %v679, 1
  %v681 = vsel %vm680, %v674, %v572
  %683 = vrot.lane.b32.xlu0 %v681, 96
  %v684 = vpop.permute.xlu0 %683
  %v685 = vsel %vm65, %v684, 0
  %687 = vmatprep.subr.mxu0 0.0
  %688 = vmatpush1.msra.mxu0 %v344
  %689 = vmatprep.subr.mxu0 0.0
  %690 = vmatpush1.msra.mxu0 %v345
  %691 = vmatprep.subr.mxu0 0.0
  %692 = vmatpush1.msra.mxu0 %v346
  %693 = vmatprep.subr.mxu0 0.0
  %694 = vmatpush1.msra.mxu0 %v347
  %695 = vmatprep.subr.mxu0 0.0
  %696 = vmatpush1.msra.mxu0 0.0
  %697 = vmatprep.subr.mxu0 0.0
  %698 = vmatpush1.msra.mxu0 0.0
  %699 = vmatprep.subr.mxu0 0.0
  %700 = vmatpush1.msra.mxu0 0.0
  %701 = vmatprep.subr.mxu0 0.0
  %702 = vmatpush1.msra.mxu0 0.0
  %703 = vmatprep.subr.mxu0 0.0
  %704 = vmatpush1.msra.mxu0 0.0
  %705 = vmatprep.subr.mxu0 0.0
  %706 = vmatpush1.msra.mxu0 0.0
  %707 = vmatprep.subr.mxu0 0.0
  %708 = vmatpush1.msra.mxu0 0.0
  %709 = vmatprep.subr.mxu0 0.0
  %710 = vmatpush1.msra.mxu0 0.0
  %711 = vmatprep.subr.mxu0 0.0
  %712 = vmatpush1.msra.mxu0 0.0
  %713 = vmatprep.subr.mxu0 0.0
  %714 = vmatpush1.msra.mxu0 0.0
  %715 = vmatprep.subr.mxu0 0.0
  %716 = vmatpush1.msra.mxu0 0.0
  %717 = vmatprep.subr.mxu0 0.0
  %718 = vmatpush1.msra.mxu0 0.0
  %719 = vmatprep.subr.mxu0 0.0
  %720 = vmatpush1.msra.mxu0 0.0
  %721 = vmatprep.subr.mxu0 0.0
  %722 = vmatpush1.msra.mxu0 0.0
  %723 = vmatprep.subr.mxu0 0.0
  %724 = vmatpush1.msra.mxu0 0.0
  %725 = vmatprep.subr.mxu0 0.0
  %726 = vmatpush1.msra.mxu0 0.0
  %727 = vmatprep.subr.mxu0 0.0
  %728 = vmatpush1.msra.mxu0 0.0
  %729 = vmatprep.subr.mxu0 0.0
  %730 = vmatpush1.msra.mxu0 0.0
  %731 = vmatprep.subr.mxu0 0.0
  %732 = vmatpush1.msra.mxu0 0.0
  %733 = vmatprep.subr.mxu0 0.0
  %734 = vmatpush1.msra.mxu0 0.0
  %735 = vmatprep.subr.mxu0 0.0
  %736 = vmatpush1.msra.mxu0 0.0
  %737 = vmatprep.subr.mxu0 0.0
  %738 = vmatpush1.msra.mxu0 0.0
  %739 = vmatprep.subr.mxu0 0.0
  %740 = vmatpush1.msra.mxu0 0.0
  %741 = vmatprep.subr.mxu0 0.0
  %742 = vmatpush1.msra.mxu0 0.0
  %743 = vmatprep.subr.mxu0 0.0
  %744 = vmatpush1.msra.mxu0 0.0
  %745 = vmatprep.subr.mxu0 0.0
  %746 = vmatpush1.msra.mxu0 0.0
  %747 = vmatprep.subr.mxu0 0.0
  %748 = vmatpush1.msra.mxu0 0.0
  %749 = vmatprep.subr.mxu0 0.0
  %750 = vmatpush1.msra.mxu0 0.0
  %751 = vmatprep.mubr.f32.mxu0 0.0
  %752 = vmatmul.mubr.f32.gmra.mrb[0].mxu0 %v685
  %v753 = vpop.f32.mrb[0].mxu0
  %v754 = vadd.f32 0.0, %v753
  %v755 = vpop.f32.mrb[0].mxu0
  %756 = vdwg.mxu0
  %v757 = vadd.f32 %v172, %v754
  %v758 = vxor.u32 %v757, 2147483648
  %v759 = vmul.f32 %v758, 1.442695
  %v760 = vpow.pop %v759
  %v761 = vadd.f32 %v760, 1.0
  %v762 = vrcp.pop %v761
  %v763 = vmul.f32 1.0, %v762
  %v764 = vadd.f32 %v754, %v435
  %766 = vrot.lane.b32.xlu0 %v764, 64
  %v767 = vpop.permute.xlu0 %766
  %v769 = vmul.f32 %v763, %v767
  %771 = vrot.lane.b32.xlu0 %v769, 64
  %v772 = vpop.permute.xlu0 %771
  %v774 = vadd.f32 %v172, %v772
  %v775 = vtanh.pop %v774
  %v776 = vsub.f32 1.0, %v763
  %778 = vrot.lane.b32.xlu0 %v775, 96
  %v779 = vpop.permute.xlu0 %778
  %v781 = vmul.f32 %v776, %v779
  %v782 = vmul.f32 %v763, %v681
  %v783 = vadd.f32 %v781, %v782
  %vm784 = vcmp.gt.s32.totalorder %v343, 3
  %v785 = vsel %vm784, 1, 0
  %786 = vset.pattern.permute.xlu0 0
  %787 = vperm.xlu0 %786, %v785
  %v788 = vpop.permute.xlu0 %787
  %vm789 = vcmp.eq.s32.totalorder %v788, 1
  %v790 = vsel %vm789, %v783, %v681
  %792 = vrot.lane.b32.xlu0 %v790, 96
  %v793 = vpop.permute.xlu0 %792
  %v794 = vsel %vm65, %v793, 0
  %796 = vmatprep.subr.mxu0 0.0
  %797 = vmatpush1.msra.mxu0 %v344
  %798 = vmatprep.subr.mxu0 0.0
  %799 = vmatpush1.msra.mxu0 %v345
  %800 = vmatprep.subr.mxu0 0.0
  %801 = vmatpush1.msra.mxu0 %v346
  %802 = vmatprep.subr.mxu0 0.0
  %803 = vmatpush1.msra.mxu0 %v347
  %804 = vmatprep.subr.mxu0 0.0
  %805 = vmatpush1.msra.mxu0 0.0
  %806 = vmatprep.subr.mxu0 0.0
  %807 = vmatpush1.msra.mxu0 0.0
  %808 = vmatprep.subr.mxu0 0.0
  %809 = vmatpush1.msra.mxu0 0.0
  %810 = vmatprep.subr.mxu0 0.0
  %811 = vmatpush1.msra.mxu0 0.0
  %812 = vmatprep.subr.mxu0 0.0
  %813 = vmatpush1.msra.mxu0 0.0
  %814 = vmatprep.subr.mxu0 0.0
  %815 = vmatpush1.msra.mxu0 0.0
  %816 = vmatprep.subr.mxu0 0.0
  %817 = vmatpush1.msra.mxu0 0.0
  %818 = vmatprep.subr.mxu0 0.0
  %819 = vmatpush1.msra.mxu0 0.0
  %820 = vmatprep.subr.mxu0 0.0
  %821 = vmatpush1.msra.mxu0 0.0
  %822 = vmatprep.subr.mxu0 0.0
  %823 = vmatpush1.msra.mxu0 0.0
  %824 = vmatprep.subr.mxu0 0.0
  %825 = vmatpush1.msra.mxu0 0.0
  %826 = vmatprep.subr.mxu0 0.0
  %827 = vmatpush1.msra.mxu0 0.0
  %828 = vmatprep.subr.mxu0 0.0
  %829 = vmatpush1.msra.mxu0 0.0
  %830 = vmatprep.subr.mxu0 0.0
  %831 = vmatpush1.msra.mxu0 0.0
  %832 = vmatprep.subr.mxu0 0.0
  %833 = vmatpush1.msra.mxu0 0.0
  %834 = vmatprep.subr.mxu0 0.0
  %835 = vmatpush1.msra.mxu0 0.0
  %836 = vmatprep.subr.mxu0 0.0
  %837 = vmatpush1.msra.mxu0 0.0
  %838 = vmatprep.subr.mxu0 0.0
  %839 = vmatpush1.msra.mxu0 0.0
  %840 = vmatprep.subr.mxu0 0.0
  %841 = vmatpush1.msra.mxu0 0.0
  %842 = vmatprep.subr.mxu0 0.0
  %843 = vmatpush1.msra.mxu0 0.0
  %844 = vmatprep.subr.mxu0 0.0
  %845 = vmatpush1.msra.mxu0 0.0
  %846 = vmatprep.subr.mxu0 0.0
  %847 = vmatpush1.msra.mxu0 0.0
  %848 = vmatprep.subr.mxu0 0.0
  %849 = vmatpush1.msra.mxu0 0.0
  %850 = vmatprep.subr.mxu0 0.0
  %851 = vmatpush1.msra.mxu0 0.0
  %852 = vmatprep.subr.mxu0 0.0
  %853 = vmatpush1.msra.mxu0 0.0
  %854 = vmatprep.subr.mxu0 0.0
  %855 = vmatpush1.msra.mxu0 0.0
  %856 = vmatprep.subr.mxu0 0.0
  %857 = vmatpush1.msra.mxu0 0.0
  %858 = vmatprep.subr.mxu0 0.0
  %859 = vmatpush1.msra.mxu0 0.0
  %860 = vmatprep.mubr.f32.mxu0 0.0
  %861 = vmatmul.mubr.f32.gmra.mrb[0].mxu0 %v794
  %v862 = vpop.f32.mrb[0].mxu0
  %v863 = vadd.f32 0.0, %v862
  %v864 = vpop.f32.mrb[0].mxu0
  %865 = vdwg.mxu0
  %v866 = vadd.f32 %v177, %v863
  %v867 = vxor.u32 %v866, 2147483648
  %v868 = vmul.f32 %v867, 1.442695
  %v869 = vpow.pop %v868
  %v870 = vadd.f32 %v869, 1.0
  %v871 = vrcp.pop %v870
  %v872 = vmul.f32 1.0, %v871
  %v873 = vadd.f32 %v863, %v435
  %875 = vrot.lane.b32.xlu0 %v873, 64
  %v876 = vpop.permute.xlu0 %875
  %v878 = vmul.f32 %v872, %v876
  %880 = vrot.lane.b32.xlu0 %v878, 64
  %v881 = vpop.permute.xlu0 %880
  %v883 = vadd.f32 %v177, %v881
  %v884 = vtanh.pop %v883
  %v885 = vsub.f32 1.0, %v872
  %887 = vrot.lane.b32.xlu0 %v884, 96
  %v888 = vpop.permute.xlu0 %887
  %v890 = vmul.f32 %v885, %v888
  %v891 = vmul.f32 %v872, %v790
  %v892 = vadd.f32 %v890, %v891
  %vm893 = vcmp.gt.s32.totalorder %v343, 4
  %v894 = vsel %vm893, 1, 0
  %895 = vset.pattern.permute.xlu0 0
  %896 = vperm.xlu0 %895, %v894
  %v897 = vpop.permute.xlu0 %896
  %vm898 = vcmp.eq.s32.totalorder %v897, 1
  %v899 = vsel %vm898, %v892, %v790
  %901 = vrot.lane.b32.xlu0 %v899, 96
  %v902 = vpop.permute.xlu0 %901
  %v903 = vsel %vm65, %v902, 0
  %905 = vmatprep.subr.mxu0 0.0
  %906 = vmatpush1.msra.mxu0 %v344
  %907 = vmatprep.subr.mxu0 0.0
  %908 = vmatpush1.msra.mxu0 %v345
  %909 = vmatprep.subr.mxu0 0.0
  %910 = vmatpush1.msra.mxu0 %v346
  %911 = vmatprep.subr.mxu0 0.0
  %912 = vmatpush1.msra.mxu0 %v347
  %913 = vmatprep.subr.mxu0 0.0
  %914 = vmatpush1.msra.mxu0 0.0
  %915 = vmatprep.subr.mxu0 0.0
  %916 = vmatpush1.msra.mxu0 0.0
  %917 = vmatprep.subr.mxu0 0.0
  %918 = vmatpush1.msra.mxu0 0.0
  %919 = vmatprep.subr.mxu0 0.0
  %920 = vmatpush1.msra.mxu0 0.0
  %921 = vmatprep.subr.mxu0 0.0
  %922 = vmatpush1.msra.mxu0 0.0
  %923 = vmatprep.subr.mxu0 0.0
  %924 = vmatpush1.msra.mxu0 0.0
  %925 = vmatprep.subr.mxu0 0.0
  %926 = vmatpush1.msra.mxu0 0.0
  %927 = vmatprep.subr.mxu0 0.0
  %928 = vmatpush1.msra.mxu0 0.0
  %929 = vmatprep.subr.mxu0 0.0
  %930 = vmatpush1.msra.mxu0 0.0
  %931 = vmatprep.subr.mxu0 0.0
  %932 = vmatpush1.msra.mxu0 0.0
  %933 = vmatprep.subr.mxu0 0.0
  %934 = vmatpush1.msra.mxu0 0.0
  %935 = vmatprep.subr.mxu0 0.0
  %936 = vmatpush1.msra.mxu0 0.0
  %937 = vmatprep.subr.mxu0 0.0
  %938 = vmatpush1.msra.mxu0 0.0
  %939 = vmatprep.subr.mxu0 0.0
  %940 = vmatpush1.msra.mxu0 0.0
  %941 = vmatprep.subr.mxu0 0.0
  %942 = vmatpush1.msra.mxu0 0.0
  %943 = vmatprep.subr.mxu0 0.0
  %944 = vmatpush1.msra.mxu0 0.0
  %945 = vmatprep.subr.mxu0 0.0
  %946 = vmatpush1.msra.mxu0 0.0
  %947 = vmatprep.subr.mxu0 0.0
  %948 = vmatpush1.msra.mxu0 0.0
  %949 = vmatprep.subr.mxu0 0.0
  %950 = vmatpush1.msra.mxu0 0.0
  %951 = vmatprep.subr.mxu0 0.0
  %952 = vmatpush1.msra.mxu0 0.0
  %953 = vmatprep.subr.mxu0 0.0
  %954 = vmatpush1.msra.mxu0 0.0
  %955 = vmatprep.subr.mxu0 0.0
  %956 = vmatpush1.msra.mxu0 0.0
  %957 = vmatprep.subr.mxu0 0.0
  %958 = vmatpush1.msra.mxu0 0.0
  %959 = vmatprep.subr.mxu0 0.0
  %960 = vmatpush1.msra.mxu0 0.0
  %961 = vmatprep.subr.mxu0 0.0
  %962 = vmatpush1.msra.mxu0 0.0
  %963 = vmatprep.subr.mxu0 0.0
  %964 = vmatpush1.msra.mxu0 0.0
  %965 = vmatprep.subr.mxu0 0.0
  %966 = vmatpush1.msra.mxu0 0.0
  %967 = vmatprep.subr.mxu0 0.0
  %968 = vmatpush1.msra.mxu0 0.0
  %969 = vmatprep.mubr.f32.mxu0 0.0
  %970 = vmatmul.mubr.f32.gmra.mrb[0].mxu0 %v903
  %v971 = vpop.f32.mrb[0].mxu0
  %v972 = vadd.f32 0.0, %v971
  %v973 = vpop.f32.mrb[0].mxu0
  %974 = vdwg.mxu0
  %v975 = vadd.f32 %v182, %v972
  %v976 = vxor.u32 %v975, 2147483648
  %v977 = vmul.f32 %v976, 1.442695
  %v978 = vpow.pop %v977
  %v979 = vadd.f32 %v978, 1.0
  %v980 = vrcp.pop %v979
  %v981 = vmul.f32 1.0, %v980
  %v982 = vadd.f32 %v972, %v435
  %984 = vrot.lane.b32.xlu0 %v982, 64
  %v985 = vpop.permute.xlu0 %984
  %v987 = vmul.f32 %v981, %v985
  %989 = vrot.lane.b32.xlu0 %v987, 64
  %v990 = vpop.permute.xlu0 %989
  %v992 = vadd.f32 %v182, %v990
  %v993 = vtanh.pop %v992
  %v994 = vsub.f32 1.0, %v981
  %996 = vrot.lane.b32.xlu0 %v993, 96
  %v997 = vpop.permute.xlu0 %996
  %v999 = vmul.f32 %v994, %v997
  %v1000 = vmul.f32 %v981, %v899
  %v1001 = vadd.f32 %v999, %v1000
  %vm1002 = vcmp.gt.s32.totalorder %v343, 5
  %v1003 = vsel %vm1002, 1, 0
  %1004 = vset.pattern.permute.xlu0 0
  %1005 = vperm.xlu0 %1004, %v1003
  %v1006 = vpop.permute.xlu0 %1005
  %vm1007 = vcmp.eq.s32.totalorder %v1006, 1
  %v1008 = vsel %vm1007, %v1001, %v899
  %1010 = vrot.lane.b32.xlu0 %v1008, 96
  %v1011 = vpop.permute.xlu0 %1010
  %v1012 = vsel %vm65, %v1011, 0
  %1014 = vmatprep.subr.mxu0 0.0
  %1015 = vmatpush1.msra.mxu0 %v344
  %1016 = vmatprep.subr.mxu0 0.0
  %1017 = vmatpush1.msra.mxu0 %v345
  %1018 = vmatprep.subr.mxu0 0.0
  %1019 = vmatpush1.msra.mxu0 %v346
  %1020 = vmatprep.subr.mxu0 0.0
  %1021 = vmatpush1.msra.mxu0 %v347
  %1022 = vmatprep.subr.mxu0 0.0
  %1023 = vmatpush1.msra.mxu0 0.0
  %1024 = vmatprep.subr.mxu0 0.0
  %1025 = vmatpush1.msra.mxu0 0.0
  %1026 = vmatprep.subr.mxu0 0.0
  %1027 = vmatpush1.msra.mxu0 0.0
  %1028 = vmatprep.subr.mxu0 0.0
  %1029 = vmatpush1.msra.mxu0 0.0
  %1030 = vmatprep.subr.mxu0 0.0
  %1031 = vmatpush1.msra.mxu0 0.0
  %1032 = vmatprep.subr.mxu0 0.0
  %1033 = vmatpush1.msra.mxu0 0.0
  %1034 = vmatprep.subr.mxu0 0.0
  %1035 = vmatpush1.msra.mxu0 0.0
  %1036 = vmatprep.subr.mxu0 0.0
  %1037 = vmatpush1.msra.mxu0 0.0
  %1038 = vmatprep.subr.mxu0 0.0
  %1039 = vmatpush1.msra.mxu0 0.0
  %1040 = vmatprep.subr.mxu0 0.0
  %1041 = vmatpush1.msra.mxu0 0.0
  %1042 = vmatprep.subr.mxu0 0.0
  %1043 = vmatpush1.msra.mxu0 0.0
  %1044 = vmatprep.subr.mxu0 0.0
  %1045 = vmatpush1.msra.mxu0 0.0
  %1046 = vmatprep.subr.mxu0 0.0
  %1047 = vmatpush1.msra.mxu0 0.0
  %1048 = vmatprep.subr.mxu0 0.0
  %1049 = vmatpush1.msra.mxu0 0.0
  %1050 = vmatprep.subr.mxu0 0.0
  %1051 = vmatpush1.msra.mxu0 0.0
  %1052 = vmatprep.subr.mxu0 0.0
  %1053 = vmatpush1.msra.mxu0 0.0
  %1054 = vmatprep.subr.mxu0 0.0
  %1055 = vmatpush1.msra.mxu0 0.0
  %1056 = vmatprep.subr.mxu0 0.0
  %1057 = vmatpush1.msra.mxu0 0.0
  %1058 = vmatprep.subr.mxu0 0.0
  %1059 = vmatpush1.msra.mxu0 0.0
  %1060 = vmatprep.subr.mxu0 0.0
  %1061 = vmatpush1.msra.mxu0 0.0
  %1062 = vmatprep.subr.mxu0 0.0
  %1063 = vmatpush1.msra.mxu0 0.0
  %1064 = vmatprep.subr.mxu0 0.0
  %1065 = vmatpush1.msra.mxu0 0.0
  %1066 = vmatprep.subr.mxu0 0.0
  %1067 = vmatpush1.msra.mxu0 0.0
  %1068 = vmatprep.subr.mxu0 0.0
  %1069 = vmatpush1.msra.mxu0 0.0
  %1070 = vmatprep.subr.mxu0 0.0
  %1071 = vmatpush1.msra.mxu0 0.0
  %1072 = vmatprep.subr.mxu0 0.0
  %1073 = vmatpush1.msra.mxu0 0.0
  %1074 = vmatprep.subr.mxu0 0.0
  %1075 = vmatpush1.msra.mxu0 0.0
  %1076 = vmatprep.subr.mxu0 0.0
  %1077 = vmatpush1.msra.mxu0 0.0
  %1078 = vmatprep.mubr.f32.mxu0 0.0
  %1079 = vmatmul.mubr.f32.gmra.mrb[0].mxu0 %v1012
  %v1080 = vpop.f32.mrb[0].mxu0
  %v1081 = vadd.f32 0.0, %v1080
  %v1082 = vpop.f32.mrb[0].mxu0
  %1083 = vdwg.mxu0
  %v1084 = vadd.f32 %v187, %v1081
  %v1085 = vxor.u32 %v1084, 2147483648
  %v1086 = vmul.f32 %v1085, 1.442695
  %v1087 = vpow.pop %v1086
  %v1088 = vadd.f32 %v1087, 1.0
  %v1089 = vrcp.pop %v1088
  %v1090 = vmul.f32 1.0, %v1089
  %v1091 = vadd.f32 %v1081, %v435
  %1093 = vrot.lane.b32.xlu0 %v1091, 64
  %v1094 = vpop.permute.xlu0 %1093
  %v1096 = vmul.f32 %v1090, %v1094
  %1098 = vrot.lane.b32.xlu0 %v1096, 64
  %v1099 = vpop.permute.xlu0 %1098
  %v1101 = vadd.f32 %v187, %v1099
  %v1102 = vtanh.pop %v1101
  %v1103 = vsub.f32 1.0, %v1090
  %1105 = vrot.lane.b32.xlu0 %v1102, 96
  %v1106 = vpop.permute.xlu0 %1105
  %v1108 = vmul.f32 %v1103, %v1106
  %v1109 = vmul.f32 %v1090, %v1008
  %v1110 = vadd.f32 %v1108, %v1109
  %vm1111 = vcmp.gt.s32.totalorder %v343, 6
  %v1112 = vsel %vm1111, 1, 0
  %1113 = vset.pattern.permute.xlu0 0
  %1114 = vperm.xlu0 %1113, %v1112
  %v1115 = vpop.permute.xlu0 %1114
  %vm1116 = vcmp.eq.s32.totalorder %v1115, 1
  %v1117 = vsel %vm1116, %v1110, %v1008
  %1119 = vrot.lane.b32.xlu0 %v1117, 96
  %v1120 = vpop.permute.xlu0 %1119
  %v1121 = vsel %vm65, %v1120, 0
  %1123 = vmatprep.subr.mxu0 0.0
  %1124 = vmatpush1.msra.mxu0 %v344
  %1125 = vmatprep.subr.mxu0 0.0
  %1126 = vmatpush1.msra.mxu0 %v345
  %1127 = vmatprep.subr.mxu0 0.0
  %1128 = vmatpush1.msra.mxu0 %v346
  %1129 = vmatprep.subr.mxu0 0.0
  %1130 = vmatpush1.msra.mxu0 %v347
  %1131 = vmatprep.subr.mxu0 0.0
  %1132 = vmatpush1.msra.mxu0 0.0
  %1133 = vmatprep.subr.mxu0 0.0
  %1134 = vmatpush1.msra.mxu0 0.0
  %1135 = vmatprep.subr.mxu0 0.0
  %1136 = vmatpush1.msra.mxu0 0.0
  %1137 = vmatprep.subr.mxu0 0.0
  %1138 = vmatpush1.msra.mxu0 0.0
  %1139 = vmatprep.subr.mxu0 0.0
  %1140 = vmatpush1.msra.mxu0 0.0
  %1141 = vmatprep.subr.mxu0 0.0
  %1142 = vmatpush1.msra.mxu0 0.0
  %1143 = vmatprep.subr.mxu0 0.0
  %1144 = vmatpush1.msra.mxu0 0.0
  %1145 = vmatprep.subr.mxu0 0.0
  %1146 = vmatpush1.msra.mxu0 0.0
  %1147 = vmatprep.subr.mxu0 0.0
  %1148 = vmatpush1.msra.mxu0 0.0
  %1149 = vmatprep.subr.mxu0 0.0
  %1150 = vmatpush1.msra.mxu0 0.0
  %1151 = vmatprep.subr.mxu0 0.0
  %1152 = vmatpush1.msra.mxu0 0.0
  %1153 = vmatprep.subr.mxu0 0.0
  %1154 = vmatpush1.msra.mxu0 0.0
  %1155 = vmatprep.subr.mxu0 0.0
  %1156 = vmatpush1.msra.mxu0 0.0
  %1157 = vmatprep.subr.mxu0 0.0
  %1158 = vmatpush1.msra.mxu0 0.0
  %1159 = vmatprep.subr.mxu0 0.0
  %1160 = vmatpush1.msra.mxu0 0.0
  %1161 = vmatprep.subr.mxu0 0.0
  %1162 = vmatpush1.msra.mxu0 0.0
  %1163 = vmatprep.subr.mxu0 0.0
  %1164 = vmatpush1.msra.mxu0 0.0
  %1165 = vmatprep.subr.mxu0 0.0
  %1166 = vmatpush1.msra.mxu0 0.0
  %1167 = vmatprep.subr.mxu0 0.0
  %1168 = vmatpush1.msra.mxu0 0.0
  %1169 = vmatprep.subr.mxu0 0.0
  %1170 = vmatpush1.msra.mxu0 0.0
  %1171 = vmatprep.subr.mxu0 0.0
  %1172 = vmatpush1.msra.mxu0 0.0
  %1173 = vmatprep.subr.mxu0 0.0
  %1174 = vmatpush1.msra.mxu0 0.0
  %1175 = vmatprep.subr.mxu0 0.0
  %1176 = vmatpush1.msra.mxu0 0.0
  %1177 = vmatprep.subr.mxu0 0.0
  %1178 = vmatpush1.msra.mxu0 0.0
  %1179 = vmatprep.subr.mxu0 0.0
  %1180 = vmatpush1.msra.mxu0 0.0
  %1181 = vmatprep.subr.mxu0 0.0
  %1182 = vmatpush1.msra.mxu0 0.0
  %1183 = vmatprep.subr.mxu0 0.0
  %1184 = vmatpush1.msra.mxu0 0.0
  %1185 = vmatprep.subr.mxu0 0.0
  %1186 = vmatpush1.msra.mxu0 0.0
  %1187 = vmatprep.mubr.f32.mxu0 0.0
  %1188 = vmatmul.mubr.f32.gmra.mrb[0].mxu0 %v1121
  %v1189 = vpop.f32.mrb[0].mxu0
  %v1190 = vadd.f32 0.0, %v1189
  %v1191 = vpop.f32.mrb[0].mxu0
  %1192 = vdwg.mxu0
  %v1193 = vadd.f32 %v192, %v1190
  %v1194 = vxor.u32 %v1193, 2147483648
  %v1195 = vmul.f32 %v1194, 1.442695
  %v1196 = vpow.pop %v1195
  %v1197 = vadd.f32 %v1196, 1.0
  %v1198 = vrcp.pop %v1197
  %v1199 = vmul.f32 1.0, %v1198
  %v1200 = vadd.f32 %v1190, %v435
  %1202 = vrot.lane.b32.xlu0 %v1200, 64
  %v1203 = vpop.permute.xlu0 %1202
  %v1205 = vmul.f32 %v1199, %v1203
  %1207 = vrot.lane.b32.xlu0 %v1205, 64
  %v1208 = vpop.permute.xlu0 %1207
  %v1210 = vadd.f32 %v192, %v1208
  %v1211 = vtanh.pop %v1210
  %v1212 = vsub.f32 1.0, %v1199
  %1214 = vrot.lane.b32.xlu0 %v1211, 96
  %v1215 = vpop.permute.xlu0 %1214
  %v1217 = vmul.f32 %v1212, %v1215
  %v1218 = vmul.f32 %v1199, %v1117
  %v1219 = vadd.f32 %v1217, %v1218
  %vm1220 = vcmp.gt.s32.totalorder %v343, 7
  %v1221 = vsel %vm1220, 1, 0
  %1222 = vset.pattern.permute.xlu0 0
  %1223 = vperm.xlu0 %1222, %v1221
  %v1224 = vpop.permute.xlu0 %1223
  %vm1225 = vcmp.eq.s32.totalorder %v1224, 1
  %v1226 = vsel %vm1225, %v1219, %v1117
  %v1227 = vld [vmem:[%s8] sm:$0xff]
  %v1228 = vld [vmem:[%s8 + $0x8] sm:$0xff]
  %v1229 = vld [vmem:[%s8 + $0x10] sm:$0xff]
  %v1230 = vld [vmem:[%s8 + $0x18] sm:$0xff]
  %v1231 = vld [vmem:[%s10] sm:$0x1]
  %1233 = vrot.lane.b32.xlu0 %v1226, 96
  %v1234 = vpop.permute.xlu0 %1233
  %v1235 = vsel %vm65, %v1234, 0
  %1237 = vmatprep.subr.mxu0 0.0
  %1238 = vmatpush1.msra.mxu0 %v1227
  %1239 = vmatprep.subr.mxu0 0.0
  %1240 = vmatpush1.msra.mxu0 %v1228
  %1241 = vmatprep.subr.mxu0 0.0
  %1242 = vmatpush1.msra.mxu0 %v1229
  %1243 = vmatprep.subr.mxu0 0.0
  %1244 = vmatpush1.msra.mxu0 %v1230
  %1245 = vmatprep.subr.mxu0 0.0
  %1246 = vmatpush1.msra.mxu0 0.0
  %1247 = vmatprep.subr.mxu0 0.0
  %1248 = vmatpush1.msra.mxu0 0.0
  %1249 = vmatprep.subr.mxu0 0.0
  %1250 = vmatpush1.msra.mxu0 0.0
  %1251 = vmatprep.subr.mxu0 0.0
  %1252 = vmatpush1.msra.mxu0 0.0
  %1253 = vmatprep.subr.mxu0 0.0
  %1254 = vmatpush1.msra.mxu0 0.0
  %1255 = vmatprep.subr.mxu0 0.0
  %1256 = vmatpush1.msra.mxu0 0.0
  %1257 = vmatprep.subr.mxu0 0.0
  %1258 = vmatpush1.msra.mxu0 0.0
  %1259 = vmatprep.subr.mxu0 0.0
  %1260 = vmatpush1.msra.mxu0 0.0
  %1261 = vmatprep.subr.mxu0 0.0
  %1262 = vmatpush1.msra.mxu0 0.0
  %1263 = vmatprep.subr.mxu0 0.0
  %1264 = vmatpush1.msra.mxu0 0.0
  %1265 = vmatprep.subr.mxu0 0.0
  %1266 = vmatpush1.msra.mxu0 0.0
  %1267 = vmatprep.subr.mxu0 0.0
  %1268 = vmatpush1.msra.mxu0 0.0
  %1269 = vmatprep.subr.mxu0 0.0
  %1270 = vmatpush1.msra.mxu0 0.0
  %1271 = vmatprep.subr.mxu0 0.0
  %1272 = vmatpush1.msra.mxu0 0.0
  %1273 = vmatprep.subr.mxu0 0.0
  %1274 = vmatpush1.msra.mxu0 0.0
  %1275 = vmatprep.subr.mxu0 0.0
  %1276 = vmatpush1.msra.mxu0 0.0
  %1277 = vmatprep.subr.mxu0 0.0
  %1278 = vmatpush1.msra.mxu0 0.0
  %1279 = vmatprep.subr.mxu0 0.0
  %1280 = vmatpush1.msra.mxu0 0.0
  %1281 = vmatprep.subr.mxu0 0.0
  %1282 = vmatpush1.msra.mxu0 0.0
  %1283 = vmatprep.subr.mxu0 0.0
  %1284 = vmatpush1.msra.mxu0 0.0
  %1285 = vmatprep.subr.mxu0 0.0
  %1286 = vmatpush1.msra.mxu0 0.0
  %1287 = vmatprep.subr.mxu0 0.0
  %1288 = vmatpush1.msra.mxu0 0.0
  %1289 = vmatprep.subr.mxu0 0.0
  %1290 = vmatpush1.msra.mxu0 0.0
  %1291 = vmatprep.subr.mxu0 0.0
  %1292 = vmatpush1.msra.mxu0 0.0
  %1293 = vmatprep.subr.mxu0 0.0
  %1294 = vmatpush1.msra.mxu0 0.0
  %1295 = vmatprep.subr.mxu0 0.0
  %1296 = vmatpush1.msra.mxu0 0.0
  %1297 = vmatprep.subr.mxu0 0.0
  %1298 = vmatpush1.msra.mxu0 0.0
  %1299 = vmatprep.subr.mxu0 0.0
  %1300 = vmatpush1.msra.mxu0 0.0
  %1301 = vmatprep.mubr.f32.mxu0 0.0
  %1302 = vmatmul.mubr.f32.gmra.mrb[0].mxu0 %v1235
  %v1303 = vpop.f32.mrb[0].mxu0
  %v1304 = vadd.f32 0.0, %v1303
  %v1305 = vpop.f32.mrb[0].mxu0
  %1306 = vdwg.mxu0
  %v1307 = vadd.f32 %v305, %v1304
  %v1308 = vxor.u32 %v1307, 2147483648
  %v1309 = vmul.f32 %v1308, 1.442695
  %v1310 = vpow.pop %v1309
  %v1311 = vadd.f32 %v1310, 1.0
  %v1312 = vrcp.pop %v1311
  %v1313 = vmul.f32 1.0, %v1312
  %v1315 = vlaneseq
  %v1316 = vshrl.u32 %v1315, 7
  %v1317 = vsub.s32 0, %v1316
  %v1318 = vrot.slane %v1231, %v1317
  %1319 = vrot.lane.b32.xlu0 %v1318, 64
  %v1320 = vpop.permute.xlu0 %1319
  %v1322 = vadd.f32 %v1304, %v1320
  %1324 = vrot.lane.b32.xlu0 %v1322, 64
  %v1325 = vpop.permute.xlu0 %1324
  %v1327 = vmul.f32 %v1313, %v1325
  %1329 = vrot.lane.b32.xlu0 %v1327, 64
  %v1330 = vpop.permute.xlu0 %1329
  %v1332 = vadd.f32 %v305, %v1330
  %v1333 = vtanh.pop %v1332
  %v1334 = vsub.f32 1.0, %v1313
  %1336 = vrot.lane.b32.xlu0 %v1333, 96
  %v1337 = vpop.permute.xlu0 %1336
  %v1339 = vmul.f32 %v1334, %v1337
  %v1340 = vmul.f32 %v1313, %v1226
  %v1341 = vadd.f32 %v1339, %v1340
  %1343 = vrot.lane.b32.xlu0 %v1341, 96
  %v1344 = vpop.permute.xlu0 %1343
  %v1345 = vsel %vm65, %v1344, 0
  %1347 = vmatprep.subr.mxu0 0.0
  %1348 = vmatpush1.msra.mxu0 %v1227
  %1349 = vmatprep.subr.mxu0 0.0
  %1350 = vmatpush1.msra.mxu0 %v1228
  %1351 = vmatprep.subr.mxu0 0.0
  %1352 = vmatpush1.msra.mxu0 %v1229
  %1353 = vmatprep.subr.mxu0 0.0
  %1354 = vmatpush1.msra.mxu0 %v1230
  %1355 = vmatprep.subr.mxu0 0.0
  %1356 = vmatpush1.msra.mxu0 0.0
  %1357 = vmatprep.subr.mxu0 0.0
  %1358 = vmatpush1.msra.mxu0 0.0
  %1359 = vmatprep.subr.mxu0 0.0
  %1360 = vmatpush1.msra.mxu0 0.0
  %1361 = vmatprep.subr.mxu0 0.0
  %1362 = vmatpush1.msra.mxu0 0.0
  %1363 = vmatprep.subr.mxu0 0.0
  %1364 = vmatpush1.msra.mxu0 0.0
  %1365 = vmatprep.subr.mxu0 0.0
  %1366 = vmatpush1.msra.mxu0 0.0
  %1367 = vmatprep.subr.mxu0 0.0
  %1368 = vmatpush1.msra.mxu0 0.0
  %1369 = vmatprep.subr.mxu0 0.0
  %1370 = vmatpush1.msra.mxu0 0.0
  %1371 = vmatprep.subr.mxu0 0.0
  %1372 = vmatpush1.msra.mxu0 0.0
  %1373 = vmatprep.subr.mxu0 0.0
  %1374 = vmatpush1.msra.mxu0 0.0
  %1375 = vmatprep.subr.mxu0 0.0
  %1376 = vmatpush1.msra.mxu0 0.0
  %1377 = vmatprep.subr.mxu0 0.0
  %1378 = vmatpush1.msra.mxu0 0.0
  %1379 = vmatprep.subr.mxu0 0.0
  %1380 = vmatpush1.msra.mxu0 0.0
  %1381 = vmatprep.subr.mxu0 0.0
  %1382 = vmatpush1.msra.mxu0 0.0
  %1383 = vmatprep.subr.mxu0 0.0
  %1384 = vmatpush1.msra.mxu0 0.0
  %1385 = vmatprep.subr.mxu0 0.0
  %1386 = vmatpush1.msra.mxu0 0.0
  %1387 = vmatprep.subr.mxu0 0.0
  %1388 = vmatpush1.msra.mxu0 0.0
  %1389 = vmatprep.subr.mxu0 0.0
  %1390 = vmatpush1.msra.mxu0 0.0
  %1391 = vmatprep.subr.mxu0 0.0
  %1392 = vmatpush1.msra.mxu0 0.0
  %1393 = vmatprep.subr.mxu0 0.0
  %1394 = vmatpush1.msra.mxu0 0.0
  %1395 = vmatprep.subr.mxu0 0.0
  %1396 = vmatpush1.msra.mxu0 0.0
  %1397 = vmatprep.subr.mxu0 0.0
  %1398 = vmatpush1.msra.mxu0 0.0
  %1399 = vmatprep.subr.mxu0 0.0
  %1400 = vmatpush1.msra.mxu0 0.0
  %1401 = vmatprep.subr.mxu0 0.0
  %1402 = vmatpush1.msra.mxu0 0.0
  %1403 = vmatprep.subr.mxu0 0.0
  %1404 = vmatpush1.msra.mxu0 0.0
  %1405 = vmatprep.subr.mxu0 0.0
  %1406 = vmatpush1.msra.mxu0 0.0
  %1407 = vmatprep.subr.mxu0 0.0
  %1408 = vmatpush1.msra.mxu0 0.0
  %1409 = vmatprep.subr.mxu0 0.0
  %1410 = vmatpush1.msra.mxu0 0.0
  %1411 = vmatprep.mubr.f32.mxu0 0.0
  %1412 = vmatmul.mubr.f32.gmra.mrb[0].mxu0 %v1345
  %v1413 = vpop.f32.mrb[0].mxu0
  %v1414 = vadd.f32 0.0, %v1413
  %v1415 = vpop.f32.mrb[0].mxu0
  %1416 = vdwg.mxu0
  %v1417 = vadd.f32 %v310, %v1414
  %v1418 = vxor.u32 %v1417, 2147483648
  %v1419 = vmul.f32 %v1418, 1.442695
  %v1420 = vpow.pop %v1419
  %v1421 = vadd.f32 %v1420, 1.0
  %v1422 = vrcp.pop %v1421
  %v1423 = vmul.f32 1.0, %v1422
  %v1424 = vadd.f32 %v1414, %v1320
  %1426 = vrot.lane.b32.xlu0 %v1424, 64
  %v1427 = vpop.permute.xlu0 %1426
  %v1429 = vmul.f32 %v1423, %v1427
  %1431 = vrot.lane.b32.xlu0 %v1429, 64
  %v1432 = vpop.permute.xlu0 %1431
  %v1434 = vadd.f32 %v310, %v1432
  %v1435 = vtanh.pop %v1434
  %v1436 = vsub.f32 1.0, %v1423
  %1438 = vrot.lane.b32.xlu0 %v1435, 96
  %v1439 = vpop.permute.xlu0 %1438
  %v1441 = vmul.f32 %v1436, %v1439
  %v1442 = vmul.f32 %v1423, %v1341
  %v1443 = vadd.f32 %v1441, %v1442
  %1445 = vrot.lane.b32.xlu0 %v1443, 96
  %v1446 = vpop.permute.xlu0 %1445
  %v1447 = vsel %vm65, %v1446, 0
  %1449 = vmatprep.subr.mxu0 0.0
  %1450 = vmatpush1.msra.mxu0 %v1227
  %1451 = vmatprep.subr.mxu0 0.0
  %1452 = vmatpush1.msra.mxu0 %v1228
  %1453 = vmatprep.subr.mxu0 0.0
  %1454 = vmatpush1.msra.mxu0 %v1229
  %1455 = vmatprep.subr.mxu0 0.0
  %1456 = vmatpush1.msra.mxu0 %v1230
  %1457 = vmatprep.subr.mxu0 0.0
  %1458 = vmatpush1.msra.mxu0 0.0
  %1459 = vmatprep.subr.mxu0 0.0
  %1460 = vmatpush1.msra.mxu0 0.0
  %1461 = vmatprep.subr.mxu0 0.0
  %1462 = vmatpush1.msra.mxu0 0.0
  %1463 = vmatprep.subr.mxu0 0.0
  %1464 = vmatpush1.msra.mxu0 0.0
  %1465 = vmatprep.subr.mxu0 0.0
  %1466 = vmatpush1.msra.mxu0 0.0
  %1467 = vmatprep.subr.mxu0 0.0
  %1468 = vmatpush1.msra.mxu0 0.0
  %1469 = vmatprep.subr.mxu0 0.0
  %1470 = vmatpush1.msra.mxu0 0.0
  %1471 = vmatprep.subr.mxu0 0.0
  %1472 = vmatpush1.msra.mxu0 0.0
  %1473 = vmatprep.subr.mxu0 0.0
  %1474 = vmatpush1.msra.mxu0 0.0
  %1475 = vmatprep.subr.mxu0 0.0
  %1476 = vmatpush1.msra.mxu0 0.0
  %1477 = vmatprep.subr.mxu0 0.0
  %1478 = vmatpush1.msra.mxu0 0.0
  %1479 = vmatprep.subr.mxu0 0.0
  %1480 = vmatpush1.msra.mxu0 0.0
  %1481 = vmatprep.subr.mxu0 0.0
  %1482 = vmatpush1.msra.mxu0 0.0
  %1483 = vmatprep.subr.mxu0 0.0
  %1484 = vmatpush1.msra.mxu0 0.0
  %1485 = vmatprep.subr.mxu0 0.0
  %1486 = vmatpush1.msra.mxu0 0.0
  %1487 = vmatprep.subr.mxu0 0.0
  %1488 = vmatpush1.msra.mxu0 0.0
  %1489 = vmatprep.subr.mxu0 0.0
  %1490 = vmatpush1.msra.mxu0 0.0
  %1491 = vmatprep.subr.mxu0 0.0
  %1492 = vmatpush1.msra.mxu0 0.0
  %1493 = vmatprep.subr.mxu0 0.0
  %1494 = vmatpush1.msra.mxu0 0.0
  %1495 = vmatprep.subr.mxu0 0.0
  %1496 = vmatpush1.msra.mxu0 0.0
  %1497 = vmatprep.subr.mxu0 0.0
  %1498 = vmatpush1.msra.mxu0 0.0
  %1499 = vmatprep.subr.mxu0 0.0
  %1500 = vmatpush1.msra.mxu0 0.0
  %1501 = vmatprep.subr.mxu0 0.0
  %1502 = vmatpush1.msra.mxu0 0.0
  %1503 = vmatprep.subr.mxu0 0.0
  %1504 = vmatpush1.msra.mxu0 0.0
  %1505 = vmatprep.subr.mxu0 0.0
  %1506 = vmatpush1.msra.mxu0 0.0
  %1507 = vmatprep.subr.mxu0 0.0
  %1508 = vmatpush1.msra.mxu0 0.0
  %1509 = vmatprep.subr.mxu0 0.0
  %1510 = vmatpush1.msra.mxu0 0.0
  %1511 = vmatprep.subr.mxu0 0.0
  %1512 = vmatpush1.msra.mxu0 0.0
  %1513 = vmatprep.mubr.f32.mxu0 0.0
  %1514 = vmatmul.mubr.f32.gmra.mrb[0].mxu0 %v1447
  %v1515 = vpop.f32.mrb[0].mxu0
  %v1516 = vadd.f32 0.0, %v1515
  %v1517 = vpop.f32.mrb[0].mxu0
  %1518 = vdwg.mxu0
  %v1519 = vadd.f32 %v315, %v1516
  %v1520 = vxor.u32 %v1519, 2147483648
  %v1521 = vmul.f32 %v1520, 1.442695
  %v1522 = vpow.pop %v1521
  %v1523 = vadd.f32 %v1522, 1.0
  %v1524 = vrcp.pop %v1523
  %v1525 = vmul.f32 1.0, %v1524
  %v1526 = vadd.f32 %v1516, %v1320
  %1528 = vrot.lane.b32.xlu0 %v1526, 64
  %v1529 = vpop.permute.xlu0 %1528
  %v1531 = vmul.f32 %v1525, %v1529
  %1533 = vrot.lane.b32.xlu0 %v1531, 64
  %v1534 = vpop.permute.xlu0 %1533
  %v1536 = vadd.f32 %v315, %v1534
  %v1537 = vtanh.pop %v1536
  %v1538 = vsub.f32 1.0, %v1525
  %1540 = vrot.lane.b32.xlu0 %v1537, 96
  %v1541 = vpop.permute.xlu0 %1540
  %v1543 = vmul.f32 %v1538, %v1541
  %v1544 = vmul.f32 %v1525, %v1443
  %v1545 = vadd.f32 %v1543, %v1544
  %1547 = vrot.lane.b32.xlu0 %v1545, 96
  %v1548 = vpop.permute.xlu0 %1547
  %v1549 = vsel %vm65, %v1548, 0
  %1551 = vmatprep.subr.mxu0 0.0
  %1552 = vmatpush1.msra.mxu0 %v1227
  %1553 = vmatprep.subr.mxu0 0.0
  %1554 = vmatpush1.msra.mxu0 %v1228
  %1555 = vmatprep.subr.mxu0 0.0
  %1556 = vmatpush1.msra.mxu0 %v1229
  %1557 = vmatprep.subr.mxu0 0.0
  %1558 = vmatpush1.msra.mxu0 %v1230
  %1559 = vmatprep.subr.mxu0 0.0
  %1560 = vmatpush1.msra.mxu0 0.0
  %1561 = vmatprep.subr.mxu0 0.0
  %1562 = vmatpush1.msra.mxu0 0.0
  %1563 = vmatprep.subr.mxu0 0.0
  %1564 = vmatpush1.msra.mxu0 0.0
  %1565 = vmatprep.subr.mxu0 0.0
  %1566 = vmatpush1.msra.mxu0 0.0
  %1567 = vmatprep.subr.mxu0 0.0
  %1568 = vmatpush1.msra.mxu0 0.0
  %1569 = vmatprep.subr.mxu0 0.0
  %1570 = vmatpush1.msra.mxu0 0.0
  %1571 = vmatprep.subr.mxu0 0.0
  %1572 = vmatpush1.msra.mxu0 0.0
  %1573 = vmatprep.subr.mxu0 0.0
  %1574 = vmatpush1.msra.mxu0 0.0
  %1575 = vmatprep.subr.mxu0 0.0
  %1576 = vmatpush1.msra.mxu0 0.0
  %1577 = vmatprep.subr.mxu0 0.0
  %1578 = vmatpush1.msra.mxu0 0.0
  %1579 = vmatprep.subr.mxu0 0.0
  %1580 = vmatpush1.msra.mxu0 0.0
  %1581 = vmatprep.subr.mxu0 0.0
  %1582 = vmatpush1.msra.mxu0 0.0
  %1583 = vmatprep.subr.mxu0 0.0
  %1584 = vmatpush1.msra.mxu0 0.0
  %1585 = vmatprep.subr.mxu0 0.0
  %1586 = vmatpush1.msra.mxu0 0.0
  %1587 = vmatprep.subr.mxu0 0.0
  %1588 = vmatpush1.msra.mxu0 0.0
  %1589 = vmatprep.subr.mxu0 0.0
  %1590 = vmatpush1.msra.mxu0 0.0
  %1591 = vmatprep.subr.mxu0 0.0
  %1592 = vmatpush1.msra.mxu0 0.0
  %1593 = vmatprep.subr.mxu0 0.0
  %1594 = vmatpush1.msra.mxu0 0.0
  %1595 = vmatprep.subr.mxu0 0.0
  %1596 = vmatpush1.msra.mxu0 0.0
  %1597 = vmatprep.subr.mxu0 0.0
  %1598 = vmatpush1.msra.mxu0 0.0
  %1599 = vmatprep.subr.mxu0 0.0
  %1600 = vmatpush1.msra.mxu0 0.0
  %1601 = vmatprep.subr.mxu0 0.0
  %1602 = vmatpush1.msra.mxu0 0.0
  %1603 = vmatprep.subr.mxu0 0.0
  %1604 = vmatpush1.msra.mxu0 0.0
  %1605 = vmatprep.subr.mxu0 0.0
  %1606 = vmatpush1.msra.mxu0 0.0
  %1607 = vmatprep.subr.mxu0 0.0
  %1608 = vmatpush1.msra.mxu0 0.0
  %1609 = vmatprep.subr.mxu0 0.0
  %1610 = vmatpush1.msra.mxu0 0.0
  %1611 = vmatprep.subr.mxu0 0.0
  %1612 = vmatpush1.msra.mxu0 0.0
  %1613 = vmatprep.subr.mxu0 0.0
  %1614 = vmatpush1.msra.mxu0 0.0
  %1615 = vmatprep.mubr.f32.mxu0 0.0
  %1616 = vmatmul.mubr.f32.gmra.mrb[0].mxu0 %v1549
  %v1617 = vpop.f32.mrb[0].mxu0
  %v1618 = vadd.f32 0.0, %v1617
  %v1619 = vpop.f32.mrb[0].mxu0
  %1620 = vdwg.mxu0
  %v1621 = vadd.f32 %v320, %v1618
  %v1622 = vxor.u32 %v1621, 2147483648
  %v1623 = vmul.f32 %v1622, 1.442695
  %v1624 = vpow.pop %v1623
  %v1625 = vadd.f32 %v1624, 1.0
  %v1626 = vrcp.pop %v1625
  %v1627 = vmul.f32 1.0, %v1626
  %v1628 = vadd.f32 %v1618, %v1320
  %1630 = vrot.lane.b32.xlu0 %v1628, 64
  %v1631 = vpop.permute.xlu0 %1630
  %v1633 = vmul.f32 %v1627, %v1631
  %1635 = vrot.lane.b32.xlu0 %v1633, 64
  %v1636 = vpop.permute.xlu0 %1635
  %v1638 = vadd.f32 %v320, %v1636
  %v1639 = vtanh.pop %v1638
  %v1640 = vsub.f32 1.0, %v1627
  %1642 = vrot.lane.b32.xlu0 %v1639, 96
  %v1643 = vpop.permute.xlu0 %1642
  %v1645 = vmul.f32 %v1640, %v1643
  %v1646 = vmul.f32 %v1627, %v1545
  %v1647 = vadd.f32 %v1645, %v1646
  %1649 = vrot.lane.b32.xlu0 %v1647, 96
  %v1650 = vpop.permute.xlu0 %1649
  %v1651 = vsel %vm65, %v1650, 0
  %1653 = vmatprep.subr.mxu0 0.0
  %1654 = vmatpush1.msra.mxu0 %v1227
  %1655 = vmatprep.subr.mxu0 0.0
  %1656 = vmatpush1.msra.mxu0 %v1228
  %1657 = vmatprep.subr.mxu0 0.0
  %1658 = vmatpush1.msra.mxu0 %v1229
  %1659 = vmatprep.subr.mxu0 0.0
  %1660 = vmatpush1.msra.mxu0 %v1230
  %1661 = vmatprep.subr.mxu0 0.0
  %1662 = vmatpush1.msra.mxu0 0.0
  %1663 = vmatprep.subr.mxu0 0.0
  %1664 = vmatpush1.msra.mxu0 0.0
  %1665 = vmatprep.subr.mxu0 0.0
  %1666 = vmatpush1.msra.mxu0 0.0
  %1667 = vmatprep.subr.mxu0 0.0
  %1668 = vmatpush1.msra.mxu0 0.0
  %1669 = vmatprep.subr.mxu0 0.0
  %1670 = vmatpush1.msra.mxu0 0.0
  %1671 = vmatprep.subr.mxu0 0.0
  %1672 = vmatpush1.msra.mxu0 0.0
  %1673 = vmatprep.subr.mxu0 0.0
  %1674 = vmatpush1.msra.mxu0 0.0
  %1675 = vmatprep.subr.mxu0 0.0
  %1676 = vmatpush1.msra.mxu0 0.0
  %1677 = vmatprep.subr.mxu0 0.0
  %1678 = vmatpush1.msra.mxu0 0.0
  %1679 = vmatprep.subr.mxu0 0.0
  %1680 = vmatpush1.msra.mxu0 0.0
  %1681 = vmatprep.subr.mxu0 0.0
  %1682 = vmatpush1.msra.mxu0 0.0
  %1683 = vmatprep.subr.mxu0 0.0
  %1684 = vmatpush1.msra.mxu0 0.0
  %1685 = vmatprep.subr.mxu0 0.0
  %1686 = vmatpush1.msra.mxu0 0.0
  %1687 = vmatprep.subr.mxu0 0.0
  %1688 = vmatpush1.msra.mxu0 0.0
  %1689 = vmatprep.subr.mxu0 0.0
  %1690 = vmatpush1.msra.mxu0 0.0
  %1691 = vmatprep.subr.mxu0 0.0
  %1692 = vmatpush1.msra.mxu0 0.0
  %1693 = vmatprep.subr.mxu0 0.0
  %1694 = vmatpush1.msra.mxu0 0.0
  %1695 = vmatprep.subr.mxu0 0.0
  %1696 = vmatpush1.msra.mxu0 0.0
  %1697 = vmatprep.subr.mxu0 0.0
  %1698 = vmatpush1.msra.mxu0 0.0
  %1699 = vmatprep.subr.mxu0 0.0
  %1700 = vmatpush1.msra.mxu0 0.0
  %1701 = vmatprep.subr.mxu0 0.0
  %1702 = vmatpush1.msra.mxu0 0.0
  %1703 = vmatprep.subr.mxu0 0.0
  %1704 = vmatpush1.msra.mxu0 0.0
  %1705 = vmatprep.subr.mxu0 0.0
  %1706 = vmatpush1.msra.mxu0 0.0
  %1707 = vmatprep.subr.mxu0 0.0
  %1708 = vmatpush1.msra.mxu0 0.0
  %1709 = vmatprep.subr.mxu0 0.0
  %1710 = vmatpush1.msra.mxu0 0.0
  %1711 = vmatprep.subr.mxu0 0.0
  %1712 = vmatpush1.msra.mxu0 0.0
  %1713 = vmatprep.subr.mxu0 0.0
  %1714 = vmatpush1.msra.mxu0 0.0
  %1715 = vmatprep.subr.mxu0 0.0
  %1716 = vmatpush1.msra.mxu0 0.0
  %1717 = vmatprep.mubr.f32.mxu0 0.0
  %1718 = vmatmul.mubr.f32.gmra.mrb[0].mxu0 %v1651
  %v1719 = vpop.f32.mrb[0].mxu0
  %v1720 = vadd.f32 0.0, %v1719
  %v1721 = vpop.f32.mrb[0].mxu0
  %1722 = vdwg.mxu0
  %v1723 = vadd.f32 %v325, %v1720
  %v1724 = vxor.u32 %v1723, 2147483648
  %v1725 = vmul.f32 %v1724, 1.442695
  %v1726 = vpow.pop %v1725
  %v1727 = vadd.f32 %v1726, 1.0
  %v1728 = vrcp.pop %v1727
  %v1729 = vmul.f32 1.0, %v1728
  %v1730 = vadd.f32 %v1720, %v1320
  %1732 = vrot.lane.b32.xlu0 %v1730, 64
  %v1733 = vpop.permute.xlu0 %1732
  %v1735 = vmul.f32 %v1729, %v1733
  %1737 = vrot.lane.b32.xlu0 %v1735, 64
  %v1738 = vpop.permute.xlu0 %1737
  %v1740 = vadd.f32 %v325, %v1738
  %v1741 = vtanh.pop %v1740
  %v1742 = vsub.f32 1.0, %v1729
  %1744 = vrot.lane.b32.xlu0 %v1741, 96
  %v1745 = vpop.permute.xlu0 %1744
  %v1747 = vmul.f32 %v1742, %v1745
  %v1748 = vmul.f32 %v1729, %v1647
  %v1749 = vadd.f32 %v1747, %v1748
  %1751 = vrot.lane.b32.xlu0 %v1749, 96
  %v1752 = vpop.permute.xlu0 %1751
  %v1753 = vsel %vm65, %v1752, 0
  %1755 = vmatprep.subr.mxu0 0.0
  %1756 = vmatpush1.msra.mxu0 %v1227
  %1757 = vmatprep.subr.mxu0 0.0
  %1758 = vmatpush1.msra.mxu0 %v1228
  %1759 = vmatprep.subr.mxu0 0.0
  %1760 = vmatpush1.msra.mxu0 %v1229
  %1761 = vmatprep.subr.mxu0 0.0
  %1762 = vmatpush1.msra.mxu0 %v1230
  %1763 = vmatprep.subr.mxu0 0.0
  %1764 = vmatpush1.msra.mxu0 0.0
  %1765 = vmatprep.subr.mxu0 0.0
  %1766 = vmatpush1.msra.mxu0 0.0
  %1767 = vmatprep.subr.mxu0 0.0
  %1768 = vmatpush1.msra.mxu0 0.0
  %1769 = vmatprep.subr.mxu0 0.0
  %1770 = vmatpush1.msra.mxu0 0.0
  %1771 = vmatprep.subr.mxu0 0.0
  %1772 = vmatpush1.msra.mxu0 0.0
  %1773 = vmatprep.subr.mxu0 0.0
  %1774 = vmatpush1.msra.mxu0 0.0
  %1775 = vmatprep.subr.mxu0 0.0
  %1776 = vmatpush1.msra.mxu0 0.0
  %1777 = vmatprep.subr.mxu0 0.0
  %1778 = vmatpush1.msra.mxu0 0.0
  %1779 = vmatprep.subr.mxu0 0.0
  %1780 = vmatpush1.msra.mxu0 0.0
  %1781 = vmatprep.subr.mxu0 0.0
  %1782 = vmatpush1.msra.mxu0 0.0
  %1783 = vmatprep.subr.mxu0 0.0
  %1784 = vmatpush1.msra.mxu0 0.0
  %1785 = vmatprep.subr.mxu0 0.0
  %1786 = vmatpush1.msra.mxu0 0.0
  %1787 = vmatprep.subr.mxu0 0.0
  %1788 = vmatpush1.msra.mxu0 0.0
  %1789 = vmatprep.subr.mxu0 0.0
  %1790 = vmatpush1.msra.mxu0 0.0
  %1791 = vmatprep.subr.mxu0 0.0
  %1792 = vmatpush1.msra.mxu0 0.0
  %1793 = vmatprep.subr.mxu0 0.0
  %1794 = vmatpush1.msra.mxu0 0.0
  %1795 = vmatprep.subr.mxu0 0.0
  %1796 = vmatpush1.msra.mxu0 0.0
  %1797 = vmatprep.subr.mxu0 0.0
  %1798 = vmatpush1.msra.mxu0 0.0
  %1799 = vmatprep.subr.mxu0 0.0
  %1800 = vmatpush1.msra.mxu0 0.0
  %1801 = vmatprep.subr.mxu0 0.0
  %1802 = vmatpush1.msra.mxu0 0.0
  %1803 = vmatprep.subr.mxu0 0.0
  %1804 = vmatpush1.msra.mxu0 0.0
  %1805 = vmatprep.subr.mxu0 0.0
  %1806 = vmatpush1.msra.mxu0 0.0
  %1807 = vmatprep.subr.mxu0 0.0
  %1808 = vmatpush1.msra.mxu0 0.0
  %1809 = vmatprep.subr.mxu0 0.0
  %1810 = vmatpush1.msra.mxu0 0.0
  %1811 = vmatprep.subr.mxu0 0.0
  %1812 = vmatpush1.msra.mxu0 0.0
  %1813 = vmatprep.subr.mxu0 0.0
  %1814 = vmatpush1.msra.mxu0 0.0
  %1815 = vmatprep.subr.mxu0 0.0
  %1816 = vmatpush1.msra.mxu0 0.0
  %1817 = vmatprep.subr.mxu0 0.0
  %1818 = vmatpush1.msra.mxu0 0.0
  %1819 = vmatprep.mubr.f32.mxu0 0.0
  %1820 = vmatmul.mubr.f32.gmra.mrb[0].mxu0 %v1753
  %v1821 = vpop.f32.mrb[0].mxu0
  %v1822 = vadd.f32 0.0, %v1821
  %v1823 = vpop.f32.mrb[0].mxu0
  %1824 = vdwg.mxu0
  %v1825 = vadd.f32 %v330, %v1822
  %v1826 = vxor.u32 %v1825, 2147483648
  %v1827 = vmul.f32 %v1826, 1.442695
  %v1828 = vpow.pop %v1827
  %v1829 = vadd.f32 %v1828, 1.0
  %v1830 = vrcp.pop %v1829
  %v1831 = vmul.f32 1.0, %v1830
  %v1832 = vadd.f32 %v1822, %v1320
  %1834 = vrot.lane.b32.xlu0 %v1832, 64
  %v1835 = vpop.permute.xlu0 %1834
  %v1837 = vmul.f32 %v1831, %v1835
  %1839 = vrot.lane.b32.xlu0 %v1837, 64
  %v1840 = vpop.permute.xlu0 %1839
  %v1842 = vadd.f32 %v330, %v1840
  %v1843 = vtanh.pop %v1842
  %v1844 = vsub.f32 1.0, %v1831
  %1846 = vrot.lane.b32.xlu0 %v1843, 96
  %v1847 = vpop.permute.xlu0 %1846
  %v1849 = vmul.f32 %v1844, %v1847
  %v1850 = vmul.f32 %v1831, %v1749
  %v1851 = vadd.f32 %v1849, %v1850
  %1853 = vrot.lane.b32.xlu0 %v1851, 96
  %v1854 = vpop.permute.xlu0 %1853
  %v1855 = vsel %vm65, %v1854, 0
  %1857 = vmatprep.subr.mxu0 0.0
  %1858 = vmatpush1.msra.mxu0 %v1227
  %1859 = vmatprep.subr.mxu0 0.0
  %1860 = vmatpush1.msra.mxu0 %v1228
  %1861 = vmatprep.subr.mxu0 0.0
  %1862 = vmatpush1.msra.mxu0 %v1229
  %1863 = vmatprep.subr.mxu0 0.0
  %1864 = vmatpush1.msra.mxu0 %v1230
  %1865 = vmatprep.subr.mxu0 0.0
  %1866 = vmatpush1.msra.mxu0 0.0
  %1867 = vmatprep.subr.mxu0 0.0
  %1868 = vmatpush1.msra.mxu0 0.0
  %1869 = vmatprep.subr.mxu0 0.0
  %1870 = vmatpush1.msra.mxu0 0.0
  %1871 = vmatprep.subr.mxu0 0.0
  %1872 = vmatpush1.msra.mxu0 0.0
  %1873 = vmatprep.subr.mxu0 0.0
  %1874 = vmatpush1.msra.mxu0 0.0
  %1875 = vmatprep.subr.mxu0 0.0
  %1876 = vmatpush1.msra.mxu0 0.0
  %1877 = vmatprep.subr.mxu0 0.0
  %1878 = vmatpush1.msra.mxu0 0.0
  %1879 = vmatprep.subr.mxu0 0.0
  %1880 = vmatpush1.msra.mxu0 0.0
  %1881 = vmatprep.subr.mxu0 0.0
  %1882 = vmatpush1.msra.mxu0 0.0
  %1883 = vmatprep.subr.mxu0 0.0
  %1884 = vmatpush1.msra.mxu0 0.0
  %1885 = vmatprep.subr.mxu0 0.0
  %1886 = vmatpush1.msra.mxu0 0.0
  %1887 = vmatprep.subr.mxu0 0.0
  %1888 = vmatpush1.msra.mxu0 0.0
  %1889 = vmatprep.subr.mxu0 0.0
  %1890 = vmatpush1.msra.mxu0 0.0
  %1891 = vmatprep.subr.mxu0 0.0
  %1892 = vmatpush1.msra.mxu0 0.0
  %1893 = vmatprep.subr.mxu0 0.0
  %1894 = vmatpush1.msra.mxu0 0.0
  %1895 = vmatprep.subr.mxu0 0.0
  %1896 = vmatpush1.msra.mxu0 0.0
  %1897 = vmatprep.subr.mxu0 0.0
  %1898 = vmatpush1.msra.mxu0 0.0
  %1899 = vmatprep.subr.mxu0 0.0
  %1900 = vmatpush1.msra.mxu0 0.0
  %1901 = vmatprep.subr.mxu0 0.0
  %1902 = vmatpush1.msra.mxu0 0.0
  %1903 = vmatprep.subr.mxu0 0.0
  %1904 = vmatpush1.msra.mxu0 0.0
  %1905 = vmatprep.subr.mxu0 0.0
  %1906 = vmatpush1.msra.mxu0 0.0
  %1907 = vmatprep.subr.mxu0 0.0
  %1908 = vmatpush1.msra.mxu0 0.0
  %1909 = vmatprep.subr.mxu0 0.0
  %1910 = vmatpush1.msra.mxu0 0.0
  %1911 = vmatprep.subr.mxu0 0.0
  %1912 = vmatpush1.msra.mxu0 0.0
  %1913 = vmatprep.subr.mxu0 0.0
  %1914 = vmatpush1.msra.mxu0 0.0
  %1915 = vmatprep.subr.mxu0 0.0
  %1916 = vmatpush1.msra.mxu0 0.0
  %1917 = vmatprep.subr.mxu0 0.0
  %1918 = vmatpush1.msra.mxu0 0.0
  %1919 = vmatprep.subr.mxu0 0.0
  %1920 = vmatpush1.msra.mxu0 0.0
  %1921 = vmatprep.mubr.f32.mxu0 0.0
  %1922 = vmatmul.mubr.f32.gmra.mrb[0].mxu0 %v1855
  %v1923 = vpop.f32.mrb[0].mxu0
  %v1924 = vadd.f32 0.0, %v1923
  %v1925 = vpop.f32.mrb[0].mxu0
  %1926 = vdwg.mxu0
  %v1927 = vadd.f32 %v335, %v1924
  %v1928 = vxor.u32 %v1927, 2147483648
  %v1929 = vmul.f32 %v1928, 1.442695
  %v1930 = vpow.pop %v1929
  %v1931 = vadd.f32 %v1930, 1.0
  %v1932 = vrcp.pop %v1931
  %v1933 = vmul.f32 1.0, %v1932
  %v1934 = vadd.f32 %v1924, %v1320
  %1936 = vrot.lane.b32.xlu0 %v1934, 64
  %v1937 = vpop.permute.xlu0 %1936
  %v1939 = vmul.f32 %v1933, %v1937
  %1941 = vrot.lane.b32.xlu0 %v1939, 64
  %v1942 = vpop.permute.xlu0 %1941
  %v1944 = vadd.f32 %v335, %v1942
  %v1945 = vtanh.pop %v1944
  %v1946 = vsub.f32 1.0, %v1933
  %1948 = vrot.lane.b32.xlu0 %v1945, 96
  %v1949 = vpop.permute.xlu0 %1948
  %v1951 = vmul.f32 %v1946, %v1949
  %v1952 = vmul.f32 %v1933, %v1851
  %v1953 = vadd.f32 %v1951, %v1952
  %1955 = vrot.lane.b32.xlu0 %v1953, 96
  %v1956 = vpop.permute.xlu0 %1955
  %v1957 = vsel %vm65, %v1956, 0
  %1959 = vmatprep.subr.mxu0 0.0
  %1960 = vmatpush1.msra.mxu0 %v1227
  %1961 = vmatprep.subr.mxu0 0.0
  %1962 = vmatpush1.msra.mxu0 %v1228
  %1963 = vmatprep.subr.mxu0 0.0
  %1964 = vmatpush1.msra.mxu0 %v1229
  %1965 = vmatprep.subr.mxu0 0.0
  %1966 = vmatpush1.msra.mxu0 %v1230
  %1967 = vmatprep.subr.mxu0 0.0
  %1968 = vmatpush1.msra.mxu0 0.0
  %1969 = vmatprep.subr.mxu0 0.0
  %1970 = vmatpush1.msra.mxu0 0.0
  %1971 = vmatprep.subr.mxu0 0.0
  %1972 = vmatpush1.msra.mxu0 0.0
  %1973 = vmatprep.subr.mxu0 0.0
  %1974 = vmatpush1.msra.mxu0 0.0
  %1975 = vmatprep.subr.mxu0 0.0
  %1976 = vmatpush1.msra.mxu0 0.0
  %1977 = vmatprep.subr.mxu0 0.0
  %1978 = vmatpush1.msra.mxu0 0.0
  %1979 = vmatprep.subr.mxu0 0.0
  %1980 = vmatpush1.msra.mxu0 0.0
  %1981 = vmatprep.subr.mxu0 0.0
  %1982 = vmatpush1.msra.mxu0 0.0
  %1983 = vmatprep.subr.mxu0 0.0
  %1984 = vmatpush1.msra.mxu0 0.0
  %1985 = vmatprep.subr.mxu0 0.0
  %1986 = vmatpush1.msra.mxu0 0.0
  %1987 = vmatprep.subr.mxu0 0.0
  %1988 = vmatpush1.msra.mxu0 0.0
  %1989 = vmatprep.subr.mxu0 0.0
  %1990 = vmatpush1.msra.mxu0 0.0
  %1991 = vmatprep.subr.mxu0 0.0
  %1992 = vmatpush1.msra.mxu0 0.0
  %1993 = vmatprep.subr.mxu0 0.0
  %1994 = vmatpush1.msra.mxu0 0.0
  %1995 = vmatprep.subr.mxu0 0.0
  %1996 = vmatpush1.msra.mxu0 0.0
  %1997 = vmatprep.subr.mxu0 0.0
  %1998 = vmatpush1.msra.mxu0 0.0
  %1999 = vmatprep.subr.mxu0 0.0
  %2000 = vmatpush1.msra.mxu0 0.0
  %2001 = vmatprep.subr.mxu0 0.0
  %2002 = vmatpush1.msra.mxu0 0.0
  %2003 = vmatprep.subr.mxu0 0.0
  %2004 = vmatpush1.msra.mxu0 0.0
  %2005 = vmatprep.subr.mxu0 0.0
  %2006 = vmatpush1.msra.mxu0 0.0
  %2007 = vmatprep.subr.mxu0 0.0
  %2008 = vmatpush1.msra.mxu0 0.0
  %2009 = vmatprep.subr.mxu0 0.0
  %2010 = vmatpush1.msra.mxu0 0.0
  %2011 = vmatprep.subr.mxu0 0.0
  %2012 = vmatpush1.msra.mxu0 0.0
  %2013 = vmatprep.subr.mxu0 0.0
  %2014 = vmatpush1.msra.mxu0 0.0
  %2015 = vmatprep.subr.mxu0 0.0
  %2016 = vmatpush1.msra.mxu0 0.0
  %2017 = vmatprep.subr.mxu0 0.0
  %2018 = vmatpush1.msra.mxu0 0.0
  %2019 = vmatprep.subr.mxu0 0.0
  %2020 = vmatpush1.msra.mxu0 0.0
  %2021 = vmatprep.subr.mxu0 0.0
  %2022 = vmatpush1.msra.mxu0 0.0
  %2023 = vmatprep.mubr.f32.mxu0 0.0
  %2024 = vmatmul.mubr.f32.gmra.mrb[0].mxu0 %v1957
  %v2025 = vpop.f32.mrb[0].mxu0
  %v2026 = vadd.f32 0.0, %v2025
  %v2027 = vpop.f32.mrb[0].mxu0
  %2028 = vdwg.mxu0
  %v2029 = vadd.f32 %v340, %v2026
  %v2030 = vxor.u32 %v2029, 2147483648
  %v2031 = vmul.f32 %v2030, 1.442695
  %v2032 = vpow.pop %v2031
  %v2033 = vadd.f32 %v2032, 1.0
  %v2034 = vrcp.pop %v2033
  %v2035 = vmul.f32 1.0, %v2034
  %v2036 = vadd.f32 %v2026, %v1320
  %2038 = vrot.lane.b32.xlu0 %v2036, 64
  %v2039 = vpop.permute.xlu0 %2038
  %v2041 = vmul.f32 %v2035, %v2039
  %2043 = vrot.lane.b32.xlu0 %v2041, 64
  %v2044 = vpop.permute.xlu0 %2043
  %v2046 = vadd.f32 %v340, %v2044
  %v2047 = vtanh.pop %v2046
  %v2048 = vsub.f32 1.0, %v2035
  %2050 = vrot.lane.b32.xlu0 %v2047, 96
  %v2051 = vpop.permute.xlu0 %2050
  %v2053 = vmul.f32 %v2048, %v2051
  %v2054 = vmul.f32 %v2035, %v1953
  %v2055 = vadd.f32 %v2053, %v2054
  %2057 = vrot.lane.b32.xlu0 %v2055, 96
  %v2058 = vpop.permute.xlu0 %2057
  %2060 = vst.msk [vmem:[%s14] sm:$0xff] %vm65, %v2058
  %v2061 = vld [vmem:[%s11] sm:$0xff]
  %v2062 = vld [vmem:[%s11 + $0x8] sm:$0xff]
  %v2063 = vld [vmem:[%s11 + $0x10] sm:$0xff]
  %v2064 = vld [vmem:[%s11 + $0x18] sm:$0xff]
  %v2065 = vld [vmem:[%s12] sm:$0x1]
  %v2067 = vlaneseq
  %v2068 = vshrl.u32 %v2067, 7
  %v2069 = vsub.s32 0, %v2068
  %v2070 = vrot.slane %v2065, %v2069
  %v2072 = vsel %vm65, %v2058, 0
  %2074 = vmatprep.subr.mxu0 0.0
  %2075 = vmatpush1.msra.mxu0 %v2061
  %2076 = vmatprep.subr.mxu0 0.0
  %2077 = vmatpush1.msra.mxu0 %v2062
  %2078 = vmatprep.subr.mxu0 0.0
  %2079 = vmatpush1.msra.mxu0 %v2063
  %2080 = vmatprep.subr.mxu0 0.0
  %2081 = vmatpush1.msra.mxu0 %v2064
  %2082 = vmatprep.subr.mxu0 0.0
  %2083 = vmatpush1.msra.mxu0 0.0
  %2084 = vmatprep.subr.mxu0 0.0
  %2085 = vmatpush1.msra.mxu0 0.0
  %2086 = vmatprep.subr.mxu0 0.0
  %2087 = vmatpush1.msra.mxu0 0.0
  %2088 = vmatprep.subr.mxu0 0.0
  %2089 = vmatpush1.msra.mxu0 0.0
  %2090 = vmatprep.subr.mxu0 0.0
  %2091 = vmatpush1.msra.mxu0 0.0
  %2092 = vmatprep.subr.mxu0 0.0
  %2093 = vmatpush1.msra.mxu0 0.0
  %2094 = vmatprep.subr.mxu0 0.0
  %2095 = vmatpush1.msra.mxu0 0.0
  %2096 = vmatprep.subr.mxu0 0.0
  %2097 = vmatpush1.msra.mxu0 0.0
  %2098 = vmatprep.subr.mxu0 0.0
  %2099 = vmatpush1.msra.mxu0 0.0
  %2100 = vmatprep.subr.mxu0 0.0
  %2101 = vmatpush1.msra.mxu0 0.0
  %2102 = vmatprep.subr.mxu0 0.0
  %2103 = vmatpush1.msra.mxu0 0.0
  %2104 = vmatprep.subr.mxu0 0.0
  %2105 = vmatpush1.msra.mxu0 0.0
  %2106 = vmatprep.subr.mxu0 0.0
  %2107 = vmatpush1.msra.mxu0 0.0
  %2108 = vmatprep.subr.mxu0 0.0
  %2109 = vmatpush1.msra.mxu0 0.0
  %2110 = vmatprep.subr.mxu0 0.0
  %2111 = vmatpush1.msra.mxu0 0.0
  %2112 = vmatprep.subr.mxu0 0.0
  %2113 = vmatpush1.msra.mxu0 0.0
  %2114 = vmatprep.subr.mxu0 0.0
  %2115 = vmatpush1.msra.mxu0 0.0
  %2116 = vmatprep.subr.mxu0 0.0
  %2117 = vmatpush1.msra.mxu0 0.0
  %2118 = vmatprep.subr.mxu0 0.0
  %2119 = vmatpush1.msra.mxu0 0.0
  %2120 = vmatprep.subr.mxu0 0.0
  %2121 = vmatpush1.msra.mxu0 0.0
  %2122 = vmatprep.subr.mxu0 0.0
  %2123 = vmatpush1.msra.mxu0 0.0
  %2124 = vmatprep.subr.mxu0 0.0
  %2125 = vmatpush1.msra.mxu0 0.0
  %2126 = vmatprep.subr.mxu0 0.0
  %2127 = vmatpush1.msra.mxu0 0.0
  %2128 = vmatprep.subr.mxu0 0.0
  %2129 = vmatpush1.msra.mxu0 0.0
  %2130 = vmatprep.subr.mxu0 0.0
  %2131 = vmatpush1.msra.mxu0 0.0
  %2132 = vmatprep.subr.mxu0 0.0
  %2133 = vmatpush1.msra.mxu0 0.0
  %2134 = vmatprep.subr.mxu0 0.0
  %2135 = vmatpush1.msra.mxu0 0.0
  %2136 = vmatprep.subr.mxu0 0.0
  %2137 = vmatpush1.msra.mxu0 0.0
  %2138 = vmatprep.mubr.f32.mxu0 0.0
  %2139 = vmatmul.mubr.f32.gmra.mrb[0].mxu0 %v1345
  %v2140 = vpop.f32.mrb[0].mxu0
  %v2141 = vadd.f32 %v2070, %v2140
  %v2142 = vpop.f32.mrb[0].mxu0
  %2143 = vmatprep.mubr.f32.mxu0 0.0
  %2144 = vmatmul.mubr.f32.gmra.mrb[0].mxu0 %v1447
  %v2145 = vpop.f32.mrb[0].mxu0
  %v2146 = vadd.f32 %v2070, %v2145
  %v2147 = vpop.f32.mrb[0].mxu0
  %2148 = vmatprep.mubr.f32.mxu0 0.0
  %2149 = vmatmul.mubr.f32.gmra.mrb[0].mxu0 %v1549
  %v2150 = vpop.f32.mrb[0].mxu0
  %v2151 = vadd.f32 %v2070, %v2150
  %v2152 = vpop.f32.mrb[0].mxu0
  %2153 = vmatprep.mubr.f32.mxu0 0.0
  %2154 = vmatmul.mubr.f32.gmra.mrb[0].mxu0 %v1651
  %v2155 = vpop.f32.mrb[0].mxu0
  %v2156 = vadd.f32 %v2070, %v2155
  %v2157 = vpop.f32.mrb[0].mxu0
  %2158 = vmatprep.mubr.f32.mxu0 0.0
  %2159 = vmatmul.mubr.f32.gmra.mrb[0].mxu0 %v1753
  %v2160 = vpop.f32.mrb[0].mxu0
  %v2161 = vadd.f32 %v2070, %v2160
  %v2162 = vpop.f32.mrb[0].mxu0
  %2163 = vmatprep.mubr.f32.mxu0 0.0
  %2164 = vmatmul.mubr.f32.gmra.mrb[0].mxu0 %v1855
  %v2165 = vpop.f32.mrb[0].mxu0
  %v2166 = vadd.f32 %v2070, %v2165
  %v2167 = vpop.f32.mrb[0].mxu0
  %2168 = vmatprep.mubr.f32.mxu0 0.0
  %2169 = vmatmul.mubr.f32.gmra.mrb[0].mxu0 %v1957
  %v2170 = vpop.f32.mrb[0].mxu0
  %v2171 = vadd.f32 %v2070, %v2170
  %v2172 = vpop.f32.mrb[0].mxu0
  %2173 = vmatprep.mubr.f32.mxu0 0.0
  %2174 = vmatmul.mubr.f32.gmra.mrb[0].mxu0 %v2072
  %v2175 = vpop.f32.mrb[0].mxu0
  %v2176 = vadd.f32 %v2070, %v2175
  %v2177 = vpop.f32.mrb[0].mxu0
  %2178 = vdwg.mxu0
  %2179 = vmax.xlane.f32.xlu0 %v2141
  %v2180 = vpop.xlane.xlu0 %2179
  %2181 = vmax.xlane.f32.xlu0 %v2146
  %v2182 = vpop.xlane.xlu0 %2181
  %2183 = vmax.xlane.f32.xlu0 %v2151
  %v2184 = vpop.xlane.xlu0 %2183
  %2185 = vmax.xlane.f32.xlu0 %v2156
  %v2186 = vpop.xlane.xlu0 %2185
  %2187 = vmax.xlane.f32.xlu0 %v2161
  %v2188 = vpop.xlane.xlu0 %2187
  %2189 = vmax.xlane.f32.xlu0 %v2166
  %v2190 = vpop.xlane.xlu0 %2189
  %2191 = vmax.xlane.f32.xlu0 %v2171
  %v2192 = vpop.xlane.xlu0 %2191
  %2193 = vmax.xlane.f32.xlu0 %v2176
  %v2194 = vpop.xlane.xlu0 %2193
  %v2195 = vsub.f32 %v2141, %v2180
  %v2196 = vsub.f32 %v2146, %v2182
  %v2197 = vsub.f32 %v2151, %v2184
  %v2198 = vsub.f32 %v2156, %v2186
  %v2199 = vsub.f32 %v2161, %v2188
  %v2200 = vsub.f32 %v2166, %v2190
  %v2201 = vsub.f32 %v2171, %v2192
  %v2202 = vsub.f32 %v2176, %v2194
  %v2203 = vmul.f32 %v2195, 1.442695
  %v2204 = vpow.pop %v2203
  %v2205 = vmul.f32 %v2196, 1.442695
  %v2206 = vpow.pop %v2205
  %v2207 = vmul.f32 %v2197, 1.442695
  %v2208 = vpow.pop %v2207
  %v2209 = vmul.f32 %v2198, 1.442695
  %v2210 = vpow.pop %v2209
  %v2211 = vmul.f32 %v2199, 1.442695
  %v2212 = vpow.pop %v2211
  %v2213 = vmul.f32 %v2200, 1.442695
  %v2214 = vpow.pop %v2213
  %v2215 = vmul.f32 %v2201, 1.442695
  %v2216 = vpow.pop %v2215
  %v2217 = vmul.f32 %v2202, 1.442695
  %v2218 = vpow.pop %v2217
  %2219 = vadd.xlane.f32.xlu0 %v2204
  %v2220 = vpop.xlane.xlu0 %2219
  %2221 = vadd.xlane.f32.xlu0 %v2206
  %v2222 = vpop.xlane.xlu0 %2221
  %2223 = vadd.xlane.f32.xlu0 %v2208
  %v2224 = vpop.xlane.xlu0 %2223
  %2225 = vadd.xlane.f32.xlu0 %v2210
  %v2226 = vpop.xlane.xlu0 %2225
  %2227 = vadd.xlane.f32.xlu0 %v2212
  %v2228 = vpop.xlane.xlu0 %2227
  %2229 = vadd.xlane.f32.xlu0 %v2214
  %v2230 = vpop.xlane.xlu0 %2229
  %2231 = vadd.xlane.f32.xlu0 %v2216
  %v2232 = vpop.xlane.xlu0 %2231
  %2233 = vadd.xlane.f32.xlu0 %v2218
  %v2234 = vpop.xlane.xlu0 %2233
  %v2235 = vlog2.pop %v2220
  %v2236 = vmul.f32 %v2235, 0.6931472
  %v2237 = vlog2.pop %v2222
  %v2238 = vmul.f32 %v2237, 0.6931472
  %v2239 = vlog2.pop %v2224
  %v2240 = vmul.f32 %v2239, 0.6931472
  %v2241 = vlog2.pop %v2226
  %v2242 = vmul.f32 %v2241, 0.6931472
  %v2243 = vlog2.pop %v2228
  %v2244 = vmul.f32 %v2243, 0.6931472
  %v2245 = vlog2.pop %v2230
  %v2246 = vmul.f32 %v2245, 0.6931472
  %v2247 = vlog2.pop %v2232
  %v2248 = vmul.f32 %v2247, 0.6931472
  %v2249 = vlog2.pop %v2234
  %v2250 = vmul.f32 %v2249, 0.6931472
  %v2251 = vsub.f32 %v2195, %v2236
  %v2252 = vsub.f32 %v2196, %v2238
  %v2253 = vsub.f32 %v2197, %v2240
  %v2254 = vsub.f32 %v2198, %v2242
  %v2255 = vsub.f32 %v2199, %v2244
  %v2256 = vsub.f32 %v2200, %v2246
  %v2257 = vsub.f32 %v2201, %v2248
  %v2258 = vsub.f32 %v2202, %v2250
  %2259 = vst [vmem:[%s13] sm:$0xff] %v2251
  %2260 = vst [vmem:[%s13 + $0x8] sm:$0xff] %v2252
  %2261 = vst [vmem:[%s13 + $0x10] sm:$0xff] %v2253
  %2262 = vst [vmem:[%s13 + $0x18] sm:$0xff] %v2254
  %2263 = vst [vmem:[%s13 + $0x20] sm:$0xff] %v2255
  %2264 = vst [vmem:[%s13 + $0x28] sm:$0xff] %v2256
  %2265 = vst [vmem:[%s13 + $0x30] sm:$0xff] %v2257
  %2266 = vst [vmem:[%s13 + $0x38] sm:$0xff] %v2258
  // Predicated region
  $region54: #{seq2seq_forward.1} parent=0 // pred_check
    _
  $region55: #{seq2seq_forward.1} parent=0 // pred_check_branch
    %2268 = sbr.rel (0) target = $region57
  $region56: #{seq2seq_forward.1} parent=0 // pred_region
    _
  $region57: #{seq2seq_forward.1} parent=0 // pred_fallthru
    _
  // Predicated region
  $region58: #{seq2seq_forward.1} parent=0 // pred_check
    _
  $region59: #{seq2seq_forward.1} parent=0 // pred_check_branch
    %2270 = sbr.rel (0) target = $region61
  $region60: #{seq2seq_forward.1} parent=0 // pred_region
    _
  $region61: #{seq2seq_forward.1} parent=0 // pred_fallthru
    _
  // Predicated region
  $region62: #{seq2seq_forward.1} parent=0 // pred_check
    _
  $region63: #{seq2seq_forward.1} parent=0 // pred_check_branch
    %2272 = sbr.rel (0) target = $region65
  $region64: #{seq2seq_forward.1} parent=0 // pred_region
    _
  $region65: #{seq2seq_forward.1} parent=0 // pred_fallthru
    _
  // Predicated region
  $region66: #{seq2seq_forward.1} parent=0 // pred_check
    _
  $region67: #{seq2seq_forward.1} parent=0 // pred_check_branch
    %2274 = sbr.rel (0) target = $region69
  $region68: #{seq2seq_forward.1} parent=0 // pred_region
    _
  $region69: #{seq2seq_forward.1} parent=0 // pred_fallthru
    _

</llo_original>
